<compile_context>
chip_gen: v5e
topology: v5e:2x2
jax: 0.10.0
libtpu: 0.0.40
codegen_flags: <defaults>
</compile_context>

<pallas_src>
import functools

import jax
import jax.numpy as jnp
from jax import lax
from jax.experimental import pallas as pl
from jax.experimental.pallas import tpu as pltpu

# ------------------------------------------------------------------
# Scaled-down SAM configuration.
# ------------------------------------------------------------------
IMG_SIZE = 32                    # image_encoder.img_size
PATCH = 8                        # ViT patch size
VIT_DIM = 64                     # ViT embedding dim
VIT_HEADS = 2
VIT_DEPTH = 1
MLP_RATIO = 2
EMBED_DIM = 32                   # prompt / mask-decoder transformer dim
EMB_HW = IMG_SIZE // PATCH       # image embedding spatial size = 4
NUM_MULTIMASK = 3
NUM_MASK_TOKENS = NUM_MULTIMASK + 1
DEC_HEADS = 2
DEC_MLP = 64
DEC_DEPTH = 2
IOU_HIDDEN = 32

PIXEL_MEAN = jnp.array([123.675, 116.28, 103.53], jnp.float32).reshape(3, 1, 1)
PIXEL_STD = jnp.array([58.395, 57.12, 57.375], jnp.float32).reshape(3, 1, 1)

ATTN_KEYS = ("q_w", "q_b", "k_w", "k_b", "v_w", "v_b", "out_w", "out_b")


# ------------------------------------------------------------------
# In-kernel helpers (operate on loaded values inside a Pallas kernel)
# ------------------------------------------------------------------
def _mm(x, w):
    """bf16-operand MXU matmul with f32 accumulation (w already bf16)."""
    return jnp.dot(x.astype(jnp.bfloat16), w, preferred_element_type=jnp.float32)


def _kln(x, g, b, eps):
    """LayerNorm over the last (lane) axis, stats in f32."""
    mu = jnp.mean(x, axis=-1, keepdims=True)
    xc = x - mu
    var = jnp.mean(xc * xc, axis=-1, keepdims=True)
    return xc * lax.rsqrt(var + eps) * g + b


def _softmax_lanes(s):
    s = s - jnp.max(s, axis=-1, keepdims=True)
    e = jnp.exp(s)
    return e * pl.reciprocal(jnp.sum(e, axis=-1, keepdims=True), approx=True)


def _kattn(qin, kin, vin, w, heads):
    """Fused multi-head attention (proj + scores + softmax + PV + out-proj).

    w = (qw, qb, kw, kb, vw, vb, ow, ob) as loaded values (weights bf16).
    """
    qw, qb, kw, kb, vw, vb, ow, ob = w
    q = _mm(qin, qw) + qb
    k = _mm(kin, kw) + kb
    v = _mm(vin, vw) + vb
    dint = q.shape[-1]
    dh = dint // heads
    scale = float(dh) ** -0.5
    outs = []
    for h in range(heads):
        qh = (q[:, h * dh:(h + 1) * dh] * scale).astype(jnp.bfloat16)
        kh = k[:, h * dh:(h + 1) * dh].astype(jnp.bfloat16)
        vh = v[:, h * dh:(h + 1) * dh].astype(jnp.bfloat16)
        s = lax.dot_general(qh, kh, (((1,), (1,)), ((), ())),
                            preferred_element_type=jnp.float32)
        p = _softmax_lanes(s)
        outs.append(jnp.dot(p.astype(jnp.bfloat16), vh,
                            preferred_element_type=jnp.float32))
    o = outs[0] if heads == 1 else jnp.concatenate(outs, axis=-1)
    return _mm(o, ow) + ob


# ------------------------------------------------------------------
# Pallas kernels (fused per stage)
# ------------------------------------------------------------------
def _patch_embed_kernel(p_ref, w_ref, b_ref, pos_ref, o_ref):
    o_ref[0] = _mm(p_ref[0], w_ref[...]) + b_ref[...] + pos_ref[...]


def _vit_block_kernel(x_ref, ln1g, ln1b, qkvw, qkvb, projw, projb,
                      ln2g, ln2b, w1, b1, w2, b2, o_ref, *, heads, eps):
    """Whole ViT block: LN1 -> QKV -> MHA -> proj -> +res -> LN2 -> MLP -> +res."""
    x = x_ref[0]                                             # (N, D) f32
    h = _kln(x, ln1g[...], ln1b[...], eps)
    qkv = _mm(h, qkvw[...]) + qkvb[...]                      # (N, 3D)
    d = x.shape[-1]
    dh = d // heads
    scale = float(dh) ** -0.5
    outs = []
    for hh in range(heads):
        qh = (qkv[:, hh * dh:(hh + 1) * dh] * scale).astype(jnp.bfloat16)
        kh = qkv[:, d + hh * dh: d + (hh + 1) * dh].astype(jnp.bfloat16)
        vh = qkv[:, 2 * d + hh * dh: 2 * d + (hh + 1) * dh].astype(jnp.bfloat16)
        s = lax.dot_general(qh, kh, (((1,), (1,)), ((), ())),
                            preferred_element_type=jnp.float32)
        p = _softmax_lanes(s)
        outs.append(jnp.dot(p.astype(jnp.bfloat16), vh,
                            preferred_element_type=jnp.float32))
    attn = outs[0] if heads == 1 else jnp.concatenate(outs, axis=-1)
    x = x + _mm(attn, projw[...]) + projb[...]
    h = _kln(x, ln2g[...], ln2b[...], eps)
    h = jax.nn.gelu(_mm(h, w1[...]) + b1[...], approximate=True)
    h = _mm(h, w2[...]) + b2[...]
    o_ref[0] = x + h


def _neck_kernel(x_ref, w1_ref, ln1g, ln1b, shift_ref, w2_ref, ln2g, ln2b,
                 o_ref, *, eps):
    """SAM neck: 1x1 conv -> LN2d -> 3x3 conv (padding=1) -> LN2d, fused.

    The 3x3 taps are done as "gather as matmul": shift_ref[k] is a constant
    one-hot (HW, HW) matrix selecting the (dy,dx)-neighbour row (zero rows at
    the boundary), so the shifted window never leaves VMEM.
    """
    x = x_ref[0]                                             # (HW, VIT_DIM)
    t = _mm(x, w1_ref[...])                                  # 1x1 conv, no bias
    t = _kln(t, ln1g[...], ln1b[...], eps)
    acc = jnp.zeros((t.shape[0], w2_ref.shape[-1]), jnp.float32)
    for k in range(9):
        sh = jnp.dot(shift_ref[k], t, preferred_element_type=jnp.float32)
        acc = acc + _mm(sh, w2_ref[k])
    o_ref[0] = _kln(acc, ln2g[...], ln2b[...], eps)


def _twoway_block_kernel(*refs, heads, skip_pe, eps):
    """One fused TwoWayAttentionBlock (self-attn, cross t2i, MLP, cross i2t)."""
    (q_ref, k_ref, qpe_ref, kpe_ref,
     sa_qw, sa_qb, sa_kw, sa_kb, sa_vw, sa_vb, sa_ow, sa_ob,
     n1g, n1b,
     ta_qw, ta_qb, ta_kw, ta_kb, ta_vw, ta_vb, ta_ow, ta_ob,
     n2g, n2b,
     mw1, mb1, mw2, mb2,
     n3g, n3b,
     ia_qw, ia_qb, ia_kw, ia_kb, ia_vw, ia_vb, ia_ow, ia_ob,
     n4g, n4b,
     qo_ref, ko_ref) = refs

    queries = q_ref[...]
    keys = k_ref[...]
    qpe = qpe_ref[...]
    kpe = kpe_ref[...]
    sa = tuple(r[...] for r in (sa_qw, sa_qb, sa_kw, sa_kb, sa_vw, sa_vb, sa_ow, sa_ob))
    ta = tuple(r[...] for r in (ta_qw, ta_qb, ta_kw, ta_kb, ta_vw, ta_vb, ta_ow, ta_ob))
    ia = tuple(r[...] for r in (ia_qw, ia_qb, ia_kw, ia_kb, ia_vw, ia_vb, ia_ow, ia_ob))

    # token self-attention
    if skip_pe:
        queries = _kattn(queries, queries, queries, sa, heads)
    else:
        q = queries + qpe
        queries = queries + _kattn(q, q, queries, sa, heads)
    queries = _kln(queries, n1g[...], n1b[...], eps)

    # cross attention: tokens -> image
    q = queries + qpe
    k = keys + kpe
    queries = queries + _kattn(q, k, keys, ta, heads)
    queries = _kln(queries, n2g[...], n2b[...], eps)

    # MLP (ReLU)
    h = jnp.maximum(_mm(queries, mw1[...]) + mb1[...], 0.0)
    h = _mm(h, mw2[...]) + mb2[...]
    queries = _kln(queries + h, n3g[...], n3b[...], eps)

    # cross attention: image -> tokens
    q = queries + qpe
    k = keys + kpe
    keys = keys + _kattn(k, q, queries, ia, heads)
    keys = _kln(keys, n4g[...], n4b[...], eps)

    qo_ref[...] = queries
    ko_ref[...] = keys


def _decoder_tail_kernel(*refs, heads, eps_ln, eps_ln2d):
    """Final attention + LN + 2x ConvT upscaling + hypernet MLPs + masks + IoU.

    ConvTranspose2d(k=2,s=2) is folded into the weight layout so no in-kernel
    pixel-shuffle is needed: up1 columns are (shuffle group g, channel), up2
    columns are (shuffle group s, channel).  The mask slab is written as a
    lane-dense (4, 256) block ordered (ky1, kx1, ky2, kx2, y, x); the tiny
    final spatial permutation is wrapper-side glue.
    """
    (q_ref, k_ref, qpe_ref, kpe_ref,
     fa_qw, fa_qb, fa_kw, fa_kb, fa_vw, fa_vb, fa_ow, fa_ob,
     nfg, nfb,
     up1w, up1b, uplng, uplnb, up2w, up2b,
     h1w, h1b, h2w, h2b, h3w, h3b,
     iw1, ib1, iw2, ib2, iw3, ib3,
     mask_ref, iou_ref) = refs

    queries = q_ref[...]
    keys = k_ref[...]
    fa = tuple(r[...] for r in (fa_qw, fa_qb, fa_kw, fa_kb, fa_vw, fa_vb, fa_ow, fa_ob))

    # final token -> image attention + LayerNorm
    q = queries + qpe_ref[...]
    k = keys + kpe_ref[...]
    queries = queries + _kattn(q, k, keys, fa, heads)
    queries = _kln(queries, nfg[...], nfb[...], eps_ln)

    # ---- output upscaling: ConvT(2,2) -> LayerNorm2d -> GELU -> ConvT(2,2) -> GELU
    y1 = _mm(keys, up1w[...]) + up1b[...]                    # (HW, 4*(C//4))
    parts = []
    for g in range(4):                                       # per-shuffle-group LN2d
        seg = y1[:, g * 8:(g + 1) * 8]
        mu = jnp.mean(seg, axis=-1, keepdims=True)
        var = jnp.mean((seg - mu) ** 2, axis=-1, keepdims=True)
        parts.append((seg - mu) * lax.rsqrt(var + eps_ln2d))
    a1 = jnp.concatenate(parts, axis=-1) * uplng[...] + uplnb[...]
    a1 = jax.nn.gelu(a1, approximate=True)

    zs = []
    for g in range(4):
        z = _mm(a1[:, g * 8:(g + 1) * 8], up2w[...]) + up2b[...]   # (HW, 4*(C//8))
        zs.append(jax.nn.gelu(z, approximate=True))

    # ---- hypernetwork MLPs (one 3-layer ReLU MLP per mask token) ----
    rows = []
    for i in range(NUM_MASK_TOKENS):
        t = queries[1 + i:2 + i, :]
        t = jnp.maximum(_mm(t, h1w[i]) + h1b[i], 0.0)
        t = jnp.maximum(_mm(t, h2w[i]) + h2b[i], 0.0)
        rows.append(_mm(t, h3w[i]) + h3b[i])                 # (1, C//8)
    hyper = jnp.concatenate(rows, axis=0)                    # (4, C//8)

    # ---- masks = hyper . upscaled embedding, emitted lane-dense (4, 256) ----
    pieces = []
    for g in range(4):
        for s in range(4):
            zgs = zs[g][:, s * 4:(s + 1) * 4]                # (HW, C//8)
            pieces.append(lax.dot_general(hyper, zgs, (((1,), (1,)), ((), ())),
                                          preferred_element_type=jnp.float32))
    mask_ref[...] = jnp.concatenate(pieces, axis=-1)         # (4, 16*HW)

    # ---- IoU prediction head ----
    t = queries[0:1, :]
    t = jnp.maximum(_mm(t, iw1[...]) + ib1[...], 0.0)
    t = jnp.maximum(_mm(t, iw2[...]) + ib2[...], 0.0)
    iou_ref[...] = _mm(t, iw3[...]) + ib3[...]


# ------------------------------------------------------------------
# pallas_call wrappers
# ------------------------------------------------------------------
def _rep_spec(shape):
    """Full-array block, broadcast over the grid (constant block index)."""
    zeros = (0,) * len(shape)
    return pl.BlockSpec(tuple(shape), lambda *_: zeros)


def _batched_call(kernel, x, weights, out_feat):
    """grid=(batch,) call: x is (B, N, Din) blocked per image, weights broadcast,
    output (B, N, out_feat).  Batch axis is marked parallel (megacore on v7x)."""
    B, N, Din = x.shape
    in_specs = [pl.BlockSpec((1, N, Din), lambda b: (b, 0, 0))]
    in_specs += [_rep_spec(w.shape) for w in weights]
    return pl.pallas_call(
        kernel,
        out_shape=jax.ShapeDtypeStruct((B, N, out_feat), jnp.float32),
        grid=(B,),
        in_specs=in_specs,
        out_specs=pl.BlockSpec((1, N, out_feat), lambda b: (b, 0, 0)),
        compiler_params=pltpu.CompilerParams(dimension_semantics=("parallel",)),
    )(x, *weights)


def _full_block_call(kernel, args, out_shapes):
    """Single-step pallas_call: every operand is one full-array VMEM block."""
    multi = isinstance(out_shapes, (tuple, list))
    outs = tuple(out_shapes) if multi else (out_shapes,)
    return pl.pallas_call(
        kernel,
        out_shape=tuple(outs) if multi else outs[0],
        grid=(1,),
        in_specs=[_rep_spec(a.shape) for a in args],
        out_specs=(tuple(_rep_spec(o.shape) for o in outs)
                   if multi else _rep_spec(outs[0].shape)),
    )(*args)


# ------------------------------------------------------------------
# Parameter initialization (deterministic, synthetic).
# ------------------------------------------------------------------
class _KeyGen:
    def __init__(self, seed):
        self._key = jax.random.PRNGKey(seed)

    def __call__(self):
        self._key, sub = jax.random.split(self._key)
        return sub


def _make_shift_mats(hp, wp):
    """Constant one-hot matrices implementing the 9 taps of a 3x3 conv (pad=1)."""
    n = hp * wp
    ys, xs = jnp.meshgrid(jnp.arange(hp), jnp.arange(wp), indexing="ij")
    ys = ys.reshape(-1)
    xs = xs.reshape(-1)
    mats = []
    for dy in (-1, 0, 1):
        for dx in (-1, 0, 1):
            yy = ys + dy
            xx = xs + dx
            valid = (yy >= 0) & (yy < hp) & (xx >= 0) & (xx < wp)
            src = jnp.clip(yy, 0, hp - 1) * wp + jnp.clip(xx, 0, wp - 1)
            one_hot = (jnp.arange(n)[None, :] == src[:, None]).astype(jnp.float32)
            mats.append(one_hot * valid[:, None].astype(jnp.float32))
    return jnp.stack(mats)                                   # (9, n, n)


def init_params(seed=0):
    kg = _KeyGen(seed)
    C = EMBED_DIM

    def W(din, dout, s=0.02):        # matmul weights stored in bf16 (MXU operands)
        return (jax.random.normal(kg(), (din, dout), jnp.float32) * s).astype(jnp.bfloat16)

    def W3(n, din, dout, s=0.02):
        return (jax.random.normal(kg(), (n, din, dout), jnp.float32) * s).astype(jnp.bfloat16)

    def V(*shape, s=0.02):
        return jax.random.normal(kg(), shape, jnp.float32) * s

    def bias(d):
        return jnp.zeros((1, d), jnp.float32)

    def ones_row(d):
        return jnp.ones((1, d), jnp.float32)

    enc = {
        "patch_w": W(PATCH * PATCH * 3, VIT_DIM),
        "patch_b": bias(VIT_DIM),
        "pos_embed": V(EMB_HW * EMB_HW, VIT_DIM),
        "blocks": [],
        "neck_w1": W(VIT_DIM, C),
        "neck_ln1_g": ones_row(C), "neck_ln1_b": bias(C),
        "neck_w2": W3(9, C, C),
        "neck_ln2_g": ones_row(C), "neck_ln2_b": bias(C),
        "neck_shift": _make_shift_mats(EMB_HW, EMB_HW),
    }
    for _ in range(VIT_DEPTH):
        enc["blocks"].append({
            "ln1_g": ones_row(VIT_DIM), "ln1_b": bias(VIT_DIM),
            "qkv_w": W(VIT_DIM, 3 * VIT_DIM), "qkv_b": bias(3 * VIT_DIM),
            "proj_w": W(VIT_DIM, VIT_DIM), "proj_b": bias(VIT_DIM),
            "ln2_g": ones_row(VIT_DIM), "ln2_b": bias(VIT_DIM),
            "mlp_w1": W(VIT_DIM, VIT_DIM * MLP_RATIO), "mlp_b1": bias(VIT_DIM * MLP_RATIO),
            "mlp_w2": W(VIT_DIM * MLP_RATIO, VIT_DIM), "mlp_b2": bias(VIT_DIM),
        })

    prm = {
        "pe_gauss": jax.random.normal(kg(), (2, C // 2), jnp.float32),
        "point_emb": V(4, C),
        "not_a_point": V(C),
        "no_mask": V(C),
    }

    def attn_params(din, dint):
        return {
            "q_w": W(din, dint), "q_b": bias(dint),
            "k_w": W(din, dint), "k_b": bias(dint),
            "v_w": W(din, dint), "v_b": bias(dint),
            "out_w": W(dint, din), "out_b": bias(din),
        }

    layers = []
    for _ in range(DEC_DEPTH):
        layers.append({
            "self_attn": attn_params(C, C),
            "norm1_g": ones_row(C), "norm1_b": bias(C),
            "cross_t2i": attn_params(C, C // 2),
            "norm2_g": ones_row(C), "norm2_b": bias(C),
            "mlp_w1": W(C, DEC_MLP), "mlp_b1": bias(DEC_MLP),
            "mlp_w2": W(DEC_MLP, C), "mlp_b2": bias(C),
            "norm3_g": ones_row(C), "norm3_b": bias(C),
            "cross_i2t": attn_params(C, C // 2),
            "norm4_g": ones_row(C), "norm4_b": bias(C),
        })

    # Upscaling weights are laid out so ConvTranspose2d(k=2,s=2) + pixel shuffle
    # becomes a plain matmul; per-channel ConvT biases and LayerNorm2d params
    # are pre-replicated across the 4 shuffle groups (hoisted, computed once).
    dec = {
        "iou_token": V(1, C),
        "mask_tokens": V(NUM_MASK_TOKENS, C),
        "transformer": {
            "layers": layers,
            "final_attn": attn_params(C, C // 2),
            "norm_final_g": ones_row(C), "norm_final_b": bias(C),
        },
        "up1_w": W(C, (C // 4) * 4), "up1_b": bias((C // 4) * 4),
        "up_ln_g": ones_row((C // 4) * 4), "up_ln_b": bias((C // 4) * 4),
        "up2_w": W(C // 4, (C // 8) * 4), "up2_b": bias((C // 8) * 4),
        "hyper_w1": W3(NUM_MASK_TOKENS, C, C),
        "hyper_b1": jnp.zeros((NUM_MASK_TOKENS, 1, C), jnp.float32),
        "hyper_w2": W3(NUM_MASK_TOKENS, C, C),
        "hyper_b2": jnp.zeros((NUM_MASK_TOKENS, 1, C), jnp.float32),
        "hyper_w3": W3(NUM_MASK_TOKENS, C, C // 8),
        "hyper_b3": jnp.zeros((NUM_MASK_TOKENS, 1, C // 8), jnp.float32),
        "iou_w1": W(C, IOU_HIDDEN), "iou_b1": bias(IOU_HIDDEN),
        "iou_w2": W(IOU_HIDDEN, IOU_HIDDEN), "iou_b2": bias(IOU_HIDDEN),
        "iou_w3": W(IOU_HIDDEN, NUM_MASK_TOKENS), "iou_b3": bias(NUM_MASK_TOKENS),
    }

    return {"image_encoder": enc, "prompt_encoder": prm, "mask_decoder": dec}


# ------------------------------------------------------------------
# Image encoder (tiny ViT + SAM neck), whole batch per call
# ------------------------------------------------------------------
def sam_preprocess(img):
    """SAM model.preprocess: normalize and right/bottom pad to IMG_SIZE square."""
    x = (img.astype(jnp.float32) - PIXEL_MEAN) / PIXEL_STD
    h, w = x.shape[-2:]
    return jnp.pad(x, ((0, 0), (0, IMG_SIZE - h), (0, IMG_SIZE - w)))


def pad_to_square(x):
    """FinestSAM.preprocess: pad mask inputs to a square on the right/bottom."""
    h, w = x.shape[-2:]
    s = max(h, w)
    return jnp.pad(x, [(0, 0)] * (x.ndim - 2) + [(0, s - h), (0, s - w)])


@jax.jit
def encode_images(enc, images):
    """images: (B, 3, IMG_SIZE, IMG_SIZE) -> (B, EMBED_DIM, EMB_HW, EMB_HW)."""
    # TODO(synk): SAM ViT decomposed relative positional embeddings (use_rel_pos)
    # and windowed attention are omitted; plain global attention is used.
    B = images.shape[0]
    hp = wp = EMB_HW
    patches = images.reshape(B, 3, hp, PATCH, wp, PATCH)
    patches = patches.transpose(0, 2, 4, 1, 3, 5).reshape(B, hp * wp, 3 * PATCH * PATCH)

    tok = _batched_call(_patch_embed_kernel, patches,
                        [enc["patch_w"], enc["patch_b"], enc["pos_embed"]], VIT_DIM)
    for bp in enc["blocks"]:
        weights = [bp["ln1_g"], bp["ln1_b"], bp["qkv_w"], bp["qkv_b"],
                   bp["proj_w"], bp["proj_b"], bp["ln2_g"], bp["ln2_b"],
                   bp["mlp_w1"], bp["mlp_b1"], bp["mlp_w2"], bp["mlp_b2"]]
        tok = _batched_call(
            functools.partial(_vit_block_kernel, heads=VIT_HEADS, eps=1e-6),
            tok, weights, VIT_DIM)

    emb = _batched_call(
        functools.partial(_neck_kernel, eps=1e-6),
        tok,
        [enc["neck_w1"], enc["neck_ln1_g"], enc["neck_ln1_b"], enc["neck_shift"],
         enc["neck_w2"], enc["neck_ln2_g"], enc["neck_ln2_b"]],
        EMBED_DIM)
    return emb.reshape(B, hp, wp, EMBED_DIM).transpose(0, 3, 1, 2)


# ------------------------------------------------------------------
# Prompt encoder (tiny: pure JAX glue, fused by XLA)
# ------------------------------------------------------------------
def _pe_encoding(gauss, coords01):
    c = 2.0 * coords01 - 1.0
    c = c @ gauss                     # tiny (K=2) projection
    c = 2.0 * jnp.pi * c
    return jnp.concatenate([jnp.sin(c), jnp.cos(c)], axis=-1)


def get_dense_pe(gauss):
    H = W = EMB_HW
    y = (jnp.arange(H, dtype=jnp.float32) + 0.5) / H
    x = (jnp.arange(W, dtype=jnp.float32) + 0.5) / W
    xx = jnp.broadcast_to(x[None, :], (H, W))
    yy = jnp.broadcast_to(y[:, None], (H, W))
    coords = jnp.stack([xx, yy], axis=-1)
    pe = _pe_encoding(gauss, coords)                   # (H, W, C)
    return pe.transpose(2, 0, 1)                       # (C, H, W)


def prompt_encoder(pp, points, boxes, masks):
    if points is not None:
        bs = points[0].shape[0]
    elif boxes is not None:
        bs = boxes.shape[0]
    elif masks is not None:
        bs = masks.shape[0]
    else:
        bs = 1

    sparse = jnp.zeros((bs, 0, EMBED_DIM), jnp.float32)

    if points is not None:
        coords, labels = points
        coords = coords.astype(jnp.float32) + 0.5
        labels = labels.astype(jnp.float32)
        if boxes is None:  # pad with a "not a point" entry
            coords = jnp.concatenate([coords, jnp.zeros((bs, 1, 2), jnp.float32)], axis=1)
            labels = jnp.concatenate([labels, -jnp.ones((bs, 1), jnp.float32)], axis=1)
        pe = _pe_encoding(pp["pe_gauss"], coords / float(IMG_SIZE))
        lab = labels[..., None]
        emb = jnp.where(lab == -1, 0.0, pe)
        emb = emb + jnp.where(lab == -1, pp["not_a_point"][None, None, :], 0.0)
        emb = emb + jnp.where(lab == 0, pp["point_emb"][0][None, None, :], 0.0)
        emb = emb + jnp.where(lab == 1, pp["point_emb"][1][None, None, :], 0.0)
        sparse = jnp.concatenate([sparse, emb], axis=1)

    if boxes is not None:
        corners = (boxes.astype(jnp.float32) + 0.5).reshape(-1, 2, 2)
        ce = _pe_encoding(pp["pe_gauss"], corners / float(IMG_SIZE))
        ce = ce.at[:, 0, :].add(pp["point_emb"][2])
        ce = ce.at[:, 1, :].add(pp["point_emb"][3])
        sparse = jnp.concatenate([sparse, ce], axis=1)

    # TODO(synk): mask_downscaling (strided convs + LayerNorm2d + GELU) branch
    # not implemented; test inputs use masks=None -> no_mask_embed path.
    dense = jnp.broadcast_to(
        pp["no_mask"].reshape(1, EMBED_DIM, 1, 1), (bs, EMBED_DIM, EMB_HW, EMB_HW)
    )
    return sparse, dense


# ------------------------------------------------------------------
# Mask decoder (fused TwoWay blocks + fused output head), jitted per image
# ------------------------------------------------------------------
def _flatten_twoway_layer(lp):
    out = [lp["self_attn"][k] for k in ATTN_KEYS]
    out += [lp["norm1_g"], lp["norm1_b"]]
    out += [lp["cross_t2i"][k] for k in ATTN_KEYS]
    out += [lp["norm2_g"], lp["norm2_b"]]
    out += [lp["mlp_w1"], lp["mlp_b1"], lp["mlp_w2"], lp["mlp_b2"]]
    out += [lp["norm3_g"], lp["norm3_b"]]
    out += [lp["cross_i2t"][k] for k in ATTN_KEYS]
    out += [lp["norm4_g"], lp["norm4_b"]]
    return out


def _flatten_tail(dec):
    tp = dec["transformer"]
    out = [tp["final_attn"][k] for k in ATTN_KEYS]
    out += [tp["norm_final_g"], tp["norm_final_b"]]
    out += [dec["up1_w"], dec["up1_b"], dec["up_ln_g"], dec["up_ln_b"],
            dec["up2_w"], dec["up2_b"]]
    out += [dec["hyper_w1"], dec["hyper_b1"], dec["hyper_w2"], dec["hyper_b2"],
            dec["hyper_w3"], dec["hyper_b3"]]
    out += [dec["iou_w1"], dec["iou_b1"], dec["iou_w2"], dec["iou_b2"],
            dec["iou_w3"], dec["iou_b3"]]
    return out


@functools.partial(jax.jit, static_argnames=("multimask_output",))
def decode_one(dec, image_embedding, dense_pe, sparse, dense, multimask_output):
    """image_embedding: (C, H, W); dense_pe: (C, H, W); sparse: (bs, T, C)."""
    C = EMBED_DIM
    H = W = EMB_HW
    bs = sparse.shape[0]
    output_tokens = jnp.concatenate([dec["iou_token"], dec["mask_tokens"]], axis=0)
    pos_flat = dense_pe.reshape(C, H * W).T                          # (HW, C)

    low_res, ious = [], []
    for b in range(bs):
        tokens = jnp.concatenate([output_tokens, sparse[b]], axis=0)  # (T, C)
        keys0 = (image_embedding + dense[b]).reshape(C, H * W).T      # (HW, C)

        queries, keys = tokens, keys0
        for li, lp in enumerate(dec["transformer"]["layers"]):
            kern = functools.partial(_twoway_block_kernel, heads=DEC_HEADS,
                                     skip_pe=(li == 0), eps=1e-5)
            queries, keys = _full_block_call(
                kern,
                [queries, keys, tokens, pos_flat] + _flatten_twoway_layer(lp),
                (jax.ShapeDtypeStruct(tokens.shape, jnp.float32),
                 jax.ShapeDtypeStruct(keys0.shape, jnp.float32)))

        tail = functools.partial(_decoder_tail_kernel, heads=DEC_HEADS,
                                 eps_ln=1e-5, eps_ln2d=1e-6)
        masks_perm, iou = _full_block_call(
            tail,
            [queries, keys, tokens, pos_flat] + _flatten_tail(dec),
            (jax.ShapeDtypeStruct((NUM_MASK_TOKENS, 16 * H * W), jnp.float32),
             jax.ShapeDtypeStruct((1, NUM_MASK_TOKENS), jnp.float32)))

        # undo the (ky1, kx1, ky2, kx2, y, x) column ordering (tiny glue)
        masks = masks_perm.reshape(NUM_MASK_TOKENS, 2, 2, 2, 2, H, W)
        masks = masks.transpose(0, 5, 1, 3, 6, 2, 4).reshape(NUM_MASK_TOKENS, 4 * H, 4 * W)

        if multimask_output:
            masks = masks[1:NUM_MASK_TOKENS]
            iou = iou[:, 1:NUM_MASK_TOKENS]
        else:
            masks = masks[0:1]
            iou = iou[:, 0:1]
        low_res.append(masks)
        ious.append(iou[0])

    return jnp.stack(low_res), jnp.stack(ious)


# ------------------------------------------------------------------
# Postprocess + FinestSAM forward
# ------------------------------------------------------------------
def postprocess_masks(low_res, input_size, original_size):
    B, Cm = low_res.shape[:2]
    m = jax.image.resize(low_res, (B, Cm, IMG_SIZE, IMG_SIZE), method="bilinear")
    m = m[..., : input_size[0], : input_size[1]]
    m = jax.image.resize(m, (B, Cm, original_size[0], original_size[1]), method="bilinear")
    return m


def finest_sam_forward(params, batched_input, multimask_output, are_logits=False):
    input_images = jnp.stack([sam_preprocess(x["image"]) for x in batched_input], axis=0)
    image_embeddings = encode_images(params["image_encoder"], input_images)

    input_masks = [x.get("mask_inputs", None) for x in batched_input]
    if not are_logits:
        input_masks = [pad_to_square(m) if m is not None else None for m in input_masks]

    dense_pe = get_dense_pe(params["prompt_encoder"]["pe_gauss"])

    outputs = []
    for image_record, curr_embedding, masks in zip(batched_input, image_embeddings, input_masks):
        if image_record.get("point_coords", None) is not None:
            points = (image_record["point_coords"], image_record["point_labels"])
        else:
            points = None
        sparse, dense = prompt_encoder(
            params["prompt_encoder"], points, image_record.get("boxes", None), masks)
        low_res_masks, iou_predictions = decode_one(
            params["mask_decoder"], curr_embedding, dense_pe, sparse, dense,
            multimask_output)
        masks_out = postprocess_masks(
            low_res_masks, image_record["image"].shape[-2:], image_record["original_size"])
        outputs.append({
            "masks": masks_out,
            "iou_predictions": iou_predictions,
            "low_res_logits": low_res_masks,
        })
    return outputs


# ------------------------------------------------------------------
# Main
# ------------------------------------------------------------------
if __name__ == "__main__":
    params = init_params(seed=0)

    rng = jax.random.PRNGKey(0)
    k = jax.random.split(rng, 4)
    img0 = jax.random.uniform(k[0], (3, 32, 24), jnp.float32, 0.0, 255.0)
    img1 = jax.random.uniform(k[1], (3, 28, 32), jnp.float32, 0.0, 255.0)
    pts0 = jax.random.uniform(k[2], (1, 2, 2), jnp.float32, 0.0, 24.0)
    pts1 = jax.random.uniform(k[3], (1, 2, 2), jnp.float32, 0.0, 28.0)

    batched_input = [
        {"image": img0, "original_size": (40, 30),
         "point_coords": pts0, "point_labels": jnp.array([[1.0, 0.0]], jnp.float32)},
        {"image": img1, "original_size": (36, 40),
         "point_coords": pts1, "point_labels": jnp.array([[1.0, 1.0]], jnp.float32),
         "boxes": jnp.array([[2.0, 3.0, 20.0, 25.0]], jnp.float32)},
    ]

    outputs = finest_sam_forward(params, batched_input, multimask_output=True)

    for out in outputs:
        for v in out.values():
            jax.block_until_ready(v)

    assert outputs[0]["masks"].shape == (1, NUM_MULTIMASK, 40, 30)
    assert outputs[0]["iou_predictions"].shape == (1, NUM_MULTIMASK)
    assert outputs[0]["low_res_logits"].shape == (1, NUM_MULTIMASK, 4 * EMB_HW, 4 * EMB_HW)
    assert outputs[1]["masks"].shape == (1, NUM_MULTIMASK, 36, 40)
    assert all(bool(jnp.all(jnp.isfinite(o["masks"]))) for o in outputs)

    print("KERNEL_OK")
</pallas_src>

<mosaic_0001>
module attributes {stable_mosaic.version = 11 : i64} {
  func.func @_patch_embed_kernel(%arg0: i32, %arg1: memref<1x16x192xf32, #tpu.memory_space<vmem>>, %arg2: memref<192x64xbf16, #tpu.memory_space<vmem>>, %arg3: memref<1x64xf32, #tpu.memory_space<vmem>>, %arg4: memref<16x64xf32, #tpu.memory_space<vmem>>, %arg5: memref<1x16x64xf32, #tpu.memory_space<vmem>>) attributes {dimension_semantics = [#tpu.dimension_semantics<parallel>], iteration_bounds = array<i64: 2>, scalar_prefetch = 0 : i64, scratch_operands = 0 : i64, tpu.core_type = #tpu.core_type<tc>, window_params = [{transform_indices = @transform_0, window_bounds = array<i64: 1, 16, 192>}, {pipeline_mode = #tpu.pipeline_mode<synchronous>, transform_indices = @transform_1, window_bounds = array<i64: 192, 64>}, {pipeline_mode = #tpu.pipeline_mode<synchronous>, transform_indices = @transform_2, window_bounds = array<i64: 1, 64>}, {pipeline_mode = #tpu.pipeline_mode<synchronous>, transform_indices = @transform_3, window_bounds = array<i64: 16, 64>}, {transform_indices = @transform_4, window_bounds = array<i64: 1, 16, 64>}]} {
    %c0 = arith.constant 0 : index
    %c0_0 = arith.constant 0 : index
    %c0_1 = arith.constant 0 : index
    %0 = vector.load %arg1[%c0, %c0_0, %c0_1] : memref<1x16x192xf32, #tpu.memory_space<vmem>>, vector<1x16x192xf32>
    %1 = vector.shape_cast %0 : vector<1x16x192xf32> to vector<16x192xf32>
    %c0_2 = arith.constant 0 : index
    %c0_3 = arith.constant 0 : index
    %2 = vector.load %arg2[%c0_2, %c0_3] : memref<192x64xbf16, #tpu.memory_space<vmem>>, vector<192x64xbf16>
    %3 = arith.truncf %1 : vector<16x192xf32> to vector<16x192xbf16>
    %cst = arith.constant dense<0.000000e+00> : vector<16x64xf32>
    %4 = tpu.matmul %3, %2, %cst {dimension_numbers = #tpu.dot_dimension_numbers<[1], [0], [0], [1], [0, 0, 1, 1], [], []>} : vector<16x192xbf16>, vector<192x64xbf16>, vector<16x64xf32> -> vector<16x64xf32>
    %c0_4 = arith.constant 0 : index
    %c0_5 = arith.constant 0 : index
    %5 = vector.load %arg3[%c0_4, %c0_5] : memref<1x64xf32, #tpu.memory_space<vmem>>, vector<1x64xf32>
    %6 = vector.broadcast %5 : vector<1x64xf32> to vector<16x64xf32>
    %7 = arith.addf %4, %6 : vector<16x64xf32>
    %c0_6 = arith.constant 0 : index
    %c0_7 = arith.constant 0 : index
    %8 = vector.load %arg4[%c0_6, %c0_7] : memref<16x64xf32, #tpu.memory_space<vmem>>, vector<16x64xf32>
    %9 = arith.addf %7, %8 : vector<16x64xf32>
    %c0_8 = arith.constant 0 : index
    %c0_9 = arith.constant 0 : index
    %c0_10 = arith.constant 0 : index
    %10 = vector.load %arg5[%c0_8, %c0_9, %c0_10] : memref<1x16x64xf32, #tpu.memory_space<vmem>>, vector<1x16x64xf32>
    %11 = vector.shape_cast %10 : vector<1x16x64xf32> to vector<16x64xf32>
    %12 = vector.shape_cast %9 : vector<16x64xf32> to vector<1x16x64xf32>
    tpu.vector_store %arg5[%c0_8, %c0_9, %c0_10], %12 {strides = array<i32>} : memref<1x16x64xf32, #tpu.memory_space<vmem>>, vector<1x16x64xf32>,
    return
  }
  func.func @transform_0(%arg0: i32) -> (i32, i32, i32) {
    %c0_i32 = arith.constant 0 : i32
    %c0_i32_0 = arith.constant 0 : i32
    %c0_i32_1 = arith.constant 0 : i32
    return %arg0, %c0_i32, %c0_i32_0 : i32, i32, i32
  }
  func.func @transform_1(%arg0: i32) -> (i32, i32) {
    %c0_i32 = arith.constant 0 : i32
    %c0_i32_0 = arith.constant 0 : i32
    %c0_i32_1 = arith.constant 0 : i32
    return %c0_i32, %c0_i32_0 : i32, i32
  }
  func.func @transform_2(%arg0: i32) -> (i32, i32) {
    %c0_i32 = arith.constant 0 : i32
    %c0_i32_0 = arith.constant 0 : i32
    %c0_i32_1 = arith.constant 0 : i32
    return %c0_i32, %c0_i32_0 : i32, i32
  }
  func.func @transform_3(%arg0: i32) -> (i32, i32) {
    %c0_i32 = arith.constant 0 : i32
    %c0_i32_0 = arith.constant 0 : i32
    %c0_i32_1 = arith.constant 0 : i32
    return %c0_i32, %c0_i32_0 : i32, i32
  }
  func.func @transform_4(%arg0: i32) -> (i32, i32, i32) {
    %c0_i32 = arith.constant 0 : i32
    %c0_i32_0 = arith.constant 0 : i32
    %c0_i32_1 = arith.constant 0 : i32
    return %arg0, %c0_i32, %c0_i32_0 : i32, i32, i32
  }
}

module attributes {stable_mosaic.version = 11 : i64} {
  func.func @_vit_block_kernel(%arg0: i32, %arg1: memref<1x16x64xf32, #tpu.memory_space<vmem>>, %arg2: memref<1x64xf32, #tpu.memory_space<vmem>>, %arg3: memref<1x64xf32, #tpu.memory_space<vmem>>, %arg4: memref<64x192xbf16, #tpu.memory_space<vmem>>, %arg5: memref<1x192xf32, #tpu.memory_space<vmem>>, %arg6: memref<64x64xbf16, #tpu.memory_space<vmem>>, %arg7: memref<1x64xf32, #tpu.memory_space<vmem>>, %arg8: memref<1x64xf32, #tpu.memory_space<vmem>>, %arg9: memref<1x64xf32, #tpu.memory_space<vmem>>, %arg10: memref<64x128xbf16, #tpu.memory_space<vmem>>, %arg11: memref<1x128xf32, #tpu.memory_space<vmem>>, %arg12: memref<128x64xbf16, #tpu.memory_space<vmem>>, %arg13: memref<1x64xf32, #tpu.memory_space<vmem>>, %arg14: memref<1x16x64xf32, #tpu.memory_space<vmem>>) attributes {dimension_semantics = [#tpu.dimension_semantics<parallel>], iteration_bounds = array<i64: 2>, scalar_prefetch = 0 : i64, scratch_operands = 0 : i64, tpu.core_type = #tpu.core_type<tc>, window_params = [{transform_indices = @transform_0, window_bounds = array<i64: 1, 16, 64>}, {pipeline_mode = #tpu.pipeline_mode<synchronous>, transform_indices = @transform_1, window_bounds = array<i64: 1, 64>}, {pipeline_mode = #tpu.pipeline_mode<synchronous>, transform_indices = @transform_2, window_bounds = array<i64: 1, 64>}, {pipeline_mode = #tpu.pipeline_mode<synchronous>, transform_indices = @transform_3, window_bounds = array<i64: 64, 192>}, {pipeline_mode = #tpu.pipeline_mode<synchronous>, transform_indices = @transform_4, window_bounds = array<i64: 1, 192>}, {pipeline_mode = #tpu.pipeline_mode<synchronous>, transform_indices = @transform_5, window_bounds = array<i64: 64, 64>}, {pipeline_mode = #tpu.pipeline_mode<synchronous>, transform_indices = @transform_6, window_bounds = array<i64: 1, 64>}, {pipeline_mode = #tpu.pipeline_mode<synchronous>, transform_indices = @transform_7, window_bounds = array<i64: 1, 64>}, {pipeline_mode = #tpu.pipeline_mode<synchronous>, transform_indices = @transform_8, window_bounds = array<i64: 1, 64>}, {pipeline_mode = #tpu.pipeline_mode<synchronous>, transform_indices = @transform_9, window_bounds = array<i64: 64, 128>}, {pipeline_mode = #tpu.pipeline_mode<synchronous>, transform_indices = @transform_10, window_bounds = array<i64: 1, 128>}, {pipeline_mode = #tpu.pipeline_mode<synchronous>, transform_indices = @transform_11, window_bounds = array<i64: 128, 64>}, {pipeline_mode = #tpu.pipeline_mode<synchronous>, transform_indices = @transform_12, window_bounds = array<i64: 1, 64>}, {transform_indices = @transform_13, window_bounds = array<i64: 1, 16, 64>}]} {
    %c0 = arith.constant 0 : index
    %c0_0 = arith.constant 0 : index
    %c0_1 = arith.constant 0 : index
    %0 = vector.load %arg1[%c0, %c0_0, %c0_1] : memref<1x16x64xf32, #tpu.memory_space<vmem>>, vector<1x16x64xf32>
    %1 = vector.shape_cast %0 : vector<1x16x64xf32> to vector<16x64xf32>
    %c0_2 = arith.constant 0 : index
    %c0_3 = arith.constant 0 : index
    %2 = vector.load %arg2[%c0_2, %c0_3] : memref<1x64xf32, #tpu.memory_space<vmem>>, vector<1x64xf32>
    %c0_4 = arith.constant 0 : index
    %c0_5 = arith.constant 0 : index
    %3 = vector.load %arg3[%c0_4, %c0_5] : memref<1x64xf32, #tpu.memory_space<vmem>>, vector<1x64xf32>
    %cst = arith.constant dense<0.000000e+00> : vector<16xf32>
    %4 = vector.multi_reduction <add>, %1, %cst [1] : vector<16x64xf32> to vector<16xf32>
    %5 = vector.shape_cast %4 : vector<16xf32> to vector<16x1xf32>
    %cst_6 = arith.constant 6.400000e+01 : f32
    %6 = vector.broadcast %cst_6 : f32 to vector<16x1xf32>
    %7 = arith.divf %5, %6 : vector<16x1xf32>
    %8 = vector.broadcast %7 : vector<16x1xf32> to vector<16x64xf32>
    %9 = arith.subf %1, %8 : vector<16x64xf32>
    %10 = arith.mulf %9, %9 : vector<16x64xf32>
    %cst_7 = arith.constant dense<0.000000e+00> : vector<16xf32>
    %11 = vector.multi_reduction <add>, %10, %cst_7 [1] : vector<16x64xf32> to vector<16xf32>
    %12 = vector.shape_cast %11 : vector<16xf32> to vector<16x1xf32>
    %cst_8 = arith.constant 6.400000e+01 : f32
    %13 = vector.broadcast %cst_8 : f32 to vector<16x1xf32>
    %14 = arith.divf %12, %13 : vector<16x1xf32>
    %cst_9 = arith.constant 9.99999997E-7 : f32
    %15 = vector.broadcast %cst_9 : f32 to vector<16x1xf32>
    %16 = arith.addf %14, %15 : vector<16x1xf32>
    %17 = math.rsqrt %16 : vector<16x1xf32>
    %18 = vector.broadcast %17 : vector<16x1xf32> to vector<16x64xf32>
    %19 = arith.mulf %9, %18 : vector<16x64xf32>
    %20 = vector.broadcast %2 : vector<1x64xf32> to vector<16x64xf32>
    %21 = arith.mulf %19, %20 : vector<16x64xf32>
    %22 = vector.broadcast %3 : vector<1x64xf32> to vector<16x64xf32>
    %23 = arith.addf %21, %22 : vector<16x64xf32>
    %c0_10 = arith.constant 0 : index
    %c0_11 = arith.constant 0 : index
    %24 = vector.load %arg4[%c0_10, %c0_11] : memref<64x192xbf16, #tpu.memory_space<vmem>>, vector<64x192xbf16>
    %25 = arith.truncf %23 : vector<16x64xf32> to vector<16x64xbf16>
    %cst_12 = arith.constant dense<0.000000e+00> : vector<16x192xf32>
    %26 = tpu.matmul %25, %24, %cst_12 {dimension_numbers = #tpu.dot_dimension_numbers<[1], [0], [0], [1], [0, 0, 1, 1], [], []>} : vector<16x64xbf16>, vector<64x192xbf16>, vector<16x192xf32> -> vector<16x192xf32>
    %c0_13 = arith.constant 0 : index
    %c0_14 = arith.constant 0 : index
    %27 = vector.load %arg5[%c0_13, %c0_14] : memref<1x192xf32, #tpu.memory_space<vmem>>, vector<1x192xf32>
    %28 = vector.broadcast %27 : vector<1x192xf32> to vector<16x192xf32>
    %29 = arith.addf %26, %28 : vector<16x192xf32>
    %30 = vector.extract_strided_slice %29 {offsets = [0, 0], sizes = [16, 32], strides = [1, 1]} : vector<16x192xf32> to vector<16x32xf32>
    %cst_15 = arith.constant 0.176776692 : f32
    %31 = vector.broadcast %cst_15 : f32 to vector<16x32xf32>
    %32 = arith.mulf %30, %31 : vector<16x32xf32>
    %33 = arith.truncf %32 : vector<16x32xf32> to vector<16x32xbf16>
    %34 = vector.extract_strided_slice %29 {offsets = [0, 64], sizes = [16, 32], strides = [1, 1]} : vector<16x192xf32> to vector<16x32xf32>
    %35 = arith.truncf %34 : vector<16x32xf32> to vector<16x32xbf16>
    %36 = vector.extract_strided_slice %29 {offsets = [0, 128], sizes = [16, 32], strides = [1, 1]} : vector<16x192xf32> to vector<16x32xf32>
    %37 = arith.truncf %36 : vector<16x32xf32> to vector<16x32xbf16>
    %cst_16 = arith.constant dense<0.000000e+00> : vector<16x16xf32>
    %38 = tpu.matmul %33, %35, %cst_16 {dimension_numbers = #tpu.dot_dimension_numbers<[1], [1], [0], [0], [0, 0, 1, 0], [], []>} : vector<16x32xbf16>, vector<16x32xbf16>, vector<16x16xf32> -> vector<16x16xf32>
    %cst_17 = arith.constant dense<0xFF800000> : vector<16xf32>
    %39 = vector.multi_reduction <maximumf>, %38, %cst_17 [1] : vector<16x16xf32> to vector<16xf32>
    %40 = vector.shape_cast %39 : vector<16xf32> to vector<16x1xf32>
    %41 = vector.broadcast %40 : vector<16x1xf32> to vector<16x16xf32>
    %42 = arith.subf %38, %41 : vector<16x16xf32>
    %43 = math.exp %42 : vector<16x16xf32>
    %cst_18 = arith.constant dense<0.000000e+00> : vector<16xf32>
    %44 = vector.multi_reduction <add>, %43, %cst_18 [1] : vector<16x16xf32> to vector<16xf32>
    %45 = vector.shape_cast %44 : vector<16xf32> to vector<16x1xf32>
    %46 = tpu.reciprocal %45 {approx = true} : vector<16x1xf32> -> vector<16x1xf32>
    %47 = vector.broadcast %46 : vector<16x1xf32> to vector<16x16xf32>
    %48 = arith.mulf %43, %47 : vector<16x16xf32>
    %49 = arith.truncf %48 : vector<16x16xf32> to vector<16x16xbf16>
    %cst_19 = arith.constant dense<0.000000e+00> : vector<16x32xf32>
    %50 = tpu.matmul %49, %37, %cst_19 {dimension_numbers = #tpu.dot_dimension_numbers<[1], [0], [0], [1], [0, 0, 1, 1], [], []>} : vector<16x16xbf16>, vector<16x32xbf16>, vector<16x32xf32> -> vector<16x32xf32>
    %51 = vector.extract_strided_slice %29 {offsets = [0, 32], sizes = [16, 32], strides = [1, 1]} : vector<16x192xf32> to vector<16x32xf32>
    %cst_20 = arith.constant 0.176776692 : f32
    %52 = vector.broadcast %cst_20 : f32 to vector<16x32xf32>
    %53 = arith.mulf %51, %52 : vector<16x32xf32>
    %54 = arith.truncf %53 : vector<16x32xf32> to vector<16x32xbf16>
    %55 = vector.extract_strided_slice %29 {offsets = [0, 96], sizes = [16, 32], strides = [1, 1]} : vector<16x192xf32> to vector<16x32xf32>
    %56 = arith.truncf %55 : vector<16x32xf32> to vector<16x32xbf16>
    %57 = vector.extract_strided_slice %29 {offsets = [0, 160], sizes = [16, 32], strides = [1, 1]} : vector<16x192xf32> to vector<16x32xf32>
    %58 = arith.truncf %57 : vector<16x32xf32> to vector<16x32xbf16>
    %cst_21 = arith.constant dense<0.000000e+00> : vector<16x16xf32>
    %59 = tpu.matmul %54, %56, %cst_21 {dimension_numbers = #tpu.dot_dimension_numbers<[1], [1], [0], [0], [0, 0, 1, 0], [], []>} : vector<16x32xbf16>, vector<16x32xbf16>, vector<16x16xf32> -> vector<16x16xf32>
    %cst_22 = arith.constant dense<0xFF800000> : vector<16xf32>
    %60 = vector.multi_reduction <maximumf>, %59, %cst_22 [1] : vector<16x16xf32> to vector<16xf32>
    %61 = vector.shape_cast %60 : vector<16xf32> to vector<16x1xf32>
    %62 = vector.broadcast %61 : vector<16x1xf32> to vector<16x16xf32>
    %63 = arith.subf %59, %62 : vector<16x16xf32>
    %64 = math.exp %63 : vector<16x16xf32>
    %cst_23 = arith.constant dense<0.000000e+00> : vector<16xf32>
    %65 = vector.multi_reduction <add>, %64, %cst_23 [1] : vector<16x16xf32> to vector<16xf32>
    %66 = vector.shape_cast %65 : vector<16xf32> to vector<16x1xf32>
    %67 = tpu.reciprocal %66 {approx = true} : vector<16x1xf32> -> vector<16x1xf32>
    %68 = vector.broadcast %67 : vector<16x1xf32> to vector<16x16xf32>
    %69 = arith.mulf %64, %68 : vector<16x16xf32>
    %70 = arith.truncf %69 : vector<16x16xf32> to vector<16x16xbf16>
    %cst_24 = arith.constant dense<0.000000e+00> : vector<16x32xf32>
    %71 = tpu.matmul %70, %58, %cst_24 {dimension_numbers = #tpu.dot_dimension_numbers<[1], [0], [0], [1], [0, 0, 1, 1], [], []>} : vector<16x16xbf16>, vector<16x32xbf16>, vector<16x32xf32> -> vector<16x32xf32>
    %72 = tpu.concatenate %50, %71 in 1 : vector<16x32xf32>, vector<16x32xf32> -> vector<16x64xf32>
    %c0_25 = arith.constant 0 : index
    %c0_26 = arith.constant 0 : index
    %73 = vector.load %arg6[%c0_25, %c0_26] : memref<64x64xbf16, #tpu.memory_space<vmem>>, vector<64x64xbf16>
    %74 = arith.truncf %72 : vector<16x64xf32> to vector<16x64xbf16>
    %cst_27 = arith.constant dense<0.000000e+00> : vector<16x64xf32>
    %75 = tpu.matmul %74, %73, %cst_27 {dimension_numbers = #tpu.dot_dimension_numbers<[1], [0], [0], [1], [0, 0, 1, 1], [], []>} : vector<16x64xbf16>, vector<64x64xbf16>, vector<16x64xf32> -> vector<16x64xf32>
    %76 = arith.addf %1, %75 : vector<16x64xf32>
    %c0_28 = arith.constant 0 : index
    %c0_29 = arith.constant 0 : index
    %77 = vector.load %arg7[%c0_28, %c0_29] : memref<1x64xf32, #tpu.memory_space<vmem>>, vector<1x64xf32>
    %78 = vector.broadcast %77 : vector<1x64xf32> to vector<16x64xf32>
    %79 = arith.addf %76, %78 : vector<16x64xf32>
    %c0_30 = arith.constant 0 : index
    %c0_31 = arith.constant 0 : index
    %80 = vector.load %arg8[%c0_30, %c0_31] : memref<1x64xf32, #tpu.memory_space<vmem>>, vector<1x64xf32>
    %c0_32 = arith.constant 0 : index
    %c0_33 = arith.constant 0 : index
    %81 = vector.load %arg9[%c0_32, %c0_33] : memref<1x64xf32, #tpu.memory_space<vmem>>, vector<1x64xf32>
    %cst_34 = arith.constant dense<0.000000e+00> : vector<16xf32>
    %82 = vector.multi_reduction <add>, %79, %cst_34 [1] : vector<16x64xf32> to vector<16xf32>
    %83 = vector.shape_cast %82 : vector<16xf32> to vector<16x1xf32>
    %cst_35 = arith.constant 6.400000e+01 : f32
    %84 = vector.broadcast %cst_35 : f32 to vector<16x1xf32>
    %85 = arith.divf %83, %84 : vector<16x1xf32>
    %86 = vector.broadcast %85 : vector<16x1xf32> to vector<16x64xf32>
    %87 = arith.subf %79, %86 : vector<16x64xf32>
    %88 = arith.mulf %87, %87 : vector<16x64xf32>
    %cst_36 = arith.constant dense<0.000000e+00> : vector<16xf32>
    %89 = vector.multi_reduction <add>, %88, %cst_36 [1] : vector<16x64xf32> to vector<16xf32>
    %90 = vector.shape_cast %89 : vector<16xf32> to vector<16x1xf32>
    %cst_37 = arith.constant 6.400000e+01 : f32
    %91 = vector.broadcast %cst_37 : f32 to vector<16x1xf32>
    %92 = arith.divf %90, %91 : vector<16x1xf32>
    %cst_38 = arith.constant 9.99999997E-7 : f32
    %93 = vector.broadcast %cst_38 : f32 to vector<16x1xf32>
    %94 = arith.addf %92, %93 : vector<16x1xf32>
    %95 = math.rsqrt %94 : vector<16x1xf32>
    %96 = vector.broadcast %95 : vector<16x1xf32> to vector<16x64xf32>
    %97 = arith.mulf %87, %96 : vector<16x64xf32>
    %98 = vector.broadcast %80 : vector<1x64xf32> to vector<16x64xf32>
    %99 = arith.mulf %97, %98 : vector<16x64xf32>
    %100 = vector.broadcast %81 : vector<1x64xf32> to vector<16x64xf32>
    %101 = arith.addf %99, %100 : vector<16x64xf32>
    %c0_39 = arith.constant 0 : index
    %c0_40 = arith.constant 0 : index
    %102 = vector.load %arg10[%c0_39, %c0_40] : memref<64x128xbf16, #tpu.memory_space<vmem>>, vector<64x128xbf16>
    %103 = arith.truncf %101 : vector<16x64xf32> to vector<16x64xbf16>
    %cst_41 = arith.constant dense<0.000000e+00> : vector<16x128xf32>
    %104 = tpu.matmul %103, %102, %cst_41 {dimension_numbers = #tpu.dot_dimension_numbers<[1], [0], [0], [1], [0, 0, 1, 1], [], []>} : vector<16x64xbf16>, vector<64x128xbf16>, vector<16x128xf32> -> vector<16x128xf32>
    %c0_42 = arith.constant 0 : index
    %c0_43 = arith.constant 0 : index
    %105 = vector.load %arg11[%c0_42, %c0_43] : memref<1x128xf32, #tpu.memory_space<vmem>>, vector<1x128xf32>
    %106 = vector.broadcast %105 : vector<1x128xf32> to vector<16x128xf32>
    %107 = arith.addf %104, %106 : vector<16x128xf32>
    %108 = arith.mulf %107, %107 : vector<16x128xf32>
    %109 = arith.mulf %107, %108 : vector<16x128xf32>
    %cst_44 = arith.constant 4.471500e-02 : f32
    %110 = vector.broadcast %cst_44 : f32 to vector<16x128xf32>
    %111 = arith.mulf %110, %109 : vector<16x128xf32>
    %112 = arith.addf %107, %111 : vector<16x128xf32>
    %cst_45 = arith.constant 0.797884583 : f32
    %113 = vector.broadcast %cst_45 : f32 to vector<16x128xf32>
    %114 = arith.mulf %113, %112 : vector<16x128xf32>
    %115 = math.tanh %114 : vector<16x128xf32>
    %cst_46 = arith.constant 1.000000e+00 : f32
    %116 = vector.broadcast %cst_46 : f32 to vector<16x128xf32>
    %117 = arith.addf %116, %115 : vector<16x128xf32>
    %cst_47 = arith.constant 5.000000e-01 : f32
    %118 = vector.broadcast %cst_47 : f32 to vector<16x128xf32>
    %119 = arith.mulf %118, %117 : vector<16x128xf32>
    %120 = arith.mulf %107, %119 : vector<16x128xf32>
    %c0_48 = arith.constant 0 : index
    %c0_49 = arith.constant 0 : index
    %121 = vector.load %arg12[%c0_48, %c0_49] : memref<128x64xbf16, #tpu.memory_space<vmem>>, vector<128x64xbf16>
    %122 = arith.truncf %120 : vector<16x128xf32> to vector<16x128xbf16>
    %cst_50 = arith.constant dense<0.000000e+00> : vector<16x64xf32>
    %123 = tpu.matmul %122, %121, %cst_50 {dimension_numbers = #tpu.dot_dimension_numbers<[1], [0], [0], [1], [0, 0, 1, 1], [], []>} : vector<16x128xbf16>, vector<128x64xbf16>, vector<16x64xf32> -> vector<16x64xf32>
    %c0_51 = arith.constant 0 : index
    %c0_52 = arith.constant 0 : index
    %124 = vector.load %arg13[%c0_51, %c0_52] : memref<1x64xf32, #tpu.memory_space<vmem>>, vector<1x64xf32>
    %125 = vector.broadcast %124 : vector<1x64xf32> to vector<16x64xf32>
    %126 = arith.addf %123, %125 : vector<16x64xf32>
    %127 = arith.addf %79, %126 : vector<16x64xf32>
    %c0_53 = arith.constant 0 : index
    %c0_54 = arith.constant 0 : index
    %c0_55 = arith.constant 0 : index
    %128 = vector.load %arg14[%c0_53, %c0_54, %c0_55] : memref<1x16x64xf32, #tpu.memory_space<vmem>>, vector<1x16x64xf32>
    %129 = vector.shape_cast %128 : vector<1x16x64xf32> to vector<16x64xf32>
    %130 = vector.shape_cast %127 : vector<16x64xf32> to vector<1x16x64xf32>
    tpu.vector_store %arg14[%c0_53, %c0_54, %c0_55], %130 {strides = array<i32>} : memref<1x16x64xf32, #tpu.memory_space<vmem>>, vector<1x16x64xf32>,
    return
  }
  func.func @transform_0(%arg0: i32) -> (i32, i32, i32) {
    %c0_i32 = arith.constant 0 : i32
    %c0_i32_0 = arith.constant 0 : i32
    %c0_i32_1 = arith.constant 0 : i32
    return %arg0, %c0_i32, %c0_i32_0 : i32, i32, i32
  }
  func.func @transform_1(%arg0: i32) -> (i32, i32) {
    %c0_i32 = arith.constant 0 : i32
    %c0_i32_0 = arith.constant 0 : i32
    %c0_i32_1 = arith.constant 0 : i32
    return %c0_i32, %c0_i32_0 : i32, i32
  }
  func.func @transform_2(%arg0: i32) -> (i32, i32) {
    %c0_i32 = arith.constant 0 : i32
    %c0_i32_0 = arith.constant 0 : i32
    %c0_i32_1 = arith.constant 0 : i32
    return %c0_i32, %c0_i32_0 : i32, i32
  }
  func.func @transform_3(%arg0: i32) -> (i32, i32) {
    %c0_i32 = arith.constant 0 : i32
    %c0_i32_0 = arith.constant 0 : i32
    %c0_i32_1 = arith.constant 0 : i32
    return %c0_i32, %c0_i32_0 : i32, i32
  }
  func.func @transform_4(%arg0: i32) -> (i32, i32) {
    %c0_i32 = arith.constant 0 : i32
    %c0_i32_0 = arith.constant 0 : i32
    %c0_i32_1 = arith.constant 0 : i32
    return %c0_i32, %c0_i32_0 : i32, i32
  }
  func.func @transform_5(%arg0: i32) -> (i32, i32) {
    %c0_i32 = arith.constant 0 : i32
    %c0_i32_0 = arith.constant 0 : i32
    %c0_i32_1 = arith.constant 0 : i32
    return %c0_i32, %c0_i32_0 : i32, i32
  }
  func.func @transform_6(%arg0: i32) -> (i32, i32) {
    %c0_i32 = arith.constant 0 : i32
    %c0_i32_0 = arith.constant 0 : i32
    %c0_i32_1 = arith.constant 0 : i32
    return %c0_i32, %c0_i32_0 : i32, i32
  }
  func.func @transform_7(%arg0: i32) -> (i32, i32) {
    %c0_i32 = arith.constant 0 : i32
    %c0_i32_0 = arith.constant 0 : i32
    %c0_i32_1 = arith.constant 0 : i32
    return %c0_i32, %c0_i32_0 : i32, i32
  }
  func.func @transform_8(%arg0: i32) -> (i32, i32) {
    %c0_i32 = arith.constant 0 : i32
    %c0_i32_0 = arith.constant 0 : i32
    %c0_i32_1 = arith.constant 0 : i32
    return %c0_i32, %c0_i32_0 : i32, i32
  }
  func.func @transform_9(%arg0: i32) -> (i32, i32) {
    %c0_i32 = arith.constant 0 : i32
    %c0_i32_0 = arith.constant 0 : i32
    %c0_i32_1 = arith.constant 0 : i32
    return %c0_i32, %c0_i32_0 : i32, i32
  }
  func.func @transform_10(%arg0: i32) -> (i32, i32) {
    %c0_i32 = arith.constant 0 : i32
    %c0_i32_0 = arith.constant 0 : i32
    %c0_i32_1 = arith.constant 0 : i32
    return %c0_i32, %c0_i32_0 : i32, i32
  }
  func.func @transform_11(%arg0: i32) -> (i32, i32) {
    %c0_i32 = arith.constant 0 : i32
    %c0_i32_0 = arith.constant 0 : i32
    %c0_i32_1 = arith.constant 0 : i32
    return %c0_i32, %c0_i32_0 : i32, i32
  }
  func.func @transform_12(%arg0: i32) -> (i32, i32) {
    %c0_i32 = arith.constant 0 : i32
    %c0_i32_0 = arith.constant 0 : i32
    %c0_i32_1 = arith.constant 0 : i32
    return %c0_i32, %c0_i32_0 : i32, i32
  }
  func.func @transform_13(%arg0: i32) -> (i32, i32, i32) {
    %c0_i32 = arith.constant 0 : i32
    %c0_i32_0 = arith.constant 0 : i32
    %c0_i32_1 = arith.constant 0 : i32
    return %arg0, %c0_i32, %c0_i32_0 : i32, i32, i32
  }
}

module attributes {stable_mosaic.version = 11 : i64} {
  func.func @_neck_kernel(%arg0: i32, %arg1: memref<1x16x64xf32, #tpu.memory_space<vmem>>, %arg2: memref<64x32xbf16, #tpu.memory_space<vmem>>, %arg3: memref<1x32xf32, #tpu.memory_space<vmem>>, %arg4: memref<1x32xf32, #tpu.memory_space<vmem>>, %arg5: memref<9x16x16xf32, #tpu.memory_space<vmem>>, %arg6: memref<9x32x32xbf16, #tpu.memory_space<vmem>>, %arg7: memref<1x32xf32, #tpu.memory_space<vmem>>, %arg8: memref<1x32xf32, #tpu.memory_space<vmem>>, %arg9: memref<1x16x32xf32, #tpu.memory_space<vmem>>) attributes {dimension_semantics = [#tpu.dimension_semantics<parallel>], iteration_bounds = array<i64: 2>, scalar_prefetch = 0 : i64, scratch_operands = 0 : i64, tpu.core_type = #tpu.core_type<tc>, window_params = [{transform_indices = @transform_0, window_bounds = array<i64: 1, 16, 64>}, {pipeline_mode = #tpu.pipeline_mode<synchronous>, transform_indices = @transform_1, window_bounds = array<i64: 64, 32>}, {pipeline_mode = #tpu.pipeline_mode<synchronous>, transform_indices = @transform_2, window_bounds = array<i64: 1, 32>}, {pipeline_mode = #tpu.pipeline_mode<synchronous>, transform_indices = @transform_3, window_bounds = array<i64: 1, 32>}, {pipeline_mode = #tpu.pipeline_mode<synchronous>, transform_indices = @transform_4, window_bounds = array<i64: 9, 16, 16>}, {pipeline_mode = #tpu.pipeline_mode<synchronous>, transform_indices = @transform_5, window_bounds = array<i64: 9, 32, 32>}, {pipeline_mode = #tpu.pipeline_mode<synchronous>, transform_indices = @transform_6, window_bounds = array<i64: 1, 32>}, {pipeline_mode = #tpu.pipeline_mode<synchronous>, transform_indices = @transform_7, window_bounds = array<i64: 1, 32>}, {transform_indices = @transform_8, window_bounds = array<i64: 1, 16, 32>}]} {
    %c0 = arith.constant 0 : index
    %c0_0 = arith.constant 0 : index
    %c0_1 = arith.constant 0 : index
    %0 = vector.load %arg1[%c0, %c0_0, %c0_1] : memref<1x16x64xf32, #tpu.memory_space<vmem>>, vector<1x16x64xf32>
    %1 = vector.shape_cast %0 : vector<1x16x64xf32> to vector<16x64xf32>
    %c0_2 = arith.constant 0 : index
    %c0_3 = arith.constant 0 : index
    %2 = vector.load %arg2[%c0_2, %c0_3] : memref<64x32xbf16, #tpu.memory_space<vmem>>, vector<64x32xbf16>
    %3 = arith.truncf %1 : vector<16x64xf32> to vector<16x64xbf16>
    %cst = arith.constant dense<0.000000e+00> : vector<16x32xf32>
    %4 = tpu.matmul %3, %2, %cst {dimension_numbers = #tpu.dot_dimension_numbers<[1], [0], [0], [1], [0, 0, 1, 1], [], []>} : vector<16x64xbf16>, vector<64x32xbf16>, vector<16x32xf32> -> vector<16x32xf32>
    %c0_4 = arith.constant 0 : index
    %c0_5 = arith.constant 0 : index
    %5 = vector.load %arg3[%c0_4, %c0_5] : memref<1x32xf32, #tpu.memory_space<vmem>>, vector<1x32xf32>
    %c0_6 = arith.constant 0 : index
    %c0_7 = arith.constant 0 : index
    %6 = vector.load %arg4[%c0_6, %c0_7] : memref<1x32xf32, #tpu.memory_space<vmem>>, vector<1x32xf32>
    %cst_8 = arith.constant dense<0.000000e+00> : vector<16xf32>
    %7 = vector.multi_reduction <add>, %4, %cst_8 [1] : vector<16x32xf32> to vector<16xf32>
    %8 = vector.shape_cast %7 : vector<16xf32> to vector<16x1xf32>
    %cst_9 = arith.constant 3.200000e+01 : f32
    %9 = vector.broadcast %cst_9 : f32 to vector<16x1xf32>
    %10 = arith.divf %8, %9 : vector<16x1xf32>
    %11 = vector.broadcast %10 : vector<16x1xf32> to vector<16x32xf32>
    %12 = arith.subf %4, %11 : vector<16x32xf32>
    %13 = arith.mulf %12, %12 : vector<16x32xf32>
    %cst_10 = arith.constant dense<0.000000e+00> : vector<16xf32>
    %14 = vector.multi_reduction <add>, %13, %cst_10 [1] : vector<16x32xf32> to vector<16xf32>
    %15 = vector.shape_cast %14 : vector<16xf32> to vector<16x1xf32>
    %cst_11 = arith.constant 3.200000e+01 : f32
    %16 = vector.broadcast %cst_11 : f32 to vector<16x1xf32>
    %17 = arith.divf %15, %16 : vector<16x1xf32>
    %cst_12 = arith.constant 9.99999997E-7 : f32
    %18 = vector.broadcast %cst_12 : f32 to vector<16x1xf32>
    %19 = arith.addf %17, %18 : vector<16x1xf32>
    %20 = math.rsqrt %19 : vector<16x1xf32>
    %21 = vector.broadcast %20 : vector<16x1xf32> to vector<16x32xf32>
    %22 = arith.mulf %12, %21 : vector<16x32xf32>
    %23 = vector.broadcast %5 : vector<1x32xf32> to vector<16x32xf32>
    %24 = arith.mulf %22, %23 : vector<16x32xf32>
    %25 = vector.broadcast %6 : vector<1x32xf32> to vector<16x32xf32>
    %26 = arith.addf %24, %25 : vector<16x32xf32>
    %cst_13 = arith.constant 0.000000e+00 : f32
    %27 = vector.broadcast %cst_13 : f32 to vector<16x32xf32>
    %c0_14 = arith.constant 0 : index
    %c0_15 = arith.constant 0 : index
    %c0_16 = arith.constant 0 : index
    %28 = vector.load %arg5[%c0_14, %c0_15, %c0_16] : memref<9x16x16xf32, #tpu.memory_space<vmem>>, vector<1x16x16xf32>
    %29 = vector.shape_cast %28 : vector<1x16x16xf32> to vector<16x16xf32>
    %cst_17 = arith.constant dense<0.000000e+00> : vector<16x32xf32>
    %30 = tpu.matmul %29, %26, %cst_17 {dimension_numbers = #tpu.dot_dimension_numbers<[1], [0], [0], [1], [0, 0, 1, 1], [], []>} : vector<16x16xf32>, vector<16x32xf32>, vector<16x32xf32> -> vector<16x32xf32>
    %c0_18 = arith.constant 0 : index
    %c0_19 = arith.constant 0 : index
    %c0_20 = arith.constant 0 : index
    %31 = vector.load %arg6[%c0_18, %c0_19, %c0_20] : memref<9x32x32xbf16, #tpu.memory_space<vmem>>, vector<1x32x32xbf16>
    %32 = vector.shape_cast %31 : vector<1x32x32xbf16> to vector<32x32xbf16>
    %33 = arith.truncf %30 : vector<16x32xf32> to vector<16x32xbf16>
    %cst_21 = arith.constant dense<0.000000e+00> : vector<16x32xf32>
    %34 = tpu.matmul %33, %32, %cst_21 {dimension_numbers = #tpu.dot_dimension_numbers<[1], [0], [0], [1], [0, 0, 1, 1], [], []>} : vector<16x32xbf16>, vector<32x32xbf16>, vector<16x32xf32> -> vector<16x32xf32>
    %35 = arith.addf %27, %34 : vector<16x32xf32>
    %c1 = arith.constant 1 : index
    %c0_22 = arith.constant 0 : index
    %c0_23 = arith.constant 0 : index
    %36 = vector.load %arg5[%c1, %c0_22, %c0_23] : memref<9x16x16xf32, #tpu.memory_space<vmem>>, vector<1x16x16xf32>
    %37 = vector.shape_cast %36 : vector<1x16x16xf32> to vector<16x16xf32>
    %cst_24 = arith.constant dense<0.000000e+00> : vector<16x32xf32>
    %38 = tpu.matmul %37, %26, %cst_24 {dimension_numbers = #tpu.dot_dimension_numbers<[1], [0], [0], [1], [0, 0, 1, 1], [], []>} : vector<16x16xf32>, vector<16x32xf32>, vector<16x32xf32> -> vector<16x32xf32>
    %c1_25 = arith.constant 1 : index
    %c0_26 = arith.constant 0 : index
    %c0_27 = arith.constant 0 : index
    %39 = vector.load %arg6[%c1_25, %c0_26, %c0_27] : memref<9x32x32xbf16, #tpu.memory_space<vmem>>, vector<1x32x32xbf16>
    %40 = vector.shape_cast %39 : vector<1x32x32xbf16> to vector<32x32xbf16>
    %41 = arith.truncf %38 : vector<16x32xf32> to vector<16x32xbf16>
    %cst_28 = arith.constant dense<0.000000e+00> : vector<16x32xf32>
    %42 = tpu.matmul %41, %40, %cst_28 {dimension_numbers = #tpu.dot_dimension_numbers<[1], [0], [0], [1], [0, 0, 1, 1], [], []>} : vector<16x32xbf16>, vector<32x32xbf16>, vector<16x32xf32> -> vector<16x32xf32>
    %43 = arith.addf %35, %42 : vector<16x32xf32>
    %c2 = arith.constant 2 : index
    %c0_29 = arith.constant 0 : index
    %c0_30 = arith.constant 0 : index
    %44 = vector.load %arg5[%c2, %c0_29, %c0_30] : memref<9x16x16xf32, #tpu.memory_space<vmem>>, vector<1x16x16xf32>
    %45 = vector.shape_cast %44 : vector<1x16x16xf32> to vector<16x16xf32>
    %cst_31 = arith.constant dense<0.000000e+00> : vector<16x32xf32>
    %46 = tpu.matmul %45, %26, %cst_31 {dimension_numbers = #tpu.dot_dimension_numbers<[1], [0], [0], [1], [0, 0, 1, 1], [], []>} : vector<16x16xf32>, vector<16x32xf32>, vector<16x32xf32> -> vector<16x32xf32>
    %c2_32 = arith.constant 2 : index
    %c0_33 = arith.constant 0 : index
    %c0_34 = arith.constant 0 : index
    %47 = vector.load %arg6[%c2_32, %c0_33, %c0_34] : memref<9x32x32xbf16, #tpu.memory_space<vmem>>, vector<1x32x32xbf16>
    %48 = vector.shape_cast %47 : vector<1x32x32xbf16> to vector<32x32xbf16>
    %49 = arith.truncf %46 : vector<16x32xf32> to vector<16x32xbf16>
    %cst_35 = arith.constant dense<0.000000e+00> : vector<16x32xf32>
    %50 = tpu.matmul %49, %48, %cst_35 {dimension_numbers = #tpu.dot_dimension_numbers<[1], [0], [0], [1], [0, 0, 1, 1], [], []>} : vector<16x32xbf16>, vector<32x32xbf16>, vector<16x32xf32> -> vector<16x32xf32>
    %51 = arith.addf %43, %50 : vector<16x32xf32>
    %c3 = arith.constant 3 : index
    %c0_36 = arith.constant 0 : index
    %c0_37 = arith.constant 0 : index
    %52 = vector.load %arg5[%c3, %c0_36, %c0_37] : memref<9x16x16xf32, #tpu.memory_space<vmem>>, vector<1x16x16xf32>
    %53 = vector.shape_cast %52 : vector<1x16x16xf32> to vector<16x16xf32>
    %cst_38 = arith.constant dense<0.000000e+00> : vector<16x32xf32>
    %54 = tpu.matmul %53, %26, %cst_38 {dimension_numbers = #tpu.dot_dimension_numbers<[1], [0], [0], [1], [0, 0, 1, 1], [], []>} : vector<16x16xf32>, vector<16x32xf32>, vector<16x32xf32> -> vector<16x32xf32>
    %c3_39 = arith.constant 3 : index
    %c0_40 = arith.constant 0 : index
    %c0_41 = arith.constant 0 : index
    %55 = vector.load %arg6[%c3_39, %c0_40, %c0_41] : memref<9x32x32xbf16, #tpu.memory_space<vmem>>, vector<1x32x32xbf16>
    %56 = vector.shape_cast %55 : vector<1x32x32xbf16> to vector<32x32xbf16>
    %57 = arith.truncf %54 : vector<16x32xf32> to vector<16x32xbf16>
    %cst_42 = arith.constant dense<0.000000e+00> : vector<16x32xf32>
    %58 = tpu.matmul %57, %56, %cst_42 {dimension_numbers = #tpu.dot_dimension_numbers<[1], [0], [0], [1], [0, 0, 1, 1], [], []>} : vector<16x32xbf16>, vector<32x32xbf16>, vector<16x32xf32> -> vector<16x32xf32>
    %59 = arith.addf %51, %58 : vector<16x32xf32>
    %c4 = arith.constant 4 : index
    %c0_43 = arith.constant 0 : index
    %c0_44 = arith.constant 0 : index
    %60 = vector.load %arg5[%c4, %c0_43, %c0_44] : memref<9x16x16xf32, #tpu.memory_space<vmem>>, vector<1x16x16xf32>
    %61 = vector.shape_cast %60 : vector<1x16x16xf32> to vector<16x16xf32>
    %cst_45 = arith.constant dense<0.000000e+00> : vector<16x32xf32>
    %62 = tpu.matmul %61, %26, %cst_45 {dimension_numbers = #tpu.dot_dimension_numbers<[1], [0], [0], [1], [0, 0, 1, 1], [], []>} : vector<16x16xf32>, vector<16x32xf32>, vector<16x32xf32> -> vector<16x32xf32>
    %c4_46 = arith.constant 4 : index
    %c0_47 = arith.constant 0 : index
    %c0_48 = arith.constant 0 : index
    %63 = vector.load %arg6[%c4_46, %c0_47, %c0_48] : memref<9x32x32xbf16, #tpu.memory_space<vmem>>, vector<1x32x32xbf16>
    %64 = vector.shape_cast %63 : vector<1x32x32xbf16> to vector<32x32xbf16>
    %65 = arith.truncf %62 : vector<16x32xf32> to vector<16x32xbf16>
    %cst_49 = arith.constant dense<0.000000e+00> : vector<16x32xf32>
    %66 = tpu.matmul %65, %64, %cst_49 {dimension_numbers = #tpu.dot_dimension_numbers<[1], [0], [0], [1], [0, 0, 1, 1], [], []>} : vector<16x32xbf16>, vector<32x32xbf16>, vector<16x32xf32> -> vector<16x32xf32>
    %67 = arith.addf %59, %66 : vector<16x32xf32>
    %c5 = arith.constant 5 : index
    %c0_50 = arith.constant 0 : index
    %c0_51 = arith.constant 0 : index
    %68 = vector.load %arg5[%c5, %c0_50, %c0_51] : memref<9x16x16xf32, #tpu.memory_space<vmem>>, vector<1x16x16xf32>
    %69 = vector.shape_cast %68 : vector<1x16x16xf32> to vector<16x16xf32>
    %cst_52 = arith.constant dense<0.000000e+00> : vector<16x32xf32>
    %70 = tpu.matmul %69, %26, %cst_52 {dimension_numbers = #tpu.dot_dimension_numbers<[1], [0], [0], [1], [0, 0, 1, 1], [], []>} : vector<16x16xf32>, vector<16x32xf32>, vector<16x32xf32> -> vector<16x32xf32>
    %c5_53 = arith.constant 5 : index
    %c0_54 = arith.constant 0 : index
    %c0_55 = arith.constant 0 : index
    %71 = vector.load %arg6[%c5_53, %c0_54, %c0_55] : memref<9x32x32xbf16, #tpu.memory_space<vmem>>, vector<1x32x32xbf16>
    %72 = vector.shape_cast %71 : vector<1x32x32xbf16> to vector<32x32xbf16>
    %73 = arith.truncf %70 : vector<16x32xf32> to vector<16x32xbf16>
    %cst_56 = arith.constant dense<0.000000e+00> : vector<16x32xf32>
    %74 = tpu.matmul %73, %72, %cst_56 {dimension_numbers = #tpu.dot_dimension_numbers<[1], [0], [0], [1], [0, 0, 1, 1], [], []>} : vector<16x32xbf16>, vector<32x32xbf16>, vector<16x32xf32> -> vector<16x32xf32>
    %75 = arith.addf %67, %74 : vector<16x32xf32>
    %c6 = arith.constant 6 : index
    %c0_57 = arith.constant 0 : index
    %c0_58 = arith.constant 0 : index
    %76 = vector.load %arg5[%c6, %c0_57, %c0_58] : memref<9x16x16xf32, #tpu.memory_space<vmem>>, vector<1x16x16xf32>
    %77 = vector.shape_cast %76 : vector<1x16x16xf32> to vector<16x16xf32>
    %cst_59 = arith.constant dense<0.000000e+00> : vector<16x32xf32>
    %78 = tpu.matmul %77, %26, %cst_59 {dimension_numbers = #tpu.dot_dimension_numbers<[1], [0], [0], [1], [0, 0, 1, 1], [], []>} : vector<16x16xf32>, vector<16x32xf32>, vector<16x32xf32> -> vector<16x32xf32>
    %c6_60 = arith.constant 6 : index
    %c0_61 = arith.constant 0 : index
    %c0_62 = arith.constant 0 : index
    %79 = vector.load %arg6[%c6_60, %c0_61, %c0_62] : memref<9x32x32xbf16, #tpu.memory_space<vmem>>, vector<1x32x32xbf16>
    %80 = vector.shape_cast %79 : vector<1x32x32xbf16> to vector<32x32xbf16>
    %81 = arith.truncf %78 : vector<16x32xf32> to vector<16x32xbf16>
    %cst_63 = arith.constant dense<0.000000e+00> : vector<16x32xf32>
    %82 = tpu.matmul %81, %80, %cst_63 {dimension_numbers = #tpu.dot_dimension_numbers<[1], [0], [0], [1], [0, 0, 1, 1], [], []>} : vector<16x32xbf16>, vector<32x32xbf16>, vector<16x32xf32> -> vector<16x32xf32>
    %83 = arith.addf %75, %82 : vector<16x32xf32>
    %c7 = arith.constant 7 : index
    %c0_64 = arith.constant 0 : index
    %c0_65 = arith.constant 0 : index
    %84 = vector.load %arg5[%c7, %c0_64, %c0_65] : memref<9x16x16xf32, #tpu.memory_space<vmem>>, vector<1x16x16xf32>
    %85 = vector.shape_cast %84 : vector<1x16x16xf32> to vector<16x16xf32>
    %cst_66 = arith.constant dense<0.000000e+00> : vector<16x32xf32>
    %86 = tpu.matmul %85, %26, %cst_66 {dimension_numbers = #tpu.dot_dimension_numbers<[1], [0], [0], [1], [0, 0, 1, 1], [], []>} : vector<16x16xf32>, vector<16x32xf32>, vector<16x32xf32> -> vector<16x32xf32>
    %c7_67 = arith.constant 7 : index
    %c0_68 = arith.constant 0 : index
    %c0_69 = arith.constant 0 : index
    %87 = vector.load %arg6[%c7_67, %c0_68, %c0_69] : memref<9x32x32xbf16, #tpu.memory_space<vmem>>, vector<1x32x32xbf16>
    %88 = vector.shape_cast %87 : vector<1x32x32xbf16> to vector<32x32xbf16>
    %89 = arith.truncf %86 : vector<16x32xf32> to vector<16x32xbf16>
    %cst_70 = arith.constant dense<0.000000e+00> : vector<16x32xf32>
    %90 = tpu.matmul %89, %88, %cst_70 {dimension_numbers = #tpu.dot_dimension_numbers<[1], [0], [0], [1], [0, 0, 1, 1], [], []>} : vector<16x32xbf16>, vector<32x32xbf16>, vector<16x32xf32> -> vector<16x32xf32>
    %91 = arith.addf %83, %90 : vector<16x32xf32>
    %c8 = arith.constant 8 : index
    %c0_71 = arith.constant 0 : index
    %c0_72 = arith.constant 0 : index
    %92 = vector.load %arg5[%c8, %c0_71, %c0_72] : memref<9x16x16xf32, #tpu.memory_space<vmem>>, vector<1x16x16xf32>
    %93 = vector.shape_cast %92 : vector<1x16x16xf32> to vector<16x16xf32>
    %cst_73 = arith.constant dense<0.000000e+00> : vector<16x32xf32>
    %94 = tpu.matmul %93, %26, %cst_73 {dimension_numbers = #tpu.dot_dimension_numbers<[1], [0], [0], [1], [0, 0, 1, 1], [], []>} : vector<16x16xf32>, vector<16x32xf32>, vector<16x32xf32> -> vector<16x32xf32>
    %c8_74 = arith.constant 8 : index
    %c0_75 = arith.constant 0 : index
    %c0_76 = arith.constant 0 : index
    %95 = vector.load %arg6[%c8_74, %c0_75, %c0_76] : memref<9x32x32xbf16, #tpu.memory_space<vmem>>, vector<1x32x32xbf16>
    %96 = vector.shape_cast %95 : vector<1x32x32xbf16> to vector<32x32xbf16>
    %97 = arith.truncf %94 : vector<16x32xf32> to vector<16x32xbf16>
    %cst_77 = arith.constant dense<0.000000e+00> : vector<16x32xf32>
    %98 = tpu.matmul %97, %96, %cst_77 {dimension_numbers = #tpu.dot_dimension_numbers<[1], [0], [0], [1], [0, 0, 1, 1], [], []>} : vector<16x32xbf16>, vector<32x32xbf16>, vector<16x32xf32> -> vector<16x32xf32>
    %99 = arith.addf %91, %98 : vector<16x32xf32>
    %c0_78 = arith.constant 0 : index
    %c0_79 = arith.constant 0 : index
    %100 = vector.load %arg7[%c0_78, %c0_79] : memref<1x32xf32, #tpu.memory_space<vmem>>, vector<1x32xf32>
    %c0_80 = arith.constant 0 : index
    %c0_81 = arith.constant 0 : index
    %101 = vector.load %arg8[%c0_80, %c0_81] : memref<1x32xf32, #tpu.memory_space<vmem>>, vector<1x32xf32>
    %cst_82 = arith.constant dense<0.000000e+00> : vector<16xf32>
    %102 = vector.multi_reduction <add>, %99, %cst_82 [1] : vector<16x32xf32> to vector<16xf32>
    %103 = vector.shape_cast %102 : vector<16xf32> to vector<16x1xf32>
    %cst_83 = arith.constant 3.200000e+01 : f32
    %104 = vector.broadcast %cst_83 : f32 to vector<16x1xf32>
    %105 = arith.divf %103, %104 : vector<16x1xf32>
    %106 = vector.broadcast %105 : vector<16x1xf32> to vector<16x32xf32>
    %107 = arith.subf %99, %106 : vector<16x32xf32>
    %108 = arith.mulf %107, %107 : vector<16x32xf32>
    %cst_84 = arith.constant dense<0.000000e+00> : vector<16xf32>
    %109 = vector.multi_reduction <add>, %108, %cst_84 [1] : vector<16x32xf32> to vector<16xf32>
    %110 = vector.shape_cast %109 : vector<16xf32> to vector<16x1xf32>
    %cst_85 = arith.constant 3.200000e+01 : f32
    %111 = vector.broadcast %cst_85 : f32 to vector<16x1xf32>
    %112 = arith.divf %110, %111 : vector<16x1xf32>
    %cst_86 = arith.constant 9.99999997E-7 : f32
    %113 = vector.broadcast %cst_86 : f32 to vector<16x1xf32>
    %114 = arith.addf %112, %113 : vector<16x1xf32>
    %115 = math.rsqrt %114 : vector<16x1xf32>
    %116 = vector.broadcast %115 : vector<16x1xf32> to vector<16x32xf32>
    %117 = arith.mulf %107, %116 : vector<16x32xf32>
    %118 = vector.broadcast %100 : vector<1x32xf32> to vector<16x32xf32>
    %119 = arith.mulf %117, %118 : vector<16x32xf32>
    %120 = vector.broadcast %101 : vector<1x32xf32> to vector<16x32xf32>
    %121 = arith.addf %119, %120 : vector<16x32xf32>
    %c0_87 = arith.constant 0 : index
    %c0_88 = arith.constant 0 : index
    %c0_89 = arith.constant 0 : index
    %122 = vector.load %arg9[%c0_87, %c0_88, %c0_89] : memref<1x16x32xf32, #tpu.memory_space<vmem>>, vector<1x16x32xf32>
    %123 = vector.shape_cast %122 : vector<1x16x32xf32> to vector<16x32xf32>
    %124 = vector.shape_cast %121 : vector<16x32xf32> to vector<1x16x32xf32>
    tpu.vector_store %arg9[%c0_87, %c0_88, %c0_89], %124 {strides = array<i32>} : memref<1x16x32xf32, #tpu.memory_space<vmem>>, vector<1x16x32xf32>,
    return
  }
  func.func @transform_0(%arg0: i32) -> (i32, i32, i32) {
    %c0_i32 = arith.constant 0 : i32
    %c0_i32_0 = arith.constant 0 : i32
    %c0_i32_1 = arith.constant 0 : i32
    return %arg0, %c0_i32, %c0_i32_0 : i32, i32, i32
  }
  func.func @transform_1(%arg0: i32) -> (i32, i32) {
    %c0_i32 = arith.constant 0 : i32
    %c0_i32_0 = arith.constant 0 : i32
    %c0_i32_1 = arith.constant 0 : i32
    return %c0_i32, %c0_i32_0 : i32, i32
  }
  func.func @transform_2(%arg0: i32) -> (i32, i32) {
    %c0_i32 = arith.constant 0 : i32
    %c0_i32_0 = arith.constant 0 : i32
    %c0_i32_1 = arith.constant 0 : i32
    return %c0_i32, %c0_i32_0 : i32, i32
  }
  func.func @transform_3(%arg0: i32) -> (i32, i32) {
    %c0_i32 = arith.constant 0 : i32
    %c0_i32_0 = arith.constant 0 : i32
    %c0_i32_1 = arith.constant 0 : i32
    return %c0_i32, %c0_i32_0 : i32, i32
  }
  func.func @transform_4(%arg0: i32) -> (i32, i32, i32) {
    %c0_i32 = arith.constant 0 : i32
    %c0_i32_0 = arith.constant 0 : i32
    %c0_i32_1 = arith.constant 0 : i32
    %c0_i32_2 = arith.constant 0 : i32
    return %c0_i32, %c0_i32_0, %c0_i32_1 : i32, i32, i32
  }
  func.func @transform_5(%arg0: i32) -> (i32, i32, i32) {
    %c0_i32 = arith.constant 0 : i32
    %c0_i32_0 = arith.constant 0 : i32
    %c0_i32_1 = arith.constant 0 : i32
    %c0_i32_2 = arith.constant 0 : i32
    return %c0_i32, %c0_i32_0, %c0_i32_1 : i32, i32, i32
  }
  func.func @transform_6(%arg0: i32) -> (i32, i32) {
    %c0_i32 = arith.constant 0 : i32
    %c0_i32_0 = arith.constant 0 : i32
    %c0_i32_1 = arith.constant 0 : i32
    return %c0_i32, %c0_i32_0 : i32, i32
  }
  func.func @transform_7(%arg0: i32) -> (i32, i32) {
    %c0_i32 = arith.constant 0 : i32
    %c0_i32_0 = arith.constant 0 : i32
    %c0_i32_1 = arith.constant 0 : i32
    return %c0_i32, %c0_i32_0 : i32, i32
  }
  func.func @transform_8(%arg0: i32) -> (i32, i32, i32) {
    %c0_i32 = arith.constant 0 : i32
    %c0_i32_0 = arith.constant 0 : i32
    %c0_i32_1 = arith.constant 0 : i32
    return %arg0, %c0_i32, %c0_i32_0 : i32, i32, i32
  }
}

</mosaic_0001>

<llo_original>
// kernel: encode_images.3
$region0: #{encode_images.3}
  #allocation0 [shape = 'u32[]', space=smem, size = 0x4, offset = 0x4, fixed_abs, tag = 'smem constant byte address 0x4 - core index']
  #allocation1 [shape = 'u32[72,128]{1,0:T(1,128)}', space=vmem, size = 0x9000, scoped, tag = 'internal scratch']
  %s0 = inlined_call_operand.vmem [shape: f32[2,16,192], index: 0, kind: input, shape index: {}]
  %s1 = inlined_call_operand.vmem [shape: bf16[192,64], index: 1, kind: input, shape index: {}]
  %s2 = inlined_call_operand.vmem [shape: f32[1,64], index: 2, kind: input, shape index: {}]
  %s3 = inlined_call_operand.vmem [shape: f32[16,64], index: 3, kind: input, shape index: {}]
  %s4 = inlined_call_operand.vmem [shape: f32[2,16,64], index: 4, kind: output, shape index: {}]
  %s5 = sld [smem:[#allocation0]]
  $region49: #{encode_images.3} parent=0
    _
  %s7 = ssub.s32 1, %s5
  %s8 = scalar_select 0, %s7, %s5
  loop: start=0, step=1, limit=4
  $region2: #{encode_images.3} parent=0 // loop_pre_header
    _
  $region3: #{encode_images.3} parent=0 // loop_header
    %s10 = sphi 0, %s14
    %p11 = scmp.ge.s32.totalorder %s10, 4
    %s20 = sphi 0, %s22
    %s23 = sphi 0, %s20
    %s24 = sphi 0, %s23
    %s40 = sphi 0, %s24
    %s44 = sphi 0, %s44
    %s46 = sphi 0, %s44
    %s47 = sphi 0, %s46
    %s61 = sphi 0, %s47
    %s65 = sphi 0, %s65
    %s67 = sphi 0, %s65
    %s68 = sphi 0, %s67
    %s82 = sphi 0, %s68
    %s86 = sphi 0, %s86
    %s88 = sphi 0, %s86
    %s89 = sphi 0, %s88
    %s103 = sphi 0, %s89
    %s109 = sphi 0, %s111
    %s112 = sphi 0, %s109
    %s113 = sphi 0, %s112
    %s129 = sphi 0, %s113
  $region4: #{encode_images.3} parent=0 // loop_header_branch
    %13 = sbr.rel (%p11) target = $region8
  $region5: #{encode_images.3} parent=0 // loop_body
    %s15 = ssub.s32 %s10, 1
    %s16 = ssub.s32 %s10, 2
    %s17 = sadd.s32 %s10, 1
    %s18 = ssub.s32 %s10, %s17
    %p19 = scmp.eq.s32.totalorder %s18, 0
    %s21 = sadd.s32 %s20, 1
    %s22 = scalar_select %p19, %s20, %s21
    %p25 = pneg %p19
    %p26 = scmp.eq.s32.totalorder %s10, 1
    %p27 = por %p25, %p26
    %p28 = scmp.ne.s32.totalorder %s20, %s23
    %p29 = scmp.eq.s32.totalorder %s10, 0
    %p30 = por %p28, %p29
    %p31 = scmp.ne.s32.totalorder %s20, %s23
    %p32 = scmp.eq.s32.totalorder %s15, 1
    %p33 = por %p31, %p32
    %p34 = scmp.ne.s32.totalorder %s23, %s24
    %p35 = scmp.eq.s32.totalorder %s15, 0
    %p36 = por %p34, %p35
    %p37 = scmp.ne.s32.totalorder %s23, %s24
    %p38 = scmp.eq.s32.totalorder %s16, 1
    %p39 = por %p37, %p38
    %p41 = scmp.ne.s32.totalorder %s24, %s40
    %p42 = scmp.eq.s32.totalorder %s16, 0
    %p43 = por %p41, %p42
    %s45 = sadd.s32 %s44, 1
    %p48 = scmp.eq.s32.totalorder %s10, 1
    %p49 = scmp.ne.s32.totalorder %s44, %s46
    %p50 = scmp.eq.s32.totalorder %s10, 0
    %p51 = por %p49, %p50
    %p52 = scmp.ne.s32.totalorder %s44, %s46
    %p53 = scmp.eq.s32.totalorder %s15, 1
    %p54 = por %p52, %p53
    %p55 = scmp.ne.s32.totalorder %s46, %s47
    %p56 = scmp.eq.s32.totalorder %s15, 0
    %p57 = por %p55, %p56
    %p58 = scmp.ne.s32.totalorder %s46, %s47
    %p59 = scmp.eq.s32.totalorder %s16, 1
    %p60 = por %p58, %p59
    %p62 = scmp.ne.s32.totalorder %s47, %s61
    %p63 = scmp.eq.s32.totalorder %s16, 0
    %p64 = por %p62, %p63
    %s66 = sadd.s32 %s65, 1
    %p69 = scmp.eq.s32.totalorder %s10, 1
    %p70 = scmp.ne.s32.totalorder %s65, %s67
    %p71 = scmp.eq.s32.totalorder %s10, 0
    %p72 = por %p70, %p71
    %p73 = scmp.ne.s32.totalorder %s65, %s67
    %p74 = scmp.eq.s32.totalorder %s15, 1
    %p75 = por %p73, %p74
    %p76 = scmp.ne.s32.totalorder %s67, %s68
    %p77 = scmp.eq.s32.totalorder %s15, 0
    %p78 = por %p76, %p77
    %p79 = scmp.ne.s32.totalorder %s67, %s68
    %p80 = scmp.eq.s32.totalorder %s16, 1
    %p81 = por %p79, %p80
    %p83 = scmp.ne.s32.totalorder %s68, %s82
    %p84 = scmp.eq.s32.totalorder %s16, 0
    %p85 = por %p83, %p84
    %s87 = sadd.s32 %s86, 1
    %p90 = scmp.eq.s32.totalorder %s10, 1
    %p91 = scmp.ne.s32.totalorder %s86, %s88
    %p92 = scmp.eq.s32.totalorder %s10, 0
    %p93 = por %p91, %p92
    %p94 = scmp.ne.s32.totalorder %s86, %s88
    %p95 = scmp.eq.s32.totalorder %s15, 1
    %p96 = por %p94, %p95
    %p97 = scmp.ne.s32.totalorder %s88, %s89
    %p98 = scmp.eq.s32.totalorder %s15, 0
    %p99 = por %p97, %p98
    %p100 = scmp.ne.s32.totalorder %s88, %s89
    %p101 = scmp.eq.s32.totalorder %s16, 1
    %p102 = por %p100, %p101
    %p104 = scmp.ne.s32.totalorder %s89, %s103
    %p105 = scmp.eq.s32.totalorder %s16, 0
    %p106 = por %p104, %p105
    %s107 = ssub.s32 %s10, %s17
    %p108 = scmp.eq.s32.totalorder %s107, 0
    %s110 = sadd.s32 %s109, 1
    %s111 = scalar_select %p108, %s109, %s110
    %p114 = pneg %p108
    %p115 = scmp.eq.s32.totalorder %s10, 1
    %p116 = por %p114, %p115
    %p117 = scmp.ne.s32.totalorder %s109, %s112
    %p118 = scmp.eq.s32.totalorder %s10, 0
    %p119 = por %p117, %p118
    %p120 = scmp.ne.s32.totalorder %s109, %s112
    %p121 = scmp.eq.s32.totalorder %s15, 1
    %p122 = por %p120, %p121
    %p123 = scmp.ne.s32.totalorder %s112, %s113
    %p124 = scmp.eq.s32.totalorder %s15, 0
    %p125 = por %p123, %p124
    %p126 = scmp.ne.s32.totalorder %s112, %s113
    %p127 = scmp.eq.s32.totalorder %s16, 1
    %p128 = por %p126, %p127
    %p130 = scmp.ne.s32.totalorder %s113, %s129
    %p131 = scmp.eq.s32.totalorder %s16, 0
    %p132 = por %p130, %p131
    %p133 = scmp.le.s32.totalorder 1, %s10
    %p134 = scmp.lt.s32.totalorder %s10, 3
    %p135 = pnand %p133, %p134
    %p136 = pneg %p135
    // Predicated region
    $region9: #{encode_images.3} parent=5 // pred_check
      _
    $region10: #{encode_images.3} parent=5 // pred_check_branch
      %138 = sbr.rel (%p135) target = $region12
    $region11: #{encode_images.3} parent=5 // pred_region
      %s139 = ssub.s32 %s10, 1
      // Predicated region
      $region13: #{encode_images.3} parent=11 // pred_check
        %p140 = pneg %p57
      $region14: #{encode_images.3} parent=11 // pred_check_branch
        %142 = sbr.rel (%p140) target = $region16
      $region15: #{encode_images.3} parent=11 // pred_region
        _
      $region16: #{encode_images.3} parent=11 // pred_fallthru
        _
      // Predicated region
      $region17: #{encode_images.3} parent=11 // pred_check
        %p143 = pneg %p78
      $region18: #{encode_images.3} parent=11 // pred_check_branch
        %145 = sbr.rel (%p143) target = $region20
      $region19: #{encode_images.3} parent=11 // pred_region
        _
      $region20: #{encode_images.3} parent=11 // pred_fallthru
        _
      // Predicated region
      $region21: #{encode_images.3} parent=11 // pred_check
        %p146 = pneg %p99
      $region22: #{encode_images.3} parent=11 // pred_check_branch
        %148 = sbr.rel (%p146) target = $region24
      $region23: #{encode_images.3} parent=11 // pred_region
        _
      $region24: #{encode_images.3} parent=11 // pred_fallthru
        _
    $region12: #{encode_images.3} parent=5 // pred_fallthru
      _
    %p149 = scmp.lt.s32.totalorder %s10, 2
    // Predicated region
    $region25: #{encode_images.3} parent=5 // pred_check
      %p150 = pneg %p149
    $region26: #{encode_images.3} parent=5 // pred_check_branch
      %152 = sbr.rel (%p150) target = $region28
    $region27: #{encode_images.3} parent=5 // pred_region
      // Predicated region
      $region29: #{encode_images.3} parent=27 // pred_check
        %p153 = pneg %p30
      $region30: #{encode_images.3} parent=27 // pred_check_branch
        %155 = sbr.rel (%p153) target = $region32
      $region31: #{encode_images.3} parent=27 // pred_region
        %p156 = scmp.lt.s32.totalorder %s10, 1
        %s157 = scalar_select %p156, %s10, 1
        %s158 = smul.addr %s157, 4
        %s159 = smul.addr %s158, 8
        %s160 = scalar_lea.vmem %s0, %s159
      $region32: #{encode_images.3} parent=27 // pred_fallthru
        _
    $region28: #{encode_images.3} parent=5 // pred_fallthru
      _
    %p161 = scmp.le.s32.totalorder 1, %s10
    %p162 = scmp.lt.s32.totalorder %s10, 3
    %p163 = pnand %p161, %p162
    %p164 = pneg %p163
    // Predicated region
    $region33: #{encode_images.3} parent=5 // pred_check
      _
    $region34: #{encode_images.3} parent=5 // pred_check_branch
      %166 = sbr.rel (%p163) target = $region36
    $region35: #{encode_images.3} parent=5 // pred_region
      %s167 = ssub.s32 %s10, 1
      %p168 = scmp.lt.s32.totalorder %s15, 1
      %s169 = scalar_select %p168, %s15, 1
      %s170 = smul.addr %s169, 4
      %s171 = smul.addr %s170, 8
      %s172 = scalar_lea.vmem %s0, %s171
      %p173 = pneg %p36
      %p174 = pneg %p33
      %p175 = pneg %p57
      %p176 = pneg %p54
      %p177 = pneg %p78
      %p178 = pneg %p75
      %p179 = pneg %p99
      %p180 = pneg %p96
      %p181 = pneg %p125
      %p182 = pneg %p122
      %p183 = scmp.lt.s32.totalorder %s15, 1
      %s184 = scalar_select %p183, %s15, 1
      %s185 = smul.addr %s184, 2
      %s186 = smul.addr %s185, 8
      %s187 = scalar_lea.vmem %s4, %s186
      %p188 = scmp.lt.s32.totalorder %s15, 1
      %s189 = scalar_select %p188, %s15, 1
      %s190 = smul.addr %s189, 4
      %s191 = smul.addr %s190, 8
      %s192 = scalar_lea.vmem %s0, %s191
      %p193 = scmp.lt.s32.totalorder %s15, 1
      %s194 = scalar_select %p193, %s15, 1
      %s195 = smul.addr %s194, 2
      %s196 = smul.addr %s195, 8
      %s197 = scalar_lea.vmem %s4, %s196
      %v199 = vld [vmem:[%s192] sm:$0xff]
      %v200 = vld [vmem:[%s192 + $0x8] sm:$0xff]
      %v201 = vld [vmem:[%s192 + $0x10] sm:$0xff]
      %v202 = vld [vmem:[%s192 + $0x18] sm:$0xff]
      %v203 = vld [vmem:[%s1] sm:$0xf]
      %v204 = vld [vmem:[%s1 + $0x4] sm:$0xf]
      %v205 = vld [vmem:[%s1 + $0x8] sm:$0xf]
      %v206 = vld [vmem:[%s1 + $0xc] sm:$0xf]
      %v207 = vld [vmem:[%s1 + $0x10] sm:$0xf]
      %v208 = vld [vmem:[%s1 + $0x14] sm:$0xf]
      %v209 = vld [vmem:[%s1 + $0x18] sm:$0xf]
      %v210 = vld [vmem:[%s1 + $0x1c] sm:$0xf]
      %v211 = vld [vmem:[%s1 + $0x20] sm:$0xf]
      %v212 = vld [vmem:[%s1 + $0x24] sm:$0xf]
      %v213 = vld [vmem:[%s1 + $0x28] sm:$0xf]
      %v214 = vld [vmem:[%s1 + $0x2c] sm:$0xf]
      %v215 = vld [vmem:[%s1 + $0x30] sm:$0xf]
      %v216 = vld [vmem:[%s1 + $0x34] sm:$0xf]
      %v217 = vld [vmem:[%s1 + $0x38] sm:$0xf]
      %v218 = vld [vmem:[%s1 + $0x3c] sm:$0xf]
      %v219 = vld [vmem:[%s1 + $0x40] sm:$0xf]
      %v220 = vld [vmem:[%s1 + $0x44] sm:$0xf]
      %v221 = vld [vmem:[%s1 + $0x48] sm:$0xf]
      %v222 = vld [vmem:[%s1 + $0x4c] sm:$0xf]
      %v223 = vld [vmem:[%s1 + $0x50] sm:$0xf]
      %v224 = vld [vmem:[%s1 + $0x54] sm:$0xf]
      %v225 = vld [vmem:[%s1 + $0x58] sm:$0xf]
      %v226 = vld [vmem:[%s1 + $0x5c] sm:$0xf]
      %v227 = vpack.c.bf16 %v201, %v199
      %v228 = vpack.c.bf16 %v202, %v200
      %v229 = vld [vmem:[%s2] sm:$0x1]
      %v231 = vperm.slane %v229, 0
      %v257 = vunpack.c.l.b16 %v203
      %v258 = vunpack.c.l.b16 %v204
      %v259 = vunpack.c.l.b16 %v205
      %v260 = vunpack.c.l.b16 %v206
      %v261 = vunpack.c.l.b16 %v207
      %v262 = vunpack.c.l.b16 %v208
      %v263 = vunpack.c.l.b16 %v209
      %v264 = vunpack.c.l.b16 %v210
      %v265 = vunpack.c.l.b16 %v211
      %v266 = vunpack.c.l.b16 %v212
      %v267 = vunpack.c.l.b16 %v213
      %v268 = vunpack.c.l.b16 %v214
      %v269 = vunpack.c.l.b16 %v215
      %v270 = vunpack.c.l.b16 %v216
      %v271 = vunpack.c.l.b16 %v217
      %v272 = vunpack.c.l.b16 %v218
      %v273 = vunpack.c.l.b16 %v219
      %v274 = vunpack.c.l.b16 %v220
      %v275 = vunpack.c.l.b16 %v221
      %v276 = vunpack.c.l.b16 %v222
      %v277 = vunpack.c.l.b16 %v223
      %v278 = vunpack.c.l.b16 %v224
      %v279 = vunpack.c.l.b16 %v225
      %v280 = vunpack.c.l.b16 %v226
      %v281 = vpack.c.b16 %v258, %v257
      %v282 = vpack.c.b16 %v260, %v259
      %v283 = vpack.c.b16 %v262, %v261
      %v284 = vpack.c.b16 %v264, %v263
      %v285 = vpack.c.b16 %v266, %v265
      %v286 = vpack.c.b16 %v268, %v267
      %v287 = vpack.c.b16 %v270, %v269
      %v288 = vpack.c.b16 %v272, %v271
      %v289 = vpack.c.b16 %v274, %v273
      %v290 = vpack.c.b16 %v276, %v275
      %v291 = vpack.c.b16 %v278, %v277
      %v292 = vpack.c.b16 %v280, %v279
      %vm305 = vcmask 523264
      %v307 = vsel %vm305, %v228, 0
      %309 = vmatpush.bf16.msra.mxu0 %v288
      %310 = vmatpush.bf16.msra.mxu0 %v287
      %311 = vmatpush.bf16.msra.mxu0 %v286
      %312 = vmatpush.bf16.msra.mxu0 %v285
      %313 = vmatpush.bf16.msra.mxu0 %v284
      %314 = vmatpush.bf16.msra.mxu0 %v283
      %315 = vmatpush.bf16.msra.mxu0 %v282
      %316 = vmatpush.bf16.msra.mxu0 %v281
      %317 = vmatmul.bf16.gmra.mxu0 %v227
      %v318 = vpop.f32.mrf.mxu0
      %v319 = vadd.f32 %v231, %v318
      %v320 = vpop.f32.mrf.mxu0
      %v321 = vadd.f32 %v231, %v320
      %322 = vdwg.mxu0
      %323 = vmatpush.bf16.msra.mxu0 0
      %324 = vmatpush.bf16.msra.mxu0 0
      %325 = vmatpush.bf16.msra.mxu0 0
      %326 = vmatpush.bf16.msra.mxu0 0
      %327 = vmatpush.bf16.msra.mxu0 %v292
      %328 = vmatpush.bf16.msra.mxu0 %v291
      %329 = vmatpush.bf16.msra.mxu0 %v290
      %330 = vmatpush.bf16.msra.mxu0 %v289
      %331 = vmatmul.bf16.gmra.mxu0 %v307
      %v332 = vpop.f32.mrf.mxu0
      %v333 = vadd.f32 %v319, %v332
      %v334 = vpop.f32.mrf.mxu0
      %v335 = vadd.f32 %v321, %v334
      %336 = vdwg.mxu0
      %v337 = vld [vmem:[%s3] sm:$0xff]
      %v338 = vld [vmem:[%s3 + $0x8] sm:$0xff]
      %v339 = vadd.f32 %v333, %v337
      %v340 = vadd.f32 %v335, %v338
      %341 = vst.msk [vmem:[%s197] sm:$0xff] %vm305, %v339
      %342 = vst.msk [vmem:[%s197 + $0x8] sm:$0xff] %vm305, %v340
      %p343 = scmp.lt.s32.totalorder %s15, 1
      %s344 = scalar_select %p343, %s15, 1
      %s345 = smul.addr %s344, 2
      %s346 = smul.addr %s345, 8
      %s347 = scalar_lea.vmem %s4, %s346
      // Predicated region
      $region37: #{encode_images.3} parent=35 // pred_check
        %p348 = pneg %p122
      $region38: #{encode_images.3} parent=35 // pred_check_branch
        %350 = sbr.rel (%p348) target = $region40
      $region39: #{encode_images.3} parent=35 // pred_region
        _
      $region40: #{encode_images.3} parent=35 // pred_fallthru
        _
    $region36: #{encode_images.3} parent=5 // pred_fallthru
      _
    %p351 = scmp.le.s32.totalorder 2, %s10
    // Predicated region
    $region41: #{encode_images.3} parent=5 // pred_check
      %p352 = pneg %p351
    $region42: #{encode_images.3} parent=5 // pred_check_branch
      %354 = sbr.rel (%p352) target = $region44
    $region43: #{encode_images.3} parent=5 // pred_region
      %s355 = ssub.s32 %s10, 2
      // Predicated region
      $region45: #{encode_images.3} parent=43 // pred_check
        %p356 = pneg %p128
      $region46: #{encode_images.3} parent=43 // pred_check_branch
        %358 = sbr.rel (%p356) target = $region48
      $region47: #{encode_images.3} parent=43 // pred_region
        %p359 = scmp.lt.s32.totalorder %s16, 1
        %s360 = scalar_select %p359, %s16, 1
        %s361 = smul.addr %s360, 2
        %s362 = smul.addr %s361, 8
        %s363 = scalar_lea.vmem %s4, %s362
      $region48: #{encode_images.3} parent=43 // pred_fallthru
        _
    $region44: #{encode_images.3} parent=5 // pred_fallthru
      _
  $region6: #{encode_images.3} parent=0 // loop_footer
    %s14 = sadd.s32 1, %s10
  $region7: #{encode_images.3} parent=0 // loop_footer_branch
    %9 = sbr.rel target = $region3
  $region8: #{encode_images.3} parent=0 // loop_exit
    _

// kernel: encode_images.4
$region0: #{encode_images.4}
  #allocation0 [shape = 'u32[]', space=smem, size = 0x4, offset = 0x4, fixed_abs, tag = 'smem constant byte address 0x4 - core index']
  #allocation1 [shape = 'u32[72,128]{1,0:T(1,128)}', space=vmem, size = 0x9000, scoped, tag = 'internal scratch']
  %s0 = inlined_call_operand.vmem [shape: f32[2,16,64], index: 0, kind: input, shape index: {}]
  %s1 = inlined_call_operand.vmem [shape: f32[1,64], index: 1, kind: input, shape index: {}]
  %s2 = inlined_call_operand.vmem [shape: f32[1,64], index: 2, kind: input, shape index: {}]
  %s3 = inlined_call_operand.vmem [shape: bf16[64,192], index: 3, kind: input, shape index: {}]
  %s4 = inlined_call_operand.vmem [shape: f32[1,192], index: 4, kind: input, shape index: {}]
  %s5 = inlined_call_operand.vmem [shape: bf16[64,64], index: 5, kind: input, shape index: {}]
  %s6 = inlined_call_operand.vmem [shape: f32[1,64], index: 6, kind: input, shape index: {}]
  %s7 = inlined_call_operand.vmem [shape: f32[1,64], index: 7, kind: input, shape index: {}]
  %s8 = inlined_call_operand.vmem [shape: f32[1,64], index: 8, kind: input, shape index: {}]
  %s9 = inlined_call_operand.vmem [shape: bf16[64,128], index: 9, kind: input, shape index: {}]
  %s10 = inlined_call_operand.vmem [shape: f32[1,128], index: 10, kind: input, shape index: {}]
  %s11 = inlined_call_operand.vmem [shape: bf16[128,64], index: 11, kind: input, shape index: {}]
  %s12 = inlined_call_operand.vmem [shape: f32[1,64], index: 12, kind: input, shape index: {}]
  %s13 = inlined_call_operand.vmem [shape: f32[2,16,64], index: 13, kind: output, shape index: {}]
  %s14 = sld [smem:[#allocation0]]
  $region85: #{encode_images.4} parent=0
    _
  %s16 = ssub.s32 1, %s14
  %s17 = scalar_select 0, %s16, %s14
  loop: start=0, step=1, limit=4
  $region2: #{encode_images.4} parent=0 // loop_pre_header
    _
  $region3: #{encode_images.4} parent=0 // loop_header
    %s19 = sphi 0, %s23
    %p20 = scmp.ge.s32.totalorder %s19, 4
    %s29 = sphi 0, %s31
    %s32 = sphi 0, %s29
    %s33 = sphi 0, %s32
    %s49 = sphi 0, %s33
    %s53 = sphi 0, %s53
    %s55 = sphi 0, %s53
    %s56 = sphi 0, %s55
    %s70 = sphi 0, %s56
    %s74 = sphi 0, %s74
    %s76 = sphi 0, %s74
    %s77 = sphi 0, %s76
    %s91 = sphi 0, %s77
    %s95 = sphi 0, %s95
    %s97 = sphi 0, %s95
    %s98 = sphi 0, %s97
    %s112 = sphi 0, %s98
    %s116 = sphi 0, %s116
    %s118 = sphi 0, %s116
    %s119 = sphi 0, %s118
    %s133 = sphi 0, %s119
    %s137 = sphi 0, %s137
    %s139 = sphi 0, %s137
    %s140 = sphi 0, %s139
    %s154 = sphi 0, %s140
    %s158 = sphi 0, %s158
    %s160 = sphi 0, %s158
    %s161 = sphi 0, %s160
    %s175 = sphi 0, %s161
    %s179 = sphi 0, %s179
    %s181 = sphi 0, %s179
    %s182 = sphi 0, %s181
    %s196 = sphi 0, %s182
    %s200 = sphi 0, %s200
    %s202 = sphi 0, %s200
    %s203 = sphi 0, %s202
    %s217 = sphi 0, %s203
    %s221 = sphi 0, %s221
    %s223 = sphi 0, %s221
    %s224 = sphi 0, %s223
    %s238 = sphi 0, %s224
    %s242 = sphi 0, %s242
    %s244 = sphi 0, %s242
    %s245 = sphi 0, %s244
    %s259 = sphi 0, %s245
    %s263 = sphi 0, %s263
    %s265 = sphi 0, %s263
    %s266 = sphi 0, %s265
    %s280 = sphi 0, %s266
    %s284 = sphi 0, %s284
    %s286 = sphi 0, %s284
    %s287 = sphi 0, %s286
    %s301 = sphi 0, %s287
    %s307 = sphi 0, %s309
    %s310 = sphi 0, %s307
    %s311 = sphi 0, %s310
    %s327 = sphi 0, %s311
  $region4: #{encode_images.4} parent=0 // loop_header_branch
    %22 = sbr.rel (%p20) target = $region8
  $region5: #{encode_images.4} parent=0 // loop_body
    %s24 = ssub.s32 %s19, 1
    %s25 = ssub.s32 %s19, 2
    %s26 = sadd.s32 %s19, 1
    %s27 = ssub.s32 %s19, %s26
    %p28 = scmp.eq.s32.totalorder %s27, 0
    %s30 = sadd.s32 %s29, 1
    %s31 = scalar_select %p28, %s29, %s30
    %p34 = pneg %p28
    %p35 = scmp.eq.s32.totalorder %s19, 1
    %p36 = por %p34, %p35
    %p37 = scmp.ne.s32.totalorder %s29, %s32
    %p38 = scmp.eq.s32.totalorder %s19, 0
    %p39 = por %p37, %p38
    %p40 = scmp.ne.s32.totalorder %s29, %s32
    %p41 = scmp.eq.s32.totalorder %s24, 1
    %p42 = por %p40, %p41
    %p43 = scmp.ne.s32.totalorder %s32, %s33
    %p44 = scmp.eq.s32.totalorder %s24, 0
    %p45 = por %p43, %p44
    %p46 = scmp.ne.s32.totalorder %s32, %s33
    %p47 = scmp.eq.s32.totalorder %s25, 1
    %p48 = por %p46, %p47
    %p50 = scmp.ne.s32.totalorder %s33, %s49
    %p51 = scmp.eq.s32.totalorder %s25, 0
    %p52 = por %p50, %p51
    %s54 = sadd.s32 %s53, 1
    %p57 = scmp.eq.s32.totalorder %s19, 1
    %p58 = scmp.ne.s32.totalorder %s53, %s55
    %p59 = scmp.eq.s32.totalorder %s19, 0
    %p60 = por %p58, %p59
    %p61 = scmp.ne.s32.totalorder %s53, %s55
    %p62 = scmp.eq.s32.totalorder %s24, 1
    %p63 = por %p61, %p62
    %p64 = scmp.ne.s32.totalorder %s55, %s56
    %p65 = scmp.eq.s32.totalorder %s24, 0
    %p66 = por %p64, %p65
    %p67 = scmp.ne.s32.totalorder %s55, %s56
    %p68 = scmp.eq.s32.totalorder %s25, 1
    %p69 = por %p67, %p68
    %p71 = scmp.ne.s32.totalorder %s56, %s70
    %p72 = scmp.eq.s32.totalorder %s25, 0
    %p73 = por %p71, %p72
    %s75 = sadd.s32 %s74, 1
    %p78 = scmp.eq.s32.totalorder %s19, 1
    %p79 = scmp.ne.s32.totalorder %s74, %s76
    %p80 = scmp.eq.s32.totalorder %s19, 0
    %p81 = por %p79, %p80
    %p82 = scmp.ne.s32.totalorder %s74, %s76
    %p83 = scmp.eq.s32.totalorder %s24, 1
    %p84 = por %p82, %p83
    %p85 = scmp.ne.s32.totalorder %s76, %s77
    %p86 = scmp.eq.s32.totalorder %s24, 0
    %p87 = por %p85, %p86
    %p88 = scmp.ne.s32.totalorder %s76, %s77
    %p89 = scmp.eq.s32.totalorder %s25, 1
    %p90 = por %p88, %p89
    %p92 = scmp.ne.s32.totalorder %s77, %s91
    %p93 = scmp.eq.s32.totalorder %s25, 0
    %p94 = por %p92, %p93
    %s96 = sadd.s32 %s95, 1
    %p99 = scmp.eq.s32.totalorder %s19, 1
    %p100 = scmp.ne.s32.totalorder %s95, %s97
    %p101 = scmp.eq.s32.totalorder %s19, 0
    %p102 = por %p100, %p101
    %p103 = scmp.ne.s32.totalorder %s95, %s97
    %p104 = scmp.eq.s32.totalorder %s24, 1
    %p105 = por %p103, %p104
    %p106 = scmp.ne.s32.totalorder %s97, %s98
    %p107 = scmp.eq.s32.totalorder %s24, 0
    %p108 = por %p106, %p107
    %p109 = scmp.ne.s32.totalorder %s97, %s98
    %p110 = scmp.eq.s32.totalorder %s25, 1
    %p111 = por %p109, %p110
    %p113 = scmp.ne.s32.totalorder %s98, %s112
    %p114 = scmp.eq.s32.totalorder %s25, 0
    %p115 = por %p113, %p114
    %s117 = sadd.s32 %s116, 1
    %p120 = scmp.eq.s32.totalorder %s19, 1
    %p121 = scmp.ne.s32.totalorder %s116, %s118
    %p122 = scmp.eq.s32.totalorder %s19, 0
    %p123 = por %p121, %p122
    %p124 = scmp.ne.s32.totalorder %s116, %s118
    %p125 = scmp.eq.s32.totalorder %s24, 1
    %p126 = por %p124, %p125
    %p127 = scmp.ne.s32.totalorder %s118, %s119
    %p128 = scmp.eq.s32.totalorder %s24, 0
    %p129 = por %p127, %p128
    %p130 = scmp.ne.s32.totalorder %s118, %s119
    %p131 = scmp.eq.s32.totalorder %s25, 1
    %p132 = por %p130, %p131
    %p134 = scmp.ne.s32.totalorder %s119, %s133
    %p135 = scmp.eq.s32.totalorder %s25, 0
    %p136 = por %p134, %p135
    %s138 = sadd.s32 %s137, 1
    %p141 = scmp.eq.s32.totalorder %s19, 1
    %p142 = scmp.ne.s32.totalorder %s137, %s139
    %p143 = scmp.eq.s32.totalorder %s19, 0
    %p144 = por %p142, %p143
    %p145 = scmp.ne.s32.totalorder %s137, %s139
    %p146 = scmp.eq.s32.totalorder %s24, 1
    %p147 = por %p145, %p146
    %p148 = scmp.ne.s32.totalorder %s139, %s140
    %p149 = scmp.eq.s32.totalorder %s24, 0
    %p150 = por %p148, %p149
    %p151 = scmp.ne.s32.totalorder %s139, %s140
    %p152 = scmp.eq.s32.totalorder %s25, 1
    %p153 = por %p151, %p152
    %p155 = scmp.ne.s32.totalorder %s140, %s154
    %p156 = scmp.eq.s32.totalorder %s25, 0
    %p157 = por %p155, %p156
    %s159 = sadd.s32 %s158, 1
    %p162 = scmp.eq.s32.totalorder %s19, 1
    %p163 = scmp.ne.s32.totalorder %s158, %s160
    %p164 = scmp.eq.s32.totalorder %s19, 0
    %p165 = por %p163, %p164
    %p166 = scmp.ne.s32.totalorder %s158, %s160
    %p167 = scmp.eq.s32.totalorder %s24, 1
    %p168 = por %p166, %p167
    %p169 = scmp.ne.s32.totalorder %s160, %s161
    %p170 = scmp.eq.s32.totalorder %s24, 0
    %p171 = por %p169, %p170
    %p172 = scmp.ne.s32.totalorder %s160, %s161
    %p173 = scmp.eq.s32.totalorder %s25, 1
    %p174 = por %p172, %p173
    %p176 = scmp.ne.s32.totalorder %s161, %s175
    %p177 = scmp.eq.s32.totalorder %s25, 0
    %p178 = por %p176, %p177
    %s180 = sadd.s32 %s179, 1
    %p183 = scmp.eq.s32.totalorder %s19, 1
    %p184 = scmp.ne.s32.totalorder %s179, %s181
    %p185 = scmp.eq.s32.totalorder %s19, 0
    %p186 = por %p184, %p185
    %p187 = scmp.ne.s32.totalorder %s179, %s181
    %p188 = scmp.eq.s32.totalorder %s24, 1
    %p189 = por %p187, %p188
    %p190 = scmp.ne.s32.totalorder %s181, %s182
    %p191 = scmp.eq.s32.totalorder %s24, 0
    %p192 = por %p190, %p191
    %p193 = scmp.ne.s32.totalorder %s181, %s182
    %p194 = scmp.eq.s32.totalorder %s25, 1
    %p195 = por %p193, %p194
    %p197 = scmp.ne.s32.totalorder %s182, %s196
    %p198 = scmp.eq.s32.totalorder %s25, 0
    %p199 = por %p197, %p198
    %s201 = sadd.s32 %s200, 1
    %p204 = scmp.eq.s32.totalorder %s19, 1
    %p205 = scmp.ne.s32.totalorder %s200, %s202
    %p206 = scmp.eq.s32.totalorder %s19, 0
    %p207 = por %p205, %p206
    %p208 = scmp.ne.s32.totalorder %s200, %s202
    %p209 = scmp.eq.s32.totalorder %s24, 1
    %p210 = por %p208, %p209
    %p211 = scmp.ne.s32.totalorder %s202, %s203
    %p212 = scmp.eq.s32.totalorder %s24, 0
    %p213 = por %p211, %p212
    %p214 = scmp.ne.s32.totalorder %s202, %s203
    %p215 = scmp.eq.s32.totalorder %s25, 1
    %p216 = por %p214, %p215
    %p218 = scmp.ne.s32.totalorder %s203, %s217
    %p219 = scmp.eq.s32.totalorder %s25, 0
    %p220 = por %p218, %p219
    %s222 = sadd.s32 %s221, 1
    %p225 = scmp.eq.s32.totalorder %s19, 1
    %p226 = scmp.ne.s32.totalorder %s221, %s223
    %p227 = scmp.eq.s32.totalorder %s19, 0
    %p228 = por %p226, %p227
    %p229 = scmp.ne.s32.totalorder %s221, %s223
    %p230 = scmp.eq.s32.totalorder %s24, 1
    %p231 = por %p229, %p230
    %p232 = scmp.ne.s32.totalorder %s223, %s224
    %p233 = scmp.eq.s32.totalorder %s24, 0
    %p234 = por %p232, %p233
    %p235 = scmp.ne.s32.totalorder %s223, %s224
    %p236 = scmp.eq.s32.totalorder %s25, 1
    %p237 = por %p235, %p236
    %p239 = scmp.ne.s32.totalorder %s224, %s238
    %p240 = scmp.eq.s32.totalorder %s25, 0
    %p241 = por %p239, %p240
    %s243 = sadd.s32 %s242, 1
    %p246 = scmp.eq.s32.totalorder %s19, 1
    %p247 = scmp.ne.s32.totalorder %s242, %s244
    %p248 = scmp.eq.s32.totalorder %s19, 0
    %p249 = por %p247, %p248
    %p250 = scmp.ne.s32.totalorder %s242, %s244
    %p251 = scmp.eq.s32.totalorder %s24, 1
    %p252 = por %p250, %p251
    %p253 = scmp.ne.s32.totalorder %s244, %s245
    %p254 = scmp.eq.s32.totalorder %s24, 0
    %p255 = por %p253, %p254
    %p256 = scmp.ne.s32.totalorder %s244, %s245
    %p257 = scmp.eq.s32.totalorder %s25, 1
    %p258 = por %p256, %p257
    %p260 = scmp.ne.s32.totalorder %s245, %s259
    %p261 = scmp.eq.s32.totalorder %s25, 0
    %p262 = por %p260, %p261
    %s264 = sadd.s32 %s263, 1
    %p267 = scmp.eq.s32.totalorder %s19, 1
    %p268 = scmp.ne.s32.totalorder %s263, %s265
    %p269 = scmp.eq.s32.totalorder %s19, 0
    %p270 = por %p268, %p269
    %p271 = scmp.ne.s32.totalorder %s263, %s265
    %p272 = scmp.eq.s32.totalorder %s24, 1
    %p273 = por %p271, %p272
    %p274 = scmp.ne.s32.totalorder %s265, %s266
    %p275 = scmp.eq.s32.totalorder %s24, 0
    %p276 = por %p274, %p275
    %p277 = scmp.ne.s32.totalorder %s265, %s266
    %p278 = scmp.eq.s32.totalorder %s25, 1
    %p279 = por %p277, %p278
    %p281 = scmp.ne.s32.totalorder %s266, %s280
    %p282 = scmp.eq.s32.totalorder %s25, 0
    %p283 = por %p281, %p282
    %s285 = sadd.s32 %s284, 1
    %p288 = scmp.eq.s32.totalorder %s19, 1
    %p289 = scmp.ne.s32.totalorder %s284, %s286
    %p290 = scmp.eq.s32.totalorder %s19, 0
    %p291 = por %p289, %p290
    %p292 = scmp.ne.s32.totalorder %s284, %s286
    %p293 = scmp.eq.s32.totalorder %s24, 1
    %p294 = por %p292, %p293
    %p295 = scmp.ne.s32.totalorder %s286, %s287
    %p296 = scmp.eq.s32.totalorder %s24, 0
    %p297 = por %p295, %p296
    %p298 = scmp.ne.s32.totalorder %s286, %s287
    %p299 = scmp.eq.s32.totalorder %s25, 1
    %p300 = por %p298, %p299
    %p302 = scmp.ne.s32.totalorder %s287, %s301
    %p303 = scmp.eq.s32.totalorder %s25, 0
    %p304 = por %p302, %p303
    %s305 = ssub.s32 %s19, %s26
    %p306 = scmp.eq.s32.totalorder %s305, 0
    %s308 = sadd.s32 %s307, 1
    %s309 = scalar_select %p306, %s307, %s308
    %p312 = pneg %p306
    %p313 = scmp.eq.s32.totalorder %s19, 1
    %p314 = por %p312, %p313
    %p315 = scmp.ne.s32.totalorder %s307, %s310
    %p316 = scmp.eq.s32.totalorder %s19, 0
    %p317 = por %p315, %p316
    %p318 = scmp.ne.s32.totalorder %s307, %s310
    %p319 = scmp.eq.s32.totalorder %s24, 1
    %p320 = por %p318, %p319
    %p321 = scmp.ne.s32.totalorder %s310, %s311
    %p322 = scmp.eq.s32.totalorder %s24, 0
    %p323 = por %p321, %p322
    %p324 = scmp.ne.s32.totalorder %s310, %s311
    %p325 = scmp.eq.s32.totalorder %s25, 1
    %p326 = por %p324, %p325
    %p328 = scmp.ne.s32.totalorder %s311, %s327
    %p329 = scmp.eq.s32.totalorder %s25, 0
    %p330 = por %p328, %p329
    %p331 = scmp.le.s32.totalorder 1, %s19
    %p332 = scmp.lt.s32.totalorder %s19, 3
    %p333 = pnand %p331, %p332
    %p334 = pneg %p333
    // Predicated region
    $region9: #{encode_images.4} parent=5 // pred_check
      _
    $region10: #{encode_images.4} parent=5 // pred_check_branch
      %336 = sbr.rel (%p333) target = $region12
    $region11: #{encode_images.4} parent=5 // pred_region
      %s337 = ssub.s32 %s19, 1
      // Predicated region
      $region13: #{encode_images.4} parent=11 // pred_check
        %p338 = pneg %p66
      $region14: #{encode_images.4} parent=11 // pred_check_branch
        %340 = sbr.rel (%p338) target = $region16
      $region15: #{encode_images.4} parent=11 // pred_region
        _
      $region16: #{encode_images.4} parent=11 // pred_fallthru
        _
      // Predicated region
      $region17: #{encode_images.4} parent=11 // pred_check
        %p341 = pneg %p87
      $region18: #{encode_images.4} parent=11 // pred_check_branch
        %343 = sbr.rel (%p341) target = $region20
      $region19: #{encode_images.4} parent=11 // pred_region
        _
      $region20: #{encode_images.4} parent=11 // pred_fallthru
        _
      // Predicated region
      $region21: #{encode_images.4} parent=11 // pred_check
        %p344 = pneg %p108
      $region22: #{encode_images.4} parent=11 // pred_check_branch
        %346 = sbr.rel (%p344) target = $region24
      $region23: #{encode_images.4} parent=11 // pred_region
        _
      $region24: #{encode_images.4} parent=11 // pred_fallthru
        _
      // Predicated region
      $region25: #{encode_images.4} parent=11 // pred_check
        %p347 = pneg %p129
      $region26: #{encode_images.4} parent=11 // pred_check_branch
        %349 = sbr.rel (%p347) target = $region28
      $region27: #{encode_images.4} parent=11 // pred_region
        _
      $region28: #{encode_images.4} parent=11 // pred_fallthru
        _
      // Predicated region
      $region29: #{encode_images.4} parent=11 // pred_check
        %p350 = pneg %p150
      $region30: #{encode_images.4} parent=11 // pred_check_branch
        %352 = sbr.rel (%p350) target = $region32
      $region31: #{encode_images.4} parent=11 // pred_region
        _
      $region32: #{encode_images.4} parent=11 // pred_fallthru
        _
      // Predicated region
      $region33: #{encode_images.4} parent=11 // pred_check
        %p353 = pneg %p171
      $region34: #{encode_images.4} parent=11 // pred_check_branch
        %355 = sbr.rel (%p353) target = $region36
      $region35: #{encode_images.4} parent=11 // pred_region
        _
      $region36: #{encode_images.4} parent=11 // pred_fallthru
        _
      // Predicated region
      $region37: #{encode_images.4} parent=11 // pred_check
        %p356 = pneg %p192
      $region38: #{encode_images.4} parent=11 // pred_check_branch
        %358 = sbr.rel (%p356) target = $region40
      $region39: #{encode_images.4} parent=11 // pred_region
        _
      $region40: #{encode_images.4} parent=11 // pred_fallthru
        _
      // Predicated region
      $region41: #{encode_images.4} parent=11 // pred_check
        %p359 = pneg %p213
      $region42: #{encode_images.4} parent=11 // pred_check_branch
        %361 = sbr.rel (%p359) target = $region44
      $region43: #{encode_images.4} parent=11 // pred_region
        _
      $region44: #{encode_images.4} parent=11 // pred_fallthru
        _
      // Predicated region
      $region45: #{encode_images.4} parent=11 // pred_check
        %p362 = pneg %p234
      $region46: #{encode_images.4} parent=11 // pred_check_branch
        %364 = sbr.rel (%p362) target = $region48
      $region47: #{encode_images.4} parent=11 // pred_region
        _
      $region48: #{encode_images.4} parent=11 // pred_fallthru
        _
      // Predicated region
      $region49: #{encode_images.4} parent=11 // pred_check
        %p365 = pneg %p255
      $region50: #{encode_images.4} parent=11 // pred_check_branch
        %367 = sbr.rel (%p365) target = $region52
      $region51: #{encode_images.4} parent=11 // pred_region
        _
      $region52: #{encode_images.4} parent=11 // pred_fallthru
        _
      // Predicated region
      $region53: #{encode_images.4} parent=11 // pred_check
        %p368 = pneg %p276
      $region54: #{encode_images.4} parent=11 // pred_check_branch
        %370 = sbr.rel (%p368) target = $region56
      $region55: #{encode_images.4} parent=11 // pred_region
        _
      $region56: #{encode_images.4} parent=11 // pred_fallthru
        _
      // Predicated region
      $region57: #{encode_images.4} parent=11 // pred_check
        %p371 = pneg %p297
      $region58: #{encode_images.4} parent=11 // pred_check_branch
        %373 = sbr.rel (%p371) target = $region60
      $region59: #{encode_images.4} parent=11 // pred_region
        _
      $region60: #{encode_images.4} parent=11 // pred_fallthru
        _
    $region12: #{encode_images.4} parent=5 // pred_fallthru
      _
    %p374 = scmp.lt.s32.totalorder %s19, 2
    // Predicated region
    $region61: #{encode_images.4} parent=5 // pred_check
      %p375 = pneg %p374
    $region62: #{encode_images.4} parent=5 // pred_check_branch
      %377 = sbr.rel (%p375) target = $region64
    $region63: #{encode_images.4} parent=5 // pred_region
      // Predicated region
      $region65: #{encode_images.4} parent=63 // pred_check
        %p378 = pneg %p39
      $region66: #{encode_images.4} parent=63 // pred_check_branch
        %380 = sbr.rel (%p378) target = $region68
      $region67: #{encode_images.4} parent=63 // pred_region
        %p381 = scmp.lt.s32.totalorder %s19, 1
        %s382 = scalar_select %p381, %s19, 1
        %s383 = smul.addr %s382, 2
        %s384 = smul.addr %s383, 8
        %s385 = scalar_lea.vmem %s0, %s384
      $region68: #{encode_images.4} parent=63 // pred_fallthru
        _
    $region64: #{encode_images.4} parent=5 // pred_fallthru
      _
    %p386 = scmp.le.s32.totalorder 1, %s19
    %p387 = scmp.lt.s32.totalorder %s19, 3
    %p388 = pnand %p386, %p387
    %p389 = pneg %p388
    // Predicated region
    $region69: #{encode_images.4} parent=5 // pred_check
      _
    $region70: #{encode_images.4} parent=5 // pred_check_branch
      %391 = sbr.rel (%p388) target = $region72
    $region71: #{encode_images.4} parent=5 // pred_region
      %s392 = ssub.s32 %s19, 1
      %p393 = scmp.lt.s32.totalorder %s24, 1
      %s394 = scalar_select %p393, %s24, 1
      %s395 = smul.addr %s394, 2
      %s396 = smul.addr %s395, 8
      %s397 = scalar_lea.vmem %s0, %s396
      %p398 = pneg %p45
      %p399 = pneg %p42
      %p400 = pneg %p66
      %p401 = pneg %p63
      %p402 = pneg %p87
      %p403 = pneg %p84
      %p404 = pneg %p108
      %p405 = pneg %p105
      %p406 = pneg %p129
      %p407 = pneg %p126
      %p408 = pneg %p150
      %p409 = pneg %p147
      %p410 = pneg %p171
      %p411 = pneg %p168
      %p412 = pneg %p192
      %p413 = pneg %p189
      %p414 = pneg %p213
      %p415 = pneg %p210
      %p416 = pneg %p234
      %p417 = pneg %p231
      %p418 = pneg %p255
      %p419 = pneg %p252
      %p420 = pneg %p276
      %p421 = pneg %p273
      %p422 = pneg %p297
      %p423 = pneg %p294
      %p424 = pneg %p323
      %p425 = pneg %p320
      %p426 = scmp.lt.s32.totalorder %s24, 1
      %s427 = scalar_select %p426, %s24, 1
      %s428 = smul.addr %s427, 2
      %s429 = smul.addr %s428, 8
      %s430 = scalar_lea.vmem %s13, %s429
      %p431 = scmp.lt.s32.totalorder %s24, 1
      %s432 = scalar_select %p431, %s24, 1
      %s433 = smul.addr %s432, 2
      %s434 = smul.addr %s433, 8
      %s435 = scalar_lea.vmem %s0, %s434
      %p436 = scmp.lt.s32.totalorder %s24, 1
      %s437 = scalar_select %p436, %s24, 1
      %s438 = smul.addr %s437, 2
      %s439 = smul.addr %s438, 8
      %s440 = scalar_lea.vmem %s13, %s439
      %v442 = vld [vmem:[%s435] sm:$0xff]
      %v443 = vld [vmem:[%s435 + $0x8] sm:$0xff]
      %v444 = vld [vmem:[%s1] sm:$0x1]
      %v445 = vld [vmem:[%s2] sm:$0x1]
      %vm446 = vcmask 523264
      %v447 = vsel %vm446, %v442, 0.0
      %448 = vadd.xlane.f32.xlu0 %v447
      %v449 = vpop.xlane.xlu0 %448
      %v450 = vsel %vm446, %v443, 0.0
      %451 = vadd.xlane.f32.xlu0 %v450
      %v452 = vpop.xlane.xlu0 %451
      %v453 = vrcp.pop 64.0
      %v454 = vmul.f32 64.0, %v453
      %v455 = vsub.f32 1.0, %v454
      %v456 = vmul.f32 %v453, %v455
      %v457 = vadd.f32 %v453, %v456
      %vm458 = vweird.f32 %v453
      %v459 = vsel %vm458, %v453, %v457
      %v460 = vmul.f32 %v449, %v459
      %v461 = vmul.f32 %v452, %v459
      %v462 = vsub.f32 %v442, %v460
      %v463 = vsub.f32 %v443, %v461
      %v464 = vmul.f32 %v462, %v462
      %v465 = vmul.f32 %v463, %v463
      %v466 = vsel %vm446, %v464, 0.0
      %467 = vadd.xlane.f32.xlu0 %v466
      %v468 = vpop.xlane.xlu0 %467
      %v469 = vsel %vm446, %v465, 0.0
      %470 = vadd.xlane.f32.xlu0 %v469
      %v471 = vpop.xlane.xlu0 %470
      %v472 = vmul.f32 %v468, %v459
      %v473 = vmul.f32 %v471, %v459
      %v474 = vadd.f32 %v472, 1e-06
      %v475 = vadd.f32 %v473, 1e-06
      %v476 = vrsqrt.pop %v474
      %v477 = vmul.f32 %v476, %v474
      %v478 = vmul.f32 %v477, %v476
      %v479 = vmul.f32 0.5, %v478
      %v480 = vsub.f32 1.5, %v479
      %v481 = vmul.f32 %v476, %v480
      %vm482 = vweird.f32 %v474
      %vm483 = vweird.f32 %v476
      %vm484 = vmor %vm482, %vm483
      %v485 = vsel %vm484, %v476, %v481
      %v486 = vrsqrt.pop %v475
      %v487 = vmul.f32 %v486, %v475
      %v488 = vmul.f32 %v487, %v486
      %v489 = vmul.f32 0.5, %v488
      %v490 = vsub.f32 1.5, %v489
      %v491 = vmul.f32 %v486, %v490
      %vm492 = vweird.f32 %v475
      %vm493 = vweird.f32 %v486
      %vm494 = vmor %vm492, %vm493
      %v495 = vsel %vm494, %v486, %v491
      %v496 = vmul.f32 %v462, %v485
      %v497 = vmul.f32 %v463, %v495
      %v499 = vperm.slane %v444, 0
      %v501 = vmul.f32 %v496, %v499
      %v502 = vmul.f32 %v497, %v499
      %v504 = vperm.slane %v445, 0
      %v506 = vadd.f32 %v501, %v504
      %v507 = vadd.f32 %v502, %v504
      %v508 = vld [vmem:[%s3] sm:$0xff]
      %v509 = vld [vmem:[%s3 + $0x8] sm:$0xff]
      %v510 = vld [vmem:[%s3 + $0x10] sm:$0xff]
      %v511 = vld [vmem:[%s3 + $0x18] sm:$0xff]
      %v512 = vld [vmem:[%s3 + $0x20] sm:$0xff]
      %v513 = vld [vmem:[%s3 + $0x28] sm:$0xff]
      %v514 = vld [vmem:[%s3 + $0x30] sm:$0xff]
      %v515 = vld [vmem:[%s3 + $0x38] sm:$0xff]
      %v516 = vpack.c.bf16 %v507, %v506
      %v517 = vld [vmem:[%s4] sm:$0x3]
      %v519 = vperm.slane %v517, 0
      %v520 = vperm.slane %v517, 1
      %v531 = vunpack.c.l.b16 %v508
      %v532 = vunpack.c.h.b16 %v508
      %v533 = vunpack.c.l.b16 %v509
      %v534 = vunpack.c.h.b16 %v509
      %v535 = vunpack.c.l.b16 %v510
      %v536 = vunpack.c.h.b16 %v510
      %v537 = vunpack.c.l.b16 %v511
      %v538 = vunpack.c.h.b16 %v511
      %v539 = vunpack.c.l.b16 %v512
      %v540 = vunpack.c.h.b16 %v512
      %v541 = vunpack.c.l.b16 %v513
      %v542 = vunpack.c.h.b16 %v513
      %v543 = vunpack.c.l.b16 %v514
      %v544 = vunpack.c.h.b16 %v514
      %v545 = vunpack.c.l.b16 %v515
      %v546 = vunpack.c.h.b16 %v515
      %v547 = vpack.c.b16 %v533, %v531
      %v548 = vpack.c.b16 %v534, %v532
      %v549 = vpack.c.b16 %v537, %v535
      %v550 = vpack.c.b16 %v538, %v536
      %v551 = vpack.c.b16 %v541, %v539
      %v552 = vpack.c.b16 %v542, %v540
      %v553 = vpack.c.b16 %v545, %v543
      %v554 = vpack.c.b16 %v546, %v544
      %v564 = vsel %vm446, %v516, 0
      %566 = vmatpush.bf16.msra.mxu0 0
      %567 = vmatpush.bf16.msra.mxu0 0
      %568 = vmatpush.bf16.msra.mxu0 0
      %569 = vmatpush.bf16.msra.mxu0 0
      %570 = vmatpush.bf16.msra.mxu0 %v553
      %571 = vmatpush.bf16.msra.mxu0 %v551
      %572 = vmatpush.bf16.msra.mxu0 %v549
      %573 = vmatpush.bf16.msra.mxu0 %v547
      %574 = vmatmul.bf16.gmra.mxu0 %v564
      %v575 = vpop.f32.mrf.mxu0
      %v576 = vadd.f32 %v519, %v575
      %v577 = vpop.f32.mrf.mxu0
      %v578 = vadd.f32 %v519, %v577
      %579 = vdwg.mxu0
      %580 = vmatpush.bf16.msra.mxu0 0
      %581 = vmatpush.bf16.msra.mxu0 0
      %582 = vmatpush.bf16.msra.mxu0 0
      %583 = vmatpush.bf16.msra.mxu0 0
      %584 = vmatpush.bf16.msra.mxu0 %v554
      %585 = vmatpush.bf16.msra.mxu0 %v552
      %586 = vmatpush.bf16.msra.mxu0 %v550
      %587 = vmatpush.bf16.msra.mxu0 %v548
      %588 = vmatmul.bf16.gmra.mxu0 %v564
      %v589 = vpop.f32.mrf.mxu0
      %v590 = vadd.f32 %v520, %v589
      %v591 = vpop.f32.mrf.mxu0
      %v592 = vadd.f32 %v520, %v591
      %593 = vdwg.mxu0
      %v594 = vmul.f32 %v576, 0.17677669
      %v595 = vmul.f32 %v578, 0.17677669
      %v596 = vpack.c.bf16 %v595, %v594
      %v597 = vpack.c.bf16 %v578, %v576
      %v598 = vpack.c.bf16 %v592, %v590
      %600 = vrot.lane.b32.xlu0 %v597, 64
      %v601 = vpop.permute.xlu0 %600
      %vm602 = vcmask 261120
      %v604 = vsel %vm602, %v596, 0
      %v607 = vsel %vm602, %v601, 0
      %609 = vmatpush.bf16.xpose.msra.mxu0 0
      %610 = vmatpush.bf16.xpose.msra.mxu0 0
      %611 = vmatpush.bf16.xpose.msra.mxu0 0
      %612 = vmatpush.bf16.xpose.msra.mxu0 0
      %613 = vmatpush.bf16.xpose.msra.mxu0 0
      %614 = vmatpush.bf16.xpose.msra.mxu0 0
      %615 = vmatpush.bf16.xpose.msra.mxu0 0
      %616 = vmatpush.bf16.xpose.msra.mxu0 %v607
      %617 = vmatmul.bf16.gmra.mxu0 %v604
      %v618 = vpop.f32.mrf.mxu0
      %v619 = vadd.f32 0.0, %v618
      %v620 = vpop.f32.mrf.mxu0
      %v621 = vadd.f32 0.0, %v620
      %622 = vdwg.mxu0
      %vm623 = vcmask 130048
      %v624 = vsel %vm623, %v619, -inf
      %625 = vmax.xlane.f32.xlu0 %v624
      %v626 = vpop.xlane.xlu0 %625
      %v627 = vsel %vm623, %v621, -inf
      %628 = vmax.xlane.f32.xlu0 %v627
      %v629 = vpop.xlane.xlu0 %628
      %v630 = vsub.f32 %v619, %v626
      %v631 = vsub.f32 %v621, %v629
      %v632 = vmul.f32 %v630, 1.442695
      %v633 = vpow.pop %v632
      %v634 = vmul.f32 %v631, 1.442695
      %v635 = vpow.pop %v634
      %v636 = vsel %vm623, %v633, 0.0
      %637 = vadd.xlane.f32.xlu0 %v636
      %v638 = vpop.xlane.xlu0 %637
      %v639 = vsel %vm623, %v635, 0.0
      %640 = vadd.xlane.f32.xlu0 %v639
      %v641 = vpop.xlane.xlu0 %640
      %v642 = vrcp.pop %v638
      %v643 = vrcp.pop %v641
      %v644 = vmul.f32 %v633, %v642
      %v645 = vmul.f32 %v635, %v643
      %v646 = vpack.c.bf16 %v645, %v644
      %v648 = vsel %vm623, %v646, 0
      %650 = vmatpush.bf16.msra.mxu0 0
      %651 = vmatpush.bf16.msra.mxu0 0
      %652 = vmatpush.bf16.msra.mxu0 0
      %653 = vmatpush.bf16.msra.mxu0 0
      %654 = vmatpush.bf16.msra.mxu0 0
      %655 = vmatpush.bf16.msra.mxu0 0
      %656 = vmatpush.bf16.msra.mxu0 0
      %657 = vmatpush.bf16.msra.mxu0 %v598
      %658 = vmatmul.bf16.gmra.mxu0 %v648
      %v659 = vpop.f32.mrf.mxu0
      %v660 = vadd.f32 0.0, %v659
      %v661 = vpop.f32.mrf.mxu0
      %v662 = vadd.f32 0.0, %v661
      %663 = vdwg.mxu0
      %665 = vrot.lane.b32.xlu0 %v596, 96
      %v666 = vpop.permute.xlu0 %665
      %667 = vrot.lane.b32.xlu0 %v597, 32
      %v668 = vpop.permute.xlu0 %667
      %v670 = vsel %vm602, %v666, 0
      %v673 = vsel %vm602, %v668, 0
      %675 = vmatpush.bf16.xpose.msra.mxu0 0
      %676 = vmatpush.bf16.xpose.msra.mxu0 0
      %677 = vmatpush.bf16.xpose.msra.mxu0 0
      %678 = vmatpush.bf16.xpose.msra.mxu0 0
      %679 = vmatpush.bf16.xpose.msra.mxu0 0
      %680 = vmatpush.bf16.xpose.msra.mxu0 0
      %681 = vmatpush.bf16.xpose.msra.mxu0 0
      %682 = vmatpush.bf16.xpose.msra.mxu0 %v673
      %683 = vmatmul.bf16.gmra.mxu0 %v670
      %v684 = vpop.f32.mrf.mxu0
      %v685 = vadd.f32 0.0, %v684
      %v686 = vpop.f32.mrf.mxu0
      %v687 = vadd.f32 0.0, %v686
      %688 = vdwg.mxu0
      %v689 = vsel %vm623, %v685, -inf
      %690 = vmax.xlane.f32.xlu0 %v689
      %v691 = vpop.xlane.xlu0 %690
      %v692 = vsel %vm623, %v687, -inf
      %693 = vmax.xlane.f32.xlu0 %v692
      %v694 = vpop.xlane.xlu0 %693
      %v695 = vsub.f32 %v685, %v691
      %v696 = vsub.f32 %v687, %v694
      %v697 = vmul.f32 %v695, 1.442695
      %v698 = vpow.pop %v697
      %v699 = vmul.f32 %v696, 1.442695
      %v700 = vpow.pop %v699
      %v701 = vsel %vm623, %v698, 0.0
      %702 = vadd.xlane.f32.xlu0 %v701
      %v703 = vpop.xlane.xlu0 %702
      %v704 = vsel %vm623, %v700, 0.0
      %705 = vadd.xlane.f32.xlu0 %v704
      %v706 = vpop.xlane.xlu0 %705
      %v707 = vrcp.pop %v703
      %v708 = vrcp.pop %v706
      %v709 = vmul.f32 %v698, %v707
      %v710 = vmul.f32 %v700, %v708
      %v711 = vpack.c.bf16 %v710, %v709
      %713 = vrot.lane.b32.xlu0 %v598, 96
      %v714 = vpop.permute.xlu0 %713
      %v717 = vsel %vm623, %v711, 0
      %719 = vmatpush.bf16.msra.mxu0 0
      %720 = vmatpush.bf16.msra.mxu0 0
      %721 = vmatpush.bf16.msra.mxu0 0
      %722 = vmatpush.bf16.msra.mxu0 0
      %723 = vmatpush.bf16.msra.mxu0 0
      %724 = vmatpush.bf16.msra.mxu0 0
      %725 = vmatpush.bf16.msra.mxu0 0
      %726 = vmatpush.bf16.msra.mxu0 %v714
      %727 = vmatmul.bf16.gmra.mxu0 %v717
      %v728 = vpop.f32.mrf.mxu0
      %v729 = vadd.f32 0.0, %v728
      %v730 = vpop.f32.mrf.mxu0
      %v731 = vadd.f32 0.0, %v730
      %732 = vdwg.mxu0
      %735 = vrot.lane.b32.xlu0 %v729, 32
      %v736 = vpop.permute.xlu0 %735
      %737 = vrot.lane.b32.xlu0 %v731, 32
      %v738 = vpop.permute.xlu0 %737
      %v741 = vsel %vm602, %v660, %v736
      %v742 = vsel %vm602, %v662, %v738
      %v743 = vld [vmem:[%s5] sm:$0xf]
      %v744 = vld [vmem:[%s5 + $0x4] sm:$0xf]
      %v745 = vld [vmem:[%s5 + $0x8] sm:$0xf]
      %v746 = vld [vmem:[%s5 + $0xc] sm:$0xf]
      %v747 = vld [vmem:[%s5 + $0x10] sm:$0xf]
      %v748 = vld [vmem:[%s5 + $0x14] sm:$0xf]
      %v749 = vld [vmem:[%s5 + $0x18] sm:$0xf]
      %v750 = vld [vmem:[%s5 + $0x1c] sm:$0xf]
      %v751 = vpack.c.bf16 %v742, %v741
      %v760 = vunpack.c.l.b16 %v743
      %v761 = vunpack.c.l.b16 %v744
      %v762 = vunpack.c.l.b16 %v745
      %v763 = vunpack.c.l.b16 %v746
      %v764 = vunpack.c.l.b16 %v747
      %v765 = vunpack.c.l.b16 %v748
      %v766 = vunpack.c.l.b16 %v749
      %v767 = vunpack.c.l.b16 %v750
      %v768 = vpack.c.b16 %v761, %v760
      %v769 = vpack.c.b16 %v763, %v762
      %v770 = vpack.c.b16 %v765, %v764
      %v771 = vpack.c.b16 %v767, %v766
      %v777 = vsel %vm446, %v751, 0
      %779 = vmatpush.bf16.msra.mxu0 0
      %780 = vmatpush.bf16.msra.mxu0 0
      %781 = vmatpush.bf16.msra.mxu0 0
      %782 = vmatpush.bf16.msra.mxu0 0
      %783 = vmatpush.bf16.msra.mxu0 %v771
      %784 = vmatpush.bf16.msra.mxu0 %v770
      %785 = vmatpush.bf16.msra.mxu0 %v769
      %786 = vmatpush.bf16.msra.mxu0 %v768
      %787 = vmatmul.bf16.gmra.mxu0 %v777
      %v788 = vpop.f32.mrf.mxu0
      %v789 = vadd.f32 0.0, %v788
      %v790 = vpop.f32.mrf.mxu0
      %v791 = vadd.f32 0.0, %v790
      %792 = vdwg.mxu0
      %v793 = vadd.f32 %v442, %v789
      %v794 = vadd.f32 %v443, %v791
      %v795 = vld [vmem:[%s6] sm:$0x1]
      %v797 = vperm.slane %v795, 0
      %v799 = vadd.f32 %v793, %v797
      %v800 = vadd.f32 %v794, %v797
      %v801 = vld [vmem:[%s7] sm:$0x1]
      %v802 = vld [vmem:[%s8] sm:$0x1]
      %v803 = vsel %vm446, %v799, 0.0
      %804 = vadd.xlane.f32.xlu0 %v803
      %v805 = vpop.xlane.xlu0 %804
      %v806 = vsel %vm446, %v800, 0.0
      %807 = vadd.xlane.f32.xlu0 %v806
      %v808 = vpop.xlane.xlu0 %807
      %v809 = vmul.f32 %v805, %v459
      %v810 = vmul.f32 %v808, %v459
      %v811 = vsub.f32 %v799, %v809
      %v812 = vsub.f32 %v800, %v810
      %v813 = vmul.f32 %v811, %v811
      %v814 = vmul.f32 %v812, %v812
      %v815 = vsel %vm446, %v813, 0.0
      %816 = vadd.xlane.f32.xlu0 %v815
      %v817 = vpop.xlane.xlu0 %816
      %v818 = vsel %vm446, %v814, 0.0
      %819 = vadd.xlane.f32.xlu0 %v818
      %v820 = vpop.xlane.xlu0 %819
      %v821 = vmul.f32 %v817, %v459
      %v822 = vmul.f32 %v820, %v459
      %v823 = vadd.f32 %v821, 1e-06
      %v824 = vadd.f32 %v822, 1e-06
      %v825 = vrsqrt.pop %v823
      %v826 = vmul.f32 %v825, %v823
      %v827 = vmul.f32 %v826, %v825
      %v828 = vmul.f32 0.5, %v827
      %v829 = vsub.f32 1.5, %v828
      %v830 = vmul.f32 %v825, %v829
      %vm831 = vweird.f32 %v823
      %vm832 = vweird.f32 %v825
      %vm833 = vmor %vm831, %vm832
      %v834 = vsel %vm833, %v825, %v830
      %v835 = vrsqrt.pop %v824
      %v836 = vmul.f32 %v835, %v824
      %v837 = vmul.f32 %v836, %v835
      %v838 = vmul.f32 0.5, %v837
      %v839 = vsub.f32 1.5, %v838
      %v840 = vmul.f32 %v835, %v839
      %vm841 = vweird.f32 %v824
      %vm842 = vweird.f32 %v835
      %vm843 = vmor %vm841, %vm842
      %v844 = vsel %vm843, %v835, %v840
      %v845 = vmul.f32 %v811, %v834
      %v846 = vmul.f32 %v812, %v844
      %v848 = vperm.slane %v801, 0
      %v850 = vmul.f32 %v845, %v848
      %v851 = vmul.f32 %v846, %v848
      %v853 = vperm.slane %v802, 0
      %v855 = vadd.f32 %v850, %v853
      %v856 = vadd.f32 %v851, %v853
      %v857 = vld [vmem:[%s9] sm:$0xf]
      %v858 = vld [vmem:[%s9 + $0x4] sm:$0xf]
      %v859 = vld [vmem:[%s9 + $0x8] sm:$0xf]
      %v860 = vld [vmem:[%s9 + $0xc] sm:$0xf]
      %v861 = vld [vmem:[%s9 + $0x10] sm:$0xf]
      %v862 = vld [vmem:[%s9 + $0x14] sm:$0xf]
      %v863 = vld [vmem:[%s9 + $0x18] sm:$0xf]
      %v864 = vld [vmem:[%s9 + $0x1c] sm:$0xf]
      %v865 = vpack.c.bf16 %v856, %v855
      %v866 = vld [vmem:[%s10] sm:$0x1]
      %v868 = vperm.slane %v866, 0
      %v878 = vunpack.c.l.b16 %v857
      %v879 = vunpack.c.l.b16 %v858
      %v880 = vunpack.c.l.b16 %v859
      %v881 = vunpack.c.l.b16 %v860
      %v882 = vunpack.c.l.b16 %v861
      %v883 = vunpack.c.l.b16 %v862
      %v884 = vunpack.c.l.b16 %v863
      %v885 = vunpack.c.l.b16 %v864
      %v886 = vpack.c.b16 %v879, %v878
      %v887 = vpack.c.b16 %v881, %v880
      %v888 = vpack.c.b16 %v883, %v882
      %v889 = vpack.c.b16 %v885, %v884
      %v895 = vsel %vm446, %v865, 0
      %897 = vmatpush.bf16.msra.mxu0 0
      %898 = vmatpush.bf16.msra.mxu0 0
      %899 = vmatpush.bf16.msra.mxu0 0
      %900 = vmatpush.bf16.msra.mxu0 0
      %901 = vmatpush.bf16.msra.mxu0 %v889
      %902 = vmatpush.bf16.msra.mxu0 %v888
      %903 = vmatpush.bf16.msra.mxu0 %v887
      %904 = vmatpush.bf16.msra.mxu0 %v886
      %905 = vmatmul.bf16.gmra.mxu0 %v895
      %v906 = vpop.f32.mrf.mxu0
      %v907 = vadd.f32 %v868, %v906
      %v908 = vpop.f32.mrf.mxu0
      %v909 = vadd.f32 %v868, %v908
      %910 = vdwg.mxu0
      %v911 = vmul.f32 %v907, %v907
      %v912 = vmul.f32 %v909, %v909
      %v913 = vmul.f32 %v907, %v911
      %v914 = vmul.f32 %v909, %v912
      %v915 = vmul.f32 %v913, 0.044715
      %v916 = vmul.f32 %v914, 0.044715
      %v917 = vadd.f32 %v907, %v915
      %v918 = vadd.f32 %v909, %v916
      %v919 = vmul.f32 %v917, 0.7978846
      %v920 = vmul.f32 %v918, 0.7978846
      %v921 = vtanh.pop %v919
      %v922 = vtanh.pop %v920
      %v923 = vadd.f32 %v921, 1.0
      %v924 = vadd.f32 %v922, 1.0
      %v925 = vmul.f32 %v923, 0.5
      %v926 = vmul.f32 %v924, 0.5
      %v927 = vmul.f32 %v907, %v925
      %v928 = vmul.f32 %v909, %v926
      %v929 = vld [vmem:[%s11] sm:$0xf]
      %v930 = vld [vmem:[%s11 + $0x4] sm:$0xf]
      %v931 = vld [vmem:[%s11 + $0x8] sm:$0xf]
      %v932 = vld [vmem:[%s11 + $0xc] sm:$0xf]
      %v933 = vld [vmem:[%s11 + $0x10] sm:$0xf]
      %v934 = vld [vmem:[%s11 + $0x14] sm:$0xf]
      %v935 = vld [vmem:[%s11 + $0x18] sm:$0xf]
      %v936 = vld [vmem:[%s11 + $0x1c] sm:$0xf]
      %v937 = vld [vmem:[%s11 + $0x20] sm:$0xf]
      %v938 = vld [vmem:[%s11 + $0x24] sm:$0xf]
      %v939 = vld [vmem:[%s11 + $0x28] sm:$0xf]
      %v940 = vld [vmem:[%s11 + $0x2c] sm:$0xf]
      %v941 = vld [vmem:[%s11 + $0x30] sm:$0xf]
      %v942 = vld [vmem:[%s11 + $0x34] sm:$0xf]
      %v943 = vld [vmem:[%s11 + $0x38] sm:$0xf]
      %v944 = vld [vmem:[%s11 + $0x3c] sm:$0xf]
      %v945 = vpack.c.bf16 %v928, %v927
      %v946 = vld [vmem:[%s12] sm:$0x1]
      %v948 = vperm.slane %v946, 0
      %v966 = vunpack.c.l.b16 %v929
      %v967 = vunpack.c.l.b16 %v930
      %v968 = vunpack.c.l.b16 %v931
      %v969 = vunpack.c.l.b16 %v932
      %v970 = vunpack.c.l.b16 %v933
      %v971 = vunpack.c.l.b16 %v934
      %v972 = vunpack.c.l.b16 %v935
      %v973 = vunpack.c.l.b16 %v936
      %v974 = vunpack.c.l.b16 %v937
      %v975 = vunpack.c.l.b16 %v938
      %v976 = vunpack.c.l.b16 %v939
      %v977 = vunpack.c.l.b16 %v940
      %v978 = vunpack.c.l.b16 %v941
      %v979 = vunpack.c.l.b16 %v942
      %v980 = vunpack.c.l.b16 %v943
      %v981 = vunpack.c.l.b16 %v944
      %v982 = vpack.c.b16 %v967, %v966
      %v983 = vpack.c.b16 %v969, %v968
      %v984 = vpack.c.b16 %v971, %v970
      %v985 = vpack.c.b16 %v973, %v972
      %v986 = vpack.c.b16 %v975, %v974
      %v987 = vpack.c.b16 %v977, %v976
      %v988 = vpack.c.b16 %v979, %v978
      %v989 = vpack.c.b16 %v981, %v980
      %998 = vmatpush.bf16.msra.mxu0 %v989
      %999 = vmatpush.bf16.msra.mxu0 %v988
      %1000 = vmatpush.bf16.msra.mxu0 %v987
      %1001 = vmatpush.bf16.msra.mxu0 %v986
      %1002 = vmatpush.bf16.msra.mxu0 %v985
      %1003 = vmatpush.bf16.msra.mxu0 %v984
      %1004 = vmatpush.bf16.msra.mxu0 %v983
      %1005 = vmatpush.bf16.msra.mxu0 %v982
      %1006 = vmatmul.bf16.gmra.mxu0 %v945
      %v1007 = vpop.f32.mrf.mxu0
      %v1008 = vadd.f32 %v948, %v1007
      %v1009 = vpop.f32.mrf.mxu0
      %v1010 = vadd.f32 %v948, %v1009
      %1011 = vdwg.mxu0
      %v1012 = vadd.f32 %v799, %v1008
      %v1013 = vadd.f32 %v800, %v1010
      %1014 = vst.msk [vmem:[%s440] sm:$0xff] %vm446, %v1012
      %1015 = vst.msk [vmem:[%s440 + $0x8] sm:$0xff] %vm446, %v1013
      %p1016 = scmp.lt.s32.totalorder %s24, 1
      %s1017 = scalar_select %p1016, %s24, 1
      %s1018 = smul.addr %s1017, 2
      %s1019 = smul.addr %s1018, 8
      %s1020 = scalar_lea.vmem %s13, %s1019
      // Predicated region
      $region73: #{encode_images.4} parent=71 // pred_check
        %p1021 = pneg %p320
      $region74: #{encode_images.4} parent=71 // pred_check_branch
        %1023 = sbr.rel (%p1021) target = $region76
      $region75: #{encode_images.4} parent=71 // pred_region
        _
      $region76: #{encode_images.4} parent=71 // pred_fallthru
        _
    $region72: #{encode_images.4} parent=5 // pred_fallthru
      _
    %p1024 = scmp.le.s32.totalorder 2, %s19
    // Predicated region
    $region77: #{encode_images.4} parent=5 // pred_check
      %p1025 = pneg %p1024
    $region78: #{encode_images.4} parent=5 // pred_check_branch
      %1027 = sbr.rel (%p1025) target = $region80
    $region79: #{encode_images.4} parent=5 // pred_region
      %s1028 = ssub.s32 %s19, 2
      // Predicated region
      $region81: #{encode_images.4} parent=79 // pred_check
        %p1029 = pneg %p326
      $region82: #{encode_images.4} parent=79 // pred_check_branch
        %1031 = sbr.rel (%p1029) target = $region84
      $region83: #{encode_images.4} parent=79 // pred_region
        %p1032 = scmp.lt.s32.totalorder %s25, 1
        %s1033 = scalar_select %p1032, %s25, 1
        %s1034 = smul.addr %s1033, 2
        %s1035 = smul.addr %s1034, 8
        %s1036 = scalar_lea.vmem %s13, %s1035
      $region84: #{encode_images.4} parent=79 // pred_fallthru
        _
    $region80: #{encode_images.4} parent=5 // pred_fallthru
      _
  $region6: #{encode_images.4} parent=0 // loop_footer
    %s23 = sadd.s32 1, %s19
  $region7: #{encode_images.4} parent=0 // loop_footer_branch
    %18 = sbr.rel target = $region3
  $region8: #{encode_images.4} parent=0 // loop_exit
    _

// kernel: encode_images.5
$region0: #{encode_images.5}
  #allocation0 [shape = 'u32[]', space=smem, size = 0x4, offset = 0x4, fixed_abs, tag = 'smem constant byte address 0x4 - core index']
  #allocation1 [shape = 'u32[72,128]{1,0:T(1,128)}', space=vmem, size = 0x9000, scoped, tag = 'internal scratch']
  %s0 = inlined_call_operand.vmem [shape: f32[2,16,64], index: 0, kind: input, shape index: {}]
  %s1 = inlined_call_operand.vmem [shape: bf16[64,32], index: 1, kind: input, shape index: {}]
  %s2 = inlined_call_operand.vmem [shape: f32[1,32], index: 2, kind: input, shape index: {}]
  %s3 = inlined_call_operand.vmem [shape: f32[1,32], index: 3, kind: input, shape index: {}]
  %s4 = inlined_call_operand.vmem [shape: f32[9,16,16], index: 4, kind: input, shape index: {}]
  %s5 = inlined_call_operand.vmem [shape: bf16[9,32,32], index: 5, kind: input, shape index: {}]
  %s6 = inlined_call_operand.vmem [shape: f32[1,32], index: 6, kind: input, shape index: {}]
  %s7 = inlined_call_operand.vmem [shape: f32[1,32], index: 7, kind: input, shape index: {}]
  %s8 = inlined_call_operand.hbm [shape: f32[2,16,32], index: 8, kind: output, shape index: {}]
  %s9 = sld [smem:[#allocation0]]
  $region65: #{encode_images.5} parent=0
    _
  %s11 = ssub.s32 1, %s9
  %s12 = scalar_select 0, %s11, %s9
  $region1: #{encode_images.5} parent=0
    #allocation2 [shape = 'u8[16384]{0}', space=vmem, size = 0x4000, scoped, tag = 'output window, operand 0']
    #allocation3 [shape = 's32[2]{0}', space=sflag, size = 0x8, scoped, tag = 'scoped memory for encode_images.5']
    %13 = vsyncpa [#allocation3], 0
    %s14 = scalar_lea.sflag [#allocation3], 1
    %15 = vsyncpa %s14, 0
    loop: start=0, step=1, limit=4
    $region2: #{encode_images.5} parent=1 // loop_pre_header
      _
    $region3: #{encode_images.5} parent=1 // loop_header
      %s17 = sphi 0, %s21
      %p18 = scmp.ge.s32.totalorder %s17, 4
      %s27 = sphi 0, %s29
      %s30 = sphi 0, %s27
      %s31 = sphi 0, %s30
      %s47 = sphi 0, %s31
      %s51 = sphi 0, %s51
      %s53 = sphi 0, %s51
      %s54 = sphi 0, %s53
      %s68 = sphi 0, %s54
      %s72 = sphi 0, %s72
      %s74 = sphi 0, %s72
      %s75 = sphi 0, %s74
      %s89 = sphi 0, %s75
      %s93 = sphi 0, %s93
      %s95 = sphi 0, %s93
      %s96 = sphi 0, %s95
      %s110 = sphi 0, %s96
      %s114 = sphi 0, %s114
      %s116 = sphi 0, %s114
      %s117 = sphi 0, %s116
      %s131 = sphi 0, %s117
      %s135 = sphi 0, %s135
      %s137 = sphi 0, %s135
      %s138 = sphi 0, %s137
      %s152 = sphi 0, %s138
      %s156 = sphi 0, %s156
      %s158 = sphi 0, %s156
      %s159 = sphi 0, %s158
      %s173 = sphi 0, %s159
      %s177 = sphi 0, %s177
      %s179 = sphi 0, %s177
      %s180 = sphi 0, %s179
      %s194 = sphi 0, %s180
      %s200 = sphi 0, %s202
      %s203 = sphi 0, %s200
      %s204 = sphi 0, %s203
      %s220 = sphi 0, %s204
    $region4: #{encode_images.5} parent=1 // loop_header_branch
      %20 = sbr.rel (%p18) target = $region8
    $region5: #{encode_images.5} parent=1 // loop_body
      %s22 = ssub.s32 %s17, 1
      %s23 = ssub.s32 %s17, 2
      %s24 = sadd.s32 %s17, 1
      %s25 = ssub.s32 %s17, %s24
      %p26 = scmp.eq.s32.totalorder %s25, 0
      %s28 = sadd.s32 %s27, 1
      %s29 = scalar_select %p26, %s27, %s28
      %p32 = pneg %p26
      %p33 = scmp.eq.s32.totalorder %s17, 1
      %p34 = por %p32, %p33
      %p35 = scmp.ne.s32.totalorder %s27, %s30
      %p36 = scmp.eq.s32.totalorder %s17, 0
      %p37 = por %p35, %p36
      %p38 = scmp.ne.s32.totalorder %s27, %s30
      %p39 = scmp.eq.s32.totalorder %s22, 1
      %p40 = por %p38, %p39
      %p41 = scmp.ne.s32.totalorder %s30, %s31
      %p42 = scmp.eq.s32.totalorder %s22, 0
      %p43 = por %p41, %p42
      %p44 = scmp.ne.s32.totalorder %s30, %s31
      %p45 = scmp.eq.s32.totalorder %s23, 1
      %p46 = por %p44, %p45
      %p48 = scmp.ne.s32.totalorder %s31, %s47
      %p49 = scmp.eq.s32.totalorder %s23, 0
      %p50 = por %p48, %p49
      %s52 = sadd.s32 %s51, 1
      %p55 = scmp.eq.s32.totalorder %s17, 1
      %p56 = scmp.ne.s32.totalorder %s51, %s53
      %p57 = scmp.eq.s32.totalorder %s17, 0
      %p58 = por %p56, %p57
      %p59 = scmp.ne.s32.totalorder %s51, %s53
      %p60 = scmp.eq.s32.totalorder %s22, 1
      %p61 = por %p59, %p60
      %p62 = scmp.ne.s32.totalorder %s53, %s54
      %p63 = scmp.eq.s32.totalorder %s22, 0
      %p64 = por %p62, %p63
      %p65 = scmp.ne.s32.totalorder %s53, %s54
      %p66 = scmp.eq.s32.totalorder %s23, 1
      %p67 = por %p65, %p66
      %p69 = scmp.ne.s32.totalorder %s54, %s68
      %p70 = scmp.eq.s32.totalorder %s23, 0
      %p71 = por %p69, %p70
      %s73 = sadd.s32 %s72, 1
      %p76 = scmp.eq.s32.totalorder %s17, 1
      %p77 = scmp.ne.s32.totalorder %s72, %s74
      %p78 = scmp.eq.s32.totalorder %s17, 0
      %p79 = por %p77, %p78
      %p80 = scmp.ne.s32.totalorder %s72, %s74
      %p81 = scmp.eq.s32.totalorder %s22, 1
      %p82 = por %p80, %p81
      %p83 = scmp.ne.s32.totalorder %s74, %s75
      %p84 = scmp.eq.s32.totalorder %s22, 0
      %p85 = por %p83, %p84
      %p86 = scmp.ne.s32.totalorder %s74, %s75
      %p87 = scmp.eq.s32.totalorder %s23, 1
      %p88 = por %p86, %p87
      %p90 = scmp.ne.s32.totalorder %s75, %s89
      %p91 = scmp.eq.s32.totalorder %s23, 0
      %p92 = por %p90, %p91
      %s94 = sadd.s32 %s93, 1
      %p97 = scmp.eq.s32.totalorder %s17, 1
      %p98 = scmp.ne.s32.totalorder %s93, %s95
      %p99 = scmp.eq.s32.totalorder %s17, 0
      %p100 = por %p98, %p99
      %p101 = scmp.ne.s32.totalorder %s93, %s95
      %p102 = scmp.eq.s32.totalorder %s22, 1
      %p103 = por %p101, %p102
      %p104 = scmp.ne.s32.totalorder %s95, %s96
      %p105 = scmp.eq.s32.totalorder %s22, 0
      %p106 = por %p104, %p105
      %p107 = scmp.ne.s32.totalorder %s95, %s96
      %p108 = scmp.eq.s32.totalorder %s23, 1
      %p109 = por %p107, %p108
      %p111 = scmp.ne.s32.totalorder %s96, %s110
      %p112 = scmp.eq.s32.totalorder %s23, 0
      %p113 = por %p111, %p112
      %s115 = sadd.s32 %s114, 1
      %p118 = scmp.eq.s32.totalorder %s17, 1
      %p119 = scmp.ne.s32.totalorder %s114, %s116
      %p120 = scmp.eq.s32.totalorder %s17, 0
      %p121 = por %p119, %p120
      %p122 = scmp.ne.s32.totalorder %s114, %s116
      %p123 = scmp.eq.s32.totalorder %s22, 1
      %p124 = por %p122, %p123
      %p125 = scmp.ne.s32.totalorder %s116, %s117
      %p126 = scmp.eq.s32.totalorder %s22, 0
      %p127 = por %p125, %p126
      %p128 = scmp.ne.s32.totalorder %s116, %s117
      %p129 = scmp.eq.s32.totalorder %s23, 1
      %p130 = por %p128, %p129
      %p132 = scmp.ne.s32.totalorder %s117, %s131
      %p133 = scmp.eq.s32.totalorder %s23, 0
      %p134 = por %p132, %p133
      %s136 = sadd.s32 %s135, 1
      %p139 = scmp.eq.s32.totalorder %s17, 1
      %p140 = scmp.ne.s32.totalorder %s135, %s137
      %p141 = scmp.eq.s32.totalorder %s17, 0
      %p142 = por %p140, %p141
      %p143 = scmp.ne.s32.totalorder %s135, %s137
      %p144 = scmp.eq.s32.totalorder %s22, 1
      %p145 = por %p143, %p144
      %p146 = scmp.ne.s32.totalorder %s137, %s138
      %p147 = scmp.eq.s32.totalorder %s22, 0
      %p148 = por %p146, %p147
      %p149 = scmp.ne.s32.totalorder %s137, %s138
      %p150 = scmp.eq.s32.totalorder %s23, 1
      %p151 = por %p149, %p150
      %p153 = scmp.ne.s32.totalorder %s138, %s152
      %p154 = scmp.eq.s32.totalorder %s23, 0
      %p155 = por %p153, %p154
      %s157 = sadd.s32 %s156, 1
      %p160 = scmp.eq.s32.totalorder %s17, 1
      %p161 = scmp.ne.s32.totalorder %s156, %s158
      %p162 = scmp.eq.s32.totalorder %s17, 0
      %p163 = por %p161, %p162
      %p164 = scmp.ne.s32.totalorder %s156, %s158
      %p165 = scmp.eq.s32.totalorder %s22, 1
      %p166 = por %p164, %p165
      %p167 = scmp.ne.s32.totalorder %s158, %s159
      %p168 = scmp.eq.s32.totalorder %s22, 0
      %p169 = por %p167, %p168
      %p170 = scmp.ne.s32.totalorder %s158, %s159
      %p171 = scmp.eq.s32.totalorder %s23, 1
      %p172 = por %p170, %p171
      %p174 = scmp.ne.s32.totalorder %s159, %s173
      %p175 = scmp.eq.s32.totalorder %s23, 0
      %p176 = por %p174, %p175
      %s178 = sadd.s32 %s177, 1
      %p181 = scmp.eq.s32.totalorder %s17, 1
      %p182 = scmp.ne.s32.totalorder %s177, %s179
      %p183 = scmp.eq.s32.totalorder %s17, 0
      %p184 = por %p182, %p183
      %p185 = scmp.ne.s32.totalorder %s177, %s179
      %p186 = scmp.eq.s32.totalorder %s22, 1
      %p187 = por %p185, %p186
      %p188 = scmp.ne.s32.totalorder %s179, %s180
      %p189 = scmp.eq.s32.totalorder %s22, 0
      %p190 = por %p188, %p189
      %p191 = scmp.ne.s32.totalorder %s179, %s180
      %p192 = scmp.eq.s32.totalorder %s23, 1
      %p193 = por %p191, %p192
      %p195 = scmp.ne.s32.totalorder %s180, %s194
      %p196 = scmp.eq.s32.totalorder %s23, 0
      %p197 = por %p195, %p196
      %s198 = ssub.s32 %s17, %s24
      %p199 = scmp.eq.s32.totalorder %s198, 0
      %s201 = sadd.s32 %s200, 1
      %s202 = scalar_select %p199, %s200, %s201
      %p205 = pneg %p199
      %p206 = scmp.eq.s32.totalorder %s17, 1
      %p207 = por %p205, %p206
      %p208 = scmp.ne.s32.totalorder %s200, %s203
      %p209 = scmp.eq.s32.totalorder %s17, 0
      %p210 = por %p208, %p209
      %p211 = scmp.ne.s32.totalorder %s200, %s203
      %p212 = scmp.eq.s32.totalorder %s22, 1
      %p213 = por %p211, %p212
      %p214 = scmp.ne.s32.totalorder %s203, %s204
      %p215 = scmp.eq.s32.totalorder %s22, 0
      %p216 = por %p214, %p215
      %p217 = scmp.ne.s32.totalorder %s203, %s204
      %p218 = scmp.eq.s32.totalorder %s23, 1
      %p219 = por %p217, %p218
      %p221 = scmp.ne.s32.totalorder %s204, %s220
      %p222 = scmp.eq.s32.totalorder %s23, 0
      %p223 = por %p221, %p222
      %p224 = scmp.le.s32.totalorder 1, %s17
      %p225 = scmp.lt.s32.totalorder %s17, 3
      %p226 = pnand %p224, %p225
      %p227 = pneg %p226
      // Predicated region
      $region9: #{encode_images.5} parent=5 // pred_check
        _
      $region10: #{encode_images.5} parent=5 // pred_check_branch
        %229 = sbr.rel (%p226) target = $region12
      $region11: #{encode_images.5} parent=5 // pred_region
        %s230 = ssub.s32 %s17, 1
        // Predicated region
        $region13: #{encode_images.5} parent=11 // pred_check
          %p231 = pneg %p64
        $region14: #{encode_images.5} parent=11 // pred_check_branch
          %233 = sbr.rel (%p231) target = $region16
        $region15: #{encode_images.5} parent=11 // pred_region
          _
        $region16: #{encode_images.5} parent=11 // pred_fallthru
          _
        // Predicated region
        $region17: #{encode_images.5} parent=11 // pred_check
          %p234 = pneg %p85
        $region18: #{encode_images.5} parent=11 // pred_check_branch
          %236 = sbr.rel (%p234) target = $region20
        $region19: #{encode_images.5} parent=11 // pred_region
          _
        $region20: #{encode_images.5} parent=11 // pred_fallthru
          _
        // Predicated region
        $region21: #{encode_images.5} parent=11 // pred_check
          %p237 = pneg %p106
        $region22: #{encode_images.5} parent=11 // pred_check_branch
          %239 = sbr.rel (%p237) target = $region24
        $region23: #{encode_images.5} parent=11 // pred_region
          _
        $region24: #{encode_images.5} parent=11 // pred_fallthru
          _
        // Predicated region
        $region25: #{encode_images.5} parent=11 // pred_check
          %p240 = pneg %p127
        $region26: #{encode_images.5} parent=11 // pred_check_branch
          %242 = sbr.rel (%p240) target = $region28
        $region27: #{encode_images.5} parent=11 // pred_region
          _
        $region28: #{encode_images.5} parent=11 // pred_fallthru
          _
        // Predicated region
        $region29: #{encode_images.5} parent=11 // pred_check
          %p243 = pneg %p148
        $region30: #{encode_images.5} parent=11 // pred_check_branch
          %245 = sbr.rel (%p243) target = $region32
        $region31: #{encode_images.5} parent=11 // pred_region
          _
        $region32: #{encode_images.5} parent=11 // pred_fallthru
          _
        // Predicated region
        $region33: #{encode_images.5} parent=11 // pred_check
          %p246 = pneg %p169
        $region34: #{encode_images.5} parent=11 // pred_check_branch
          %248 = sbr.rel (%p246) target = $region36
        $region35: #{encode_images.5} parent=11 // pred_region
          _
        $region36: #{encode_images.5} parent=11 // pred_fallthru
          _
        // Predicated region
        $region37: #{encode_images.5} parent=11 // pred_check
          %p249 = pneg %p190
        $region38: #{encode_images.5} parent=11 // pred_check_branch
          %251 = sbr.rel (%p249) target = $region40
        $region39: #{encode_images.5} parent=11 // pred_region
          _
        $region40: #{encode_images.5} parent=11 // pred_fallthru
          _
      $region12: #{encode_images.5} parent=5 // pred_fallthru
        _
      %p252 = scmp.lt.s32.totalorder %s17, 2
      // Predicated region
      $region41: #{encode_images.5} parent=5 // pred_check
        %p253 = pneg %p252
      $region42: #{encode_images.5} parent=5 // pred_check_branch
        %255 = sbr.rel (%p253) target = $region44
      $region43: #{encode_images.5} parent=5 // pred_region
        // Predicated region
        $region45: #{encode_images.5} parent=43 // pred_check
          %p256 = pneg %p37
        $region46: #{encode_images.5} parent=43 // pred_check_branch
          %258 = sbr.rel (%p256) target = $region48
        $region47: #{encode_images.5} parent=43 // pred_region
          %p259 = scmp.lt.s32.totalorder %s17, 1
          %s260 = scalar_select %p259, %s17, 1
          %s261 = smul.addr %s260, 2
          %s262 = smul.addr %s261, 8
          %s263 = scalar_lea.vmem %s0, %s262
        $region48: #{encode_images.5} parent=43 // pred_fallthru
          _
      $region44: #{encode_images.5} parent=5 // pred_fallthru
        _
      %p264 = scmp.le.s32.totalorder 1, %s17
      %p265 = scmp.lt.s32.totalorder %s17, 3
      %p266 = pnand %p264, %p265
      %p267 = pneg %p266
      // Predicated region
      $region49: #{encode_images.5} parent=5 // pred_check
        _
      $region50: #{encode_images.5} parent=5 // pred_check_branch
        %269 = sbr.rel (%p266) target = $region52
      $region51: #{encode_images.5} parent=5 // pred_region
        %s270 = ssub.s32 %s17, 1
        %p271 = scmp.lt.s32.totalorder %s22, 1
        %s272 = scalar_select %p271, %s22, 1
        %s273 = smul.addr %s272, 2
        %s274 = smul.addr %s273, 8
        %s275 = scalar_lea.vmem %s0, %s274
        %p276 = pneg %p43
        %p277 = pneg %p40
        %p278 = pneg %p64
        %p279 = pneg %p61
        %p280 = pneg %p85
        %p281 = pneg %p82
        %p282 = pneg %p106
        %p283 = pneg %p103
        %p284 = pneg %p127
        %p285 = pneg %p124
        %p286 = pneg %p148
        %p287 = pneg %p145
        %p288 = pneg %p169
        %p289 = pneg %p166
        %p290 = pneg %p190
        %p291 = pneg %p187
        %p292 = pneg %p216
        %p293 = pneg %p213
        %s294 = sand.u32 %s203, 1
        %s295 = scalar_lea.sflag [#allocation3], %s294
        %s296 = sand.u32 %s203, 1
        %s297 = smul.addr %s296, 16
        %s298 = scalar_lea.vmem [#allocation2], %s297
        %p299 = scmp.lt.s32.totalorder %s22, 1
        %s300 = scalar_select %p299, %s22, 1
        %s301 = smul.addr %s300, 2
        %s302 = smul.addr %s301, 8
        %s303 = scalar_lea.vmem %s0, %s302
        %v305 = vld [vmem:[%s303] sm:$0xff]
        %v306 = vld [vmem:[%s303 + $0x8] sm:$0xff]
        %v307 = vld [vmem:[%s1] sm:$0xf]
        %v308 = vld [vmem:[%s1 + $0x4] sm:$0xf]
        %v309 = vld [vmem:[%s1 + $0x8] sm:$0xf]
        %v310 = vld [vmem:[%s1 + $0xc] sm:$0xf]
        %v311 = vld [vmem:[%s1 + $0x10] sm:$0xf]
        %v312 = vld [vmem:[%s1 + $0x14] sm:$0xf]
        %v313 = vld [vmem:[%s1 + $0x18] sm:$0xf]
        %v314 = vld [vmem:[%s1 + $0x1c] sm:$0xf]
        %v315 = vpack.c.bf16 %v306, %v305
        %v324 = vunpack.c.l.b16 %v307
        %v325 = vunpack.c.l.b16 %v308
        %v326 = vunpack.c.l.b16 %v309
        %v327 = vunpack.c.l.b16 %v310
        %v328 = vunpack.c.l.b16 %v311
        %v329 = vunpack.c.l.b16 %v312
        %v330 = vunpack.c.l.b16 %v313
        %v331 = vunpack.c.l.b16 %v314
        %v332 = vpack.c.b16 %v325, %v324
        %v333 = vpack.c.b16 %v327, %v326
        %v334 = vpack.c.b16 %v329, %v328
        %v335 = vpack.c.b16 %v331, %v330
        %vm340 = vcmask 523264
        %v342 = vsel %vm340, %v315, 0
        %344 = vmatpush.bf16.msra.mxu0 0
        %345 = vmatpush.bf16.msra.mxu0 0
        %346 = vmatpush.bf16.msra.mxu0 0
        %347 = vmatpush.bf16.msra.mxu0 0
        %348 = vmatpush.bf16.msra.mxu0 %v335
        %349 = vmatpush.bf16.msra.mxu0 %v334
        %350 = vmatpush.bf16.msra.mxu0 %v333
        %351 = vmatpush.bf16.msra.mxu0 %v332
        %352 = vmatmul.bf16.gmra.mxu0 %v342
        %v353 = vpop.f32.mrf.mxu0
        %v354 = vadd.f32 0.0, %v353
        %v355 = vpop.f32.mrf.mxu0
        %v356 = vadd.f32 0.0, %v355
        %357 = vdwg.mxu0
        %v358 = vld [vmem:[%s2] sm:$0x1]
        %v359 = vld [vmem:[%s3] sm:$0x1]
        %vm360 = vcmask 261120
        %v361 = vsel %vm360, %v354, 0.0
        %362 = vadd.xlane.f32.xlu0 %v361
        %v363 = vpop.xlane.xlu0 %362
        %v364 = vsel %vm360, %v356, 0.0
        %365 = vadd.xlane.f32.xlu0 %v364
        %v366 = vpop.xlane.xlu0 %365
        %v367 = vrcp.pop 32.0
        %v368 = vmul.f32 32.0, %v367
        %v369 = vsub.f32 1.0, %v368
        %v370 = vmul.f32 %v367, %v369
        %v371 = vadd.f32 %v367, %v370
        %vm372 = vweird.f32 %v367
        %v373 = vsel %vm372, %v367, %v371
        %v374 = vmul.f32 %v363, %v373
        %v375 = vmul.f32 %v366, %v373
        %v376 = vsub.f32 %v354, %v374
        %v377 = vsub.f32 %v356, %v375
        %v378 = vmul.f32 %v376, %v376
        %v379 = vmul.f32 %v377, %v377
        %v380 = vsel %vm360, %v378, 0.0
        %381 = vadd.xlane.f32.xlu0 %v380
        %v382 = vpop.xlane.xlu0 %381
        %v383 = vsel %vm360, %v379, 0.0
        %384 = vadd.xlane.f32.xlu0 %v383
        %v385 = vpop.xlane.xlu0 %384
        %v386 = vmul.f32 %v382, %v373
        %v387 = vmul.f32 %v385, %v373
        %v388 = vadd.f32 %v386, 1e-06
        %v389 = vadd.f32 %v387, 1e-06
        %v390 = vrsqrt.pop %v388
        %v391 = vmul.f32 %v390, %v388
        %v392 = vmul.f32 %v391, %v390
        %v393 = vmul.f32 0.5, %v392
        %v394 = vsub.f32 1.5, %v393
        %v395 = vmul.f32 %v390, %v394
        %vm396 = vweird.f32 %v388
        %vm397 = vweird.f32 %v390
        %vm398 = vmor %vm396, %vm397
        %v399 = vsel %vm398, %v390, %v395
        %v400 = vrsqrt.pop %v389
        %v401 = vmul.f32 %v400, %v389
        %v402 = vmul.f32 %v401, %v400
        %v403 = vmul.f32 0.5, %v402
        %v404 = vsub.f32 1.5, %v403
        %v405 = vmul.f32 %v400, %v404
        %vm406 = vweird.f32 %v389
        %vm407 = vweird.f32 %v400
        %vm408 = vmor %vm406, %vm407
        %v409 = vsel %vm408, %v400, %v405
        %v410 = vmul.f32 %v376, %v399
        %v411 = vmul.f32 %v377, %v409
        %v413 = vperm.slane %v358, 0
        %v415 = vmul.f32 %v410, %v413
        %v416 = vmul.f32 %v411, %v413
        %v418 = vperm.slane %v359, 0
        %v420 = vadd.f32 %v415, %v418
        %v421 = vadd.f32 %v416, %v418
        %v422 = vld [vmem:[%s4] sm:$0xff]
        %v423 = vld [vmem:[%s4 + $0x8] sm:$0xff]
        %vm424 = vcmask 130048
        %v426 = vsel %vm424, %v422, 0
        %v429 = vsel %vm424, %v423, 0
        %431 = vmatpush.msra.mxu0 0.0
        %432 = vmatpush.msra.mxu0 0.0
        %433 = vmatpush.msra.mxu0 0.0
        %434 = vmatpush.msra.mxu0 0.0
        %435 = vmatpush.msra.mxu0 0.0
        %436 = vmatpush.msra.mxu0 0.0
        %437 = vmatpush.msra.mxu0 0.0
        %438 = vmatpush.msra.mxu0 0.0
        %439 = vmatpush.msra.mxu0 0.0
        %440 = vmatpush.msra.mxu0 0.0
        %441 = vmatpush.msra.mxu0 0.0
        %442 = vmatpush.msra.mxu0 0.0
        %443 = vmatpush.msra.mxu0 0.0
        %444 = vmatpush.msra.mxu0 0.0
        %445 = vmatpush.msra.mxu0 %v421
        %446 = vmatpush.msra.mxu0 %v420
        %447 = vmatmul.f32.gmra.mxu0 %v426
        %v448 = vpop.f32.mrf.mxu0
        %v449 = vadd.f32 0.0, %v448
        %450 = vmatmul.f32.gmra.mxu0 %v429
        %v451 = vpop.f32.mrf.mxu0
        %v452 = vadd.f32 0.0, %v451
        %453 = vdwg.mxu0
        %v454 = vld [vmem:[%s5] sm:$0xf]
        %v455 = vld [vmem:[%s5 + $0x4] sm:$0xf]
        %v456 = vld [vmem:[%s5 + $0x8] sm:$0xf]
        %v457 = vld [vmem:[%s5 + $0xc] sm:$0xf]
        %v458 = vpack.c.bf16 %v452, %v449
        %s459 = scalar_lea.vmem %s4, 16
        %v460 = vld [vmem:[%s459] sm:$0xff]
        %v461 = vld [vmem:[%s459 + $0x8] sm:$0xff]
        %v463 = vsel %vm424, %v460, 0
        %v466 = vsel %vm424, %v461, 0
        %468 = vmatpush.msra.mxu0 0.0
        %469 = vmatpush.msra.mxu0 0.0
        %470 = vmatpush.msra.mxu0 0.0
        %471 = vmatpush.msra.mxu0 0.0
        %472 = vmatpush.msra.mxu0 0.0
        %473 = vmatpush.msra.mxu0 0.0
        %474 = vmatpush.msra.mxu0 0.0
        %475 = vmatpush.msra.mxu0 0.0
        %476 = vmatpush.msra.mxu0 0.0
        %477 = vmatpush.msra.mxu0 0.0
        %478 = vmatpush.msra.mxu0 0.0
        %479 = vmatpush.msra.mxu0 0.0
        %480 = vmatpush.msra.mxu0 0.0
        %481 = vmatpush.msra.mxu0 0.0
        %482 = vmatpush.msra.mxu0 %v421
        %483 = vmatpush.msra.mxu0 %v420
        %484 = vmatmul.f32.gmra.mxu0 %v463
        %v485 = vpop.f32.mrf.mxu0
        %v486 = vadd.f32 0.0, %v485
        %487 = vmatmul.f32.gmra.mxu0 %v466
        %v488 = vpop.f32.mrf.mxu0
        %v489 = vadd.f32 0.0, %v488
        %490 = vdwg.mxu0
        %s491 = scalar_lea.vmem %s5, 16
        %v492 = vld [vmem:[%s491] sm:$0xf]
        %v493 = vld [vmem:[%s491 + $0x4] sm:$0xf]
        %v494 = vld [vmem:[%s491 + $0x8] sm:$0xf]
        %v495 = vld [vmem:[%s491 + $0xc] sm:$0xf]
        %v496 = vpack.c.bf16 %v489, %v486
        %v501 = vunpack.c.l.b16 %v492
        %v502 = vunpack.c.l.b16 %v493
        %v503 = vunpack.c.l.b16 %v494
        %v504 = vunpack.c.l.b16 %v495
        %v505 = vpack.c.b16 %v502, %v501
        %v506 = vpack.c.b16 %v504, %v503
        %v510 = vsel %vm360, %v496, 0
        %512 = vmatpush.bf16.msra.mxu0 0
        %513 = vmatpush.bf16.msra.mxu0 0
        %514 = vmatpush.bf16.msra.mxu0 0
        %515 = vmatpush.bf16.msra.mxu0 0
        %516 = vmatpush.bf16.msra.mxu0 0
        %517 = vmatpush.bf16.msra.mxu0 0
        %518 = vmatpush.bf16.msra.mxu0 %v506
        %519 = vmatpush.bf16.msra.mxu0 %v505
        %520 = vmatmul.bf16.gmra.mxu0 %v510
        %v521 = vpop.f32.mrf.mxu0
        %v522 = vadd.f32 0.0, %v521
        %v523 = vpop.f32.mrf.mxu0
        %v524 = vadd.f32 0.0, %v523
        %525 = vdwg.mxu0
        %v530 = vunpack.c.l.b16 %v454
        %v531 = vunpack.c.l.b16 %v455
        %v532 = vunpack.c.l.b16 %v456
        %v533 = vunpack.c.l.b16 %v457
        %v534 = vpack.c.b16 %v531, %v530
        %v535 = vpack.c.b16 %v533, %v532
        %v539 = vsel %vm360, %v458, 0
        %541 = vmatpush.bf16.msra.mxu0 0
        %542 = vmatpush.bf16.msra.mxu0 0
        %543 = vmatpush.bf16.msra.mxu0 0
        %544 = vmatpush.bf16.msra.mxu0 0
        %545 = vmatpush.bf16.msra.mxu0 0
        %546 = vmatpush.bf16.msra.mxu0 0
        %547 = vmatpush.bf16.msra.mxu0 %v535
        %548 = vmatpush.bf16.msra.mxu0 %v534
        %549 = vmatmul.bf16.gmra.mxu0 %v539
        %v550 = vpop.f32.mrf.mxu0
        %v551 = vadd.f32 %v522, %v550
        %v552 = vpop.f32.mrf.mxu0
        %v553 = vadd.f32 %v524, %v552
        %554 = vdwg.mxu0
        %s555 = scalar_lea.vmem %s4, 32
        %v556 = vld [vmem:[%s555] sm:$0xff]
        %v557 = vld [vmem:[%s555 + $0x8] sm:$0xff]
        %v559 = vsel %vm424, %v556, 0
        %v562 = vsel %vm424, %v557, 0
        %564 = vmatpush.msra.mxu0 0.0
        %565 = vmatpush.msra.mxu0 0.0
        %566 = vmatpush.msra.mxu0 0.0
        %567 = vmatpush.msra.mxu0 0.0
        %568 = vmatpush.msra.mxu0 0.0
        %569 = vmatpush.msra.mxu0 0.0
        %570 = vmatpush.msra.mxu0 0.0
        %571 = vmatpush.msra.mxu0 0.0
        %572 = vmatpush.msra.mxu0 0.0
        %573 = vmatpush.msra.mxu0 0.0
        %574 = vmatpush.msra.mxu0 0.0
        %575 = vmatpush.msra.mxu0 0.0
        %576 = vmatpush.msra.mxu0 0.0
        %577 = vmatpush.msra.mxu0 0.0
        %578 = vmatpush.msra.mxu0 %v421
        %579 = vmatpush.msra.mxu0 %v420
        %580 = vmatmul.f32.gmra.mxu0 %v559
        %v581 = vpop.f32.mrf.mxu0
        %v582 = vadd.f32 0.0, %v581
        %583 = vmatmul.f32.gmra.mxu0 %v562
        %v584 = vpop.f32.mrf.mxu0
        %v585 = vadd.f32 0.0, %v584
        %586 = vdwg.mxu0
        %s587 = scalar_lea.vmem %s5, 32
        %v588 = vld [vmem:[%s587] sm:$0xf]
        %v589 = vld [vmem:[%s587 + $0x4] sm:$0xf]
        %v590 = vld [vmem:[%s587 + $0x8] sm:$0xf]
        %v591 = vld [vmem:[%s587 + $0xc] sm:$0xf]
        %v592 = vpack.c.bf16 %v585, %v582
        %v597 = vunpack.c.l.b16 %v588
        %v598 = vunpack.c.l.b16 %v589
        %v599 = vunpack.c.l.b16 %v590
        %v600 = vunpack.c.l.b16 %v591
        %v601 = vpack.c.b16 %v598, %v597
        %v602 = vpack.c.b16 %v600, %v599
        %v606 = vsel %vm360, %v592, 0
        %608 = vmatpush.bf16.msra.mxu0 0
        %609 = vmatpush.bf16.msra.mxu0 0
        %610 = vmatpush.bf16.msra.mxu0 0
        %611 = vmatpush.bf16.msra.mxu0 0
        %612 = vmatpush.bf16.msra.mxu0 0
        %613 = vmatpush.bf16.msra.mxu0 0
        %614 = vmatpush.bf16.msra.mxu0 %v602
        %615 = vmatpush.bf16.msra.mxu0 %v601
        %616 = vmatmul.bf16.gmra.mxu0 %v606
        %v617 = vpop.f32.mrf.mxu0
        %v618 = vadd.f32 0.0, %v617
        %v619 = vpop.f32.mrf.mxu0
        %v620 = vadd.f32 0.0, %v619
        %621 = vdwg.mxu0
        %v622 = vadd.f32 %v551, %v618
        %v623 = vadd.f32 %v553, %v620
        %s624 = scalar_lea.vmem %s4, 48
        %v625 = vld [vmem:[%s624] sm:$0xff]
        %v626 = vld [vmem:[%s624 + $0x8] sm:$0xff]
        %v628 = vsel %vm424, %v625, 0
        %v631 = vsel %vm424, %v626, 0
        %633 = vmatpush.msra.mxu0 0.0
        %634 = vmatpush.msra.mxu0 0.0
        %635 = vmatpush.msra.mxu0 0.0
        %636 = vmatpush.msra.mxu0 0.0
        %637 = vmatpush.msra.mxu0 0.0
        %638 = vmatpush.msra.mxu0 0.0
        %639 = vmatpush.msra.mxu0 0.0
        %640 = vmatpush.msra.mxu0 0.0
        %641 = vmatpush.msra.mxu0 0.0
        %642 = vmatpush.msra.mxu0 0.0
        %643 = vmatpush.msra.mxu0 0.0
        %644 = vmatpush.msra.mxu0 0.0
        %645 = vmatpush.msra.mxu0 0.0
        %646 = vmatpush.msra.mxu0 0.0
        %647 = vmatpush.msra.mxu0 %v421
        %648 = vmatpush.msra.mxu0 %v420
        %649 = vmatmul.f32.gmra.mxu0 %v628
        %v650 = vpop.f32.mrf.mxu0
        %v651 = vadd.f32 0.0, %v650
        %652 = vmatmul.f32.gmra.mxu0 %v631
        %v653 = vpop.f32.mrf.mxu0
        %v654 = vadd.f32 0.0, %v653
        %655 = vdwg.mxu0
        %s656 = scalar_lea.vmem %s5, 48
        %v657 = vld [vmem:[%s656] sm:$0xf]
        %v658 = vld [vmem:[%s656 + $0x4] sm:$0xf]
        %v659 = vld [vmem:[%s656 + $0x8] sm:$0xf]
        %v660 = vld [vmem:[%s656 + $0xc] sm:$0xf]
        %v661 = vpack.c.bf16 %v654, %v651
        %v666 = vunpack.c.l.b16 %v657
        %v667 = vunpack.c.l.b16 %v658
        %v668 = vunpack.c.l.b16 %v659
        %v669 = vunpack.c.l.b16 %v660
        %v670 = vpack.c.b16 %v667, %v666
        %v671 = vpack.c.b16 %v669, %v668
        %v675 = vsel %vm360, %v661, 0
        %677 = vmatpush.bf16.msra.mxu0 0
        %678 = vmatpush.bf16.msra.mxu0 0
        %679 = vmatpush.bf16.msra.mxu0 0
        %680 = vmatpush.bf16.msra.mxu0 0
        %681 = vmatpush.bf16.msra.mxu0 0
        %682 = vmatpush.bf16.msra.mxu0 0
        %683 = vmatpush.bf16.msra.mxu0 %v671
        %684 = vmatpush.bf16.msra.mxu0 %v670
        %685 = vmatmul.bf16.gmra.mxu0 %v675
        %v686 = vpop.f32.mrf.mxu0
        %v687 = vadd.f32 0.0, %v686
        %v688 = vpop.f32.mrf.mxu0
        %v689 = vadd.f32 0.0, %v688
        %690 = vdwg.mxu0
        %v691 = vadd.f32 %v622, %v687
        %v692 = vadd.f32 %v623, %v689
        %s693 = scalar_lea.vmem %s4, 64
        %v694 = vld [vmem:[%s693] sm:$0xff]
        %v695 = vld [vmem:[%s693 + $0x8] sm:$0xff]
        %v697 = vsel %vm424, %v694, 0
        %v700 = vsel %vm424, %v695, 0
        %702 = vmatpush.msra.mxu0 0.0
        %703 = vmatpush.msra.mxu0 0.0
        %704 = vmatpush.msra.mxu0 0.0
        %705 = vmatpush.msra.mxu0 0.0
        %706 = vmatpush.msra.mxu0 0.0
        %707 = vmatpush.msra.mxu0 0.0
        %708 = vmatpush.msra.mxu0 0.0
        %709 = vmatpush.msra.mxu0 0.0
        %710 = vmatpush.msra.mxu0 0.0
        %711 = vmatpush.msra.mxu0 0.0
        %712 = vmatpush.msra.mxu0 0.0
        %713 = vmatpush.msra.mxu0 0.0
        %714 = vmatpush.msra.mxu0 0.0
        %715 = vmatpush.msra.mxu0 0.0
        %716 = vmatpush.msra.mxu0 %v421
        %717 = vmatpush.msra.mxu0 %v420
        %718 = vmatmul.f32.gmra.mxu0 %v697
        %v719 = vpop.f32.mrf.mxu0
        %v720 = vadd.f32 0.0, %v719
        %721 = vmatmul.f32.gmra.mxu0 %v700
        %v722 = vpop.f32.mrf.mxu0
        %v723 = vadd.f32 0.0, %v722
        %724 = vdwg.mxu0
        %s725 = scalar_lea.vmem %s5, 64
        %v726 = vld [vmem:[%s725] sm:$0xf]
        %v727 = vld [vmem:[%s725 + $0x4] sm:$0xf]
        %v728 = vld [vmem:[%s725 + $0x8] sm:$0xf]
        %v729 = vld [vmem:[%s725 + $0xc] sm:$0xf]
        %v730 = vpack.c.bf16 %v723, %v720
        %v735 = vunpack.c.l.b16 %v726
        %v736 = vunpack.c.l.b16 %v727
        %v737 = vunpack.c.l.b16 %v728
        %v738 = vunpack.c.l.b16 %v729
        %v739 = vpack.c.b16 %v736, %v735
        %v740 = vpack.c.b16 %v738, %v737
        %v744 = vsel %vm360, %v730, 0
        %746 = vmatpush.bf16.msra.mxu0 0
        %747 = vmatpush.bf16.msra.mxu0 0
        %748 = vmatpush.bf16.msra.mxu0 0
        %749 = vmatpush.bf16.msra.mxu0 0
        %750 = vmatpush.bf16.msra.mxu0 0
        %751 = vmatpush.bf16.msra.mxu0 0
        %752 = vmatpush.bf16.msra.mxu0 %v740
        %753 = vmatpush.bf16.msra.mxu0 %v739
        %754 = vmatmul.bf16.gmra.mxu0 %v744
        %v755 = vpop.f32.mrf.mxu0
        %v756 = vadd.f32 0.0, %v755
        %v757 = vpop.f32.mrf.mxu0
        %v758 = vadd.f32 0.0, %v757
        %759 = vdwg.mxu0
        %v760 = vadd.f32 %v691, %v756
        %v761 = vadd.f32 %v692, %v758
        %s762 = scalar_lea.vmem %s4, 80
        %v763 = vld [vmem:[%s762] sm:$0xff]
        %v764 = vld [vmem:[%s762 + $0x8] sm:$0xff]
        %v766 = vsel %vm424, %v763, 0
        %v769 = vsel %vm424, %v764, 0
        %771 = vmatpush.msra.mxu0 0.0
        %772 = vmatpush.msra.mxu0 0.0
        %773 = vmatpush.msra.mxu0 0.0
        %774 = vmatpush.msra.mxu0 0.0
        %775 = vmatpush.msra.mxu0 0.0
        %776 = vmatpush.msra.mxu0 0.0
        %777 = vmatpush.msra.mxu0 0.0
        %778 = vmatpush.msra.mxu0 0.0
        %779 = vmatpush.msra.mxu0 0.0
        %780 = vmatpush.msra.mxu0 0.0
        %781 = vmatpush.msra.mxu0 0.0
        %782 = vmatpush.msra.mxu0 0.0
        %783 = vmatpush.msra.mxu0 0.0
        %784 = vmatpush.msra.mxu0 0.0
        %785 = vmatpush.msra.mxu0 %v421
        %786 = vmatpush.msra.mxu0 %v420
        %787 = vmatmul.f32.gmra.mxu0 %v766
        %v788 = vpop.f32.mrf.mxu0
        %v789 = vadd.f32 0.0, %v788
        %790 = vmatmul.f32.gmra.mxu0 %v769
        %v791 = vpop.f32.mrf.mxu0
        %v792 = vadd.f32 0.0, %v791
        %793 = vdwg.mxu0
        %s794 = scalar_lea.vmem %s5, 80
        %v795 = vld [vmem:[%s794] sm:$0xf]
        %v796 = vld [vmem:[%s794 + $0x4] sm:$0xf]
        %v797 = vld [vmem:[%s794 + $0x8] sm:$0xf]
        %v798 = vld [vmem:[%s794 + $0xc] sm:$0xf]
        %v799 = vpack.c.bf16 %v792, %v789
        %v804 = vunpack.c.l.b16 %v795
        %v805 = vunpack.c.l.b16 %v796
        %v806 = vunpack.c.l.b16 %v797
        %v807 = vunpack.c.l.b16 %v798
        %v808 = vpack.c.b16 %v805, %v804
        %v809 = vpack.c.b16 %v807, %v806
        %v813 = vsel %vm360, %v799, 0
        %815 = vmatpush.bf16.msra.mxu0 0
        %816 = vmatpush.bf16.msra.mxu0 0
        %817 = vmatpush.bf16.msra.mxu0 0
        %818 = vmatpush.bf16.msra.mxu0 0
        %819 = vmatpush.bf16.msra.mxu0 0
        %820 = vmatpush.bf16.msra.mxu0 0
        %821 = vmatpush.bf16.msra.mxu0 %v809
        %822 = vmatpush.bf16.msra.mxu0 %v808
        %823 = vmatmul.bf16.gmra.mxu0 %v813
        %v824 = vpop.f32.mrf.mxu0
        %v825 = vadd.f32 0.0, %v824
        %v826 = vpop.f32.mrf.mxu0
        %v827 = vadd.f32 0.0, %v826
        %828 = vdwg.mxu0
        %v829 = vadd.f32 %v760, %v825
        %v830 = vadd.f32 %v761, %v827
        %s831 = scalar_lea.vmem %s4, 96
        %v832 = vld [vmem:[%s831] sm:$0xff]
        %v833 = vld [vmem:[%s831 + $0x8] sm:$0xff]
        %v835 = vsel %vm424, %v832, 0
        %v838 = vsel %vm424, %v833, 0
        %840 = vmatpush.msra.mxu0 0.0
        %841 = vmatpush.msra.mxu0 0.0
        %842 = vmatpush.msra.mxu0 0.0
        %843 = vmatpush.msra.mxu0 0.0
        %844 = vmatpush.msra.mxu0 0.0
        %845 = vmatpush.msra.mxu0 0.0
        %846 = vmatpush.msra.mxu0 0.0
        %847 = vmatpush.msra.mxu0 0.0
        %848 = vmatpush.msra.mxu0 0.0
        %849 = vmatpush.msra.mxu0 0.0
        %850 = vmatpush.msra.mxu0 0.0
        %851 = vmatpush.msra.mxu0 0.0
        %852 = vmatpush.msra.mxu0 0.0
        %853 = vmatpush.msra.mxu0 0.0
        %854 = vmatpush.msra.mxu0 %v421
        %855 = vmatpush.msra.mxu0 %v420
        %856 = vmatmul.f32.gmra.mxu0 %v835
        %v857 = vpop.f32.mrf.mxu0
        %v858 = vadd.f32 0.0, %v857
        %859 = vmatmul.f32.gmra.mxu0 %v838
        %v860 = vpop.f32.mrf.mxu0
        %v861 = vadd.f32 0.0, %v860
        %862 = vdwg.mxu0
        %s863 = scalar_lea.vmem %s5, 96
        %v864 = vld [vmem:[%s863] sm:$0xf]
        %v865 = vld [vmem:[%s863 + $0x4] sm:$0xf]
        %v866 = vld [vmem:[%s863 + $0x8] sm:$0xf]
        %v867 = vld [vmem:[%s863 + $0xc] sm:$0xf]
        %v868 = vpack.c.bf16 %v861, %v858
        %v873 = vunpack.c.l.b16 %v864
        %v874 = vunpack.c.l.b16 %v865
        %v875 = vunpack.c.l.b16 %v866
        %v876 = vunpack.c.l.b16 %v867
        %v877 = vpack.c.b16 %v874, %v873
        %v878 = vpack.c.b16 %v876, %v875
        %v882 = vsel %vm360, %v868, 0
        %884 = vmatpush.bf16.msra.mxu0 0
        %885 = vmatpush.bf16.msra.mxu0 0
        %886 = vmatpush.bf16.msra.mxu0 0
        %887 = vmatpush.bf16.msra.mxu0 0
        %888 = vmatpush.bf16.msra.mxu0 0
        %889 = vmatpush.bf16.msra.mxu0 0
        %890 = vmatpush.bf16.msra.mxu0 %v878
        %891 = vmatpush.bf16.msra.mxu0 %v877
        %892 = vmatmul.bf16.gmra.mxu0 %v882
        %v893 = vpop.f32.mrf.mxu0
        %v894 = vadd.f32 0.0, %v893
        %v895 = vpop.f32.mrf.mxu0
        %v896 = vadd.f32 0.0, %v895
        %897 = vdwg.mxu0
        %v898 = vadd.f32 %v829, %v894
        %v899 = vadd.f32 %v830, %v896
        %s900 = scalar_lea.vmem %s4, 112
        %v901 = vld [vmem:[%s900] sm:$0xff]
        %v902 = vld [vmem:[%s900 + $0x8] sm:$0xff]
        %v904 = vsel %vm424, %v901, 0
        %v907 = vsel %vm424, %v902, 0
        %909 = vmatpush.msra.mxu0 0.0
        %910 = vmatpush.msra.mxu0 0.0
        %911 = vmatpush.msra.mxu0 0.0
        %912 = vmatpush.msra.mxu0 0.0
        %913 = vmatpush.msra.mxu0 0.0
        %914 = vmatpush.msra.mxu0 0.0
        %915 = vmatpush.msra.mxu0 0.0
        %916 = vmatpush.msra.mxu0 0.0
        %917 = vmatpush.msra.mxu0 0.0
        %918 = vmatpush.msra.mxu0 0.0
        %919 = vmatpush.msra.mxu0 0.0
        %920 = vmatpush.msra.mxu0 0.0
        %921 = vmatpush.msra.mxu0 0.0
        %922 = vmatpush.msra.mxu0 0.0
        %923 = vmatpush.msra.mxu0 %v421
        %924 = vmatpush.msra.mxu0 %v420
        %925 = vmatmul.f32.gmra.mxu0 %v904
        %v926 = vpop.f32.mrf.mxu0
        %v927 = vadd.f32 0.0, %v926
        %928 = vmatmul.f32.gmra.mxu0 %v907
        %v929 = vpop.f32.mrf.mxu0
        %v930 = vadd.f32 0.0, %v929
        %931 = vdwg.mxu0
        %s932 = scalar_lea.vmem %s5, 112
        %v933 = vld [vmem:[%s932] sm:$0xf]
        %v934 = vld [vmem:[%s932 + $0x4] sm:$0xf]
        %v935 = vld [vmem:[%s932 + $0x8] sm:$0xf]
        %v936 = vld [vmem:[%s932 + $0xc] sm:$0xf]
        %v937 = vpack.c.bf16 %v930, %v927
        %v942 = vunpack.c.l.b16 %v933
        %v943 = vunpack.c.l.b16 %v934
        %v944 = vunpack.c.l.b16 %v935
        %v945 = vunpack.c.l.b16 %v936
        %v946 = vpack.c.b16 %v943, %v942
        %v947 = vpack.c.b16 %v945, %v944
        %v951 = vsel %vm360, %v937, 0
        %953 = vmatpush.bf16.msra.mxu0 0
        %954 = vmatpush.bf16.msra.mxu0 0
        %955 = vmatpush.bf16.msra.mxu0 0
        %956 = vmatpush.bf16.msra.mxu0 0
        %957 = vmatpush.bf16.msra.mxu0 0
        %958 = vmatpush.bf16.msra.mxu0 0
        %959 = vmatpush.bf16.msra.mxu0 %v947
        %960 = vmatpush.bf16.msra.mxu0 %v946
        %961 = vmatmul.bf16.gmra.mxu0 %v951
        %v962 = vpop.f32.mrf.mxu0
        %v963 = vadd.f32 0.0, %v962
        %v964 = vpop.f32.mrf.mxu0
        %v965 = vadd.f32 0.0, %v964
        %966 = vdwg.mxu0
        %v967 = vadd.f32 %v898, %v963
        %v968 = vadd.f32 %v899, %v965
        %s969 = scalar_lea.vmem %s4, 128
        %v970 = vld [vmem:[%s969] sm:$0xff]
        %v971 = vld [vmem:[%s969 + $0x8] sm:$0xff]
        %v973 = vsel %vm424, %v970, 0
        %v976 = vsel %vm424, %v971, 0
        %978 = vmatpush.msra.mxu0 0.0
        %979 = vmatpush.msra.mxu0 0.0
        %980 = vmatpush.msra.mxu0 0.0
        %981 = vmatpush.msra.mxu0 0.0
        %982 = vmatpush.msra.mxu0 0.0
        %983 = vmatpush.msra.mxu0 0.0
        %984 = vmatpush.msra.mxu0 0.0
        %985 = vmatpush.msra.mxu0 0.0
        %986 = vmatpush.msra.mxu0 0.0
        %987 = vmatpush.msra.mxu0 0.0
        %988 = vmatpush.msra.mxu0 0.0
        %989 = vmatpush.msra.mxu0 0.0
        %990 = vmatpush.msra.mxu0 0.0
        %991 = vmatpush.msra.mxu0 0.0
        %992 = vmatpush.msra.mxu0 %v421
        %993 = vmatpush.msra.mxu0 %v420
        %994 = vmatmul.f32.gmra.mxu0 %v973
        %v995 = vpop.f32.mrf.mxu0
        %v996 = vadd.f32 0.0, %v995
        %997 = vmatmul.f32.gmra.mxu0 %v976
        %v998 = vpop.f32.mrf.mxu0
        %v999 = vadd.f32 0.0, %v998
        %1000 = vdwg.mxu0
        %s1001 = scalar_lea.vmem %s5, 128
        %v1002 = vld [vmem:[%s1001] sm:$0xf]
        %v1003 = vld [vmem:[%s1001 + $0x4] sm:$0xf]
        %v1004 = vld [vmem:[%s1001 + $0x8] sm:$0xf]
        %v1005 = vld [vmem:[%s1001 + $0xc] sm:$0xf]
        %v1006 = vpack.c.bf16 %v999, %v996
        %v1011 = vunpack.c.l.b16 %v1002
        %v1012 = vunpack.c.l.b16 %v1003
        %v1013 = vunpack.c.l.b16 %v1004
        %v1014 = vunpack.c.l.b16 %v1005
        %v1015 = vpack.c.b16 %v1012, %v1011
        %v1016 = vpack.c.b16 %v1014, %v1013
        %v1020 = vsel %vm360, %v1006, 0
        %1022 = vmatpush.bf16.msra.mxu0 0
        %1023 = vmatpush.bf16.msra.mxu0 0
        %1024 = vmatpush.bf16.msra.mxu0 0
        %1025 = vmatpush.bf16.msra.mxu0 0
        %1026 = vmatpush.bf16.msra.mxu0 0
        %1027 = vmatpush.bf16.msra.mxu0 0
        %1028 = vmatpush.bf16.msra.mxu0 %v1016
        %1029 = vmatpush.bf16.msra.mxu0 %v1015
        %1030 = vmatmul.bf16.gmra.mxu0 %v1020
        %v1031 = vpop.f32.mrf.mxu0
        %v1032 = vadd.f32 0.0, %v1031
        %v1033 = vpop.f32.mrf.mxu0
        %v1034 = vadd.f32 0.0, %v1033
        %1035 = vdwg.mxu0
        %v1036 = vadd.f32 %v967, %v1032
        %v1037 = vadd.f32 %v968, %v1034
        %v1038 = vld [vmem:[%s6] sm:$0x1]
        %v1039 = vld [vmem:[%s7] sm:$0x1]
        %v1040 = vsel %vm360, %v1036, 0.0
        %1041 = vadd.xlane.f32.xlu0 %v1040
        %v1042 = vpop.xlane.xlu0 %1041
        %v1043 = vsel %vm360, %v1037, 0.0
        %1044 = vadd.xlane.f32.xlu0 %v1043
        %v1045 = vpop.xlane.xlu0 %1044
        %v1046 = vmul.f32 %v1042, %v373
        %v1047 = vmul.f32 %v1045, %v373
        %v1048 = vsub.f32 %v1036, %v1046
        %v1049 = vsub.f32 %v1037, %v1047
        %v1050 = vmul.f32 %v1048, %v1048
        %v1051 = vmul.f32 %v1049, %v1049
        %v1052 = vsel %vm360, %v1050, 0.0
        %1053 = vadd.xlane.f32.xlu0 %v1052
        %v1054 = vpop.xlane.xlu0 %1053
        %v1055 = vsel %vm360, %v1051, 0.0
        %1056 = vadd.xlane.f32.xlu0 %v1055
        %v1057 = vpop.xlane.xlu0 %1056
        %v1058 = vmul.f32 %v1054, %v373
        %v1059 = vmul.f32 %v1057, %v373
        %v1060 = vadd.f32 %v1058, 1e-06
        %v1061 = vadd.f32 %v1059, 1e-06
        %v1062 = vrsqrt.pop %v1060
        %v1063 = vmul.f32 %v1062, %v1060
        %v1064 = vmul.f32 %v1063, %v1062
        %v1065 = vmul.f32 0.5, %v1064
        %v1066 = vsub.f32 1.5, %v1065
        %v1067 = vmul.f32 %v1062, %v1066
        %vm1068 = vweird.f32 %v1060
        %vm1069 = vweird.f32 %v1062
        %vm1070 = vmor %vm1068, %vm1069
        %v1071 = vsel %vm1070, %v1062, %v1067
        %v1072 = vrsqrt.pop %v1061
        %v1073 = vmul.f32 %v1072, %v1061
        %v1074 = vmul.f32 %v1073, %v1072
        %v1075 = vmul.f32 0.5, %v1074
        %v1076 = vsub.f32 1.5, %v1075
        %v1077 = vmul.f32 %v1072, %v1076
        %vm1078 = vweird.f32 %v1061
        %vm1079 = vweird.f32 %v1072
        %vm1080 = vmor %vm1078, %vm1079
        %v1081 = vsel %vm1080, %v1072, %v1077
        %v1082 = vmul.f32 %v1048, %v1071
        %v1083 = vmul.f32 %v1049, %v1081
        %v1085 = vperm.slane %v1038, 0
        %v1087 = vmul.f32 %v1082, %v1085
        %v1088 = vmul.f32 %v1083, %v1085
        %v1090 = vperm.slane %v1039, 0
        %v1092 = vadd.f32 %v1087, %v1090
        %v1093 = vadd.f32 %v1088, %v1090
        %1094 = vst.msk [vmem:[%s298] sm:$0xff] %vm360, %v1092
        %1095 = vst.msk [vmem:[%s298 + $0x8] sm:$0xff] %vm360, %v1093
        %s1096 = sand.u32 %s203, 1
        %s1097 = scalar_lea.sflag [#allocation3], %s1096
        %s1098 = sand.u32 %s203, 1
        %s1099 = smul.addr %s1098, 16
        %s1100 = scalar_lea.vmem [#allocation2], %s1099
        // Predicated region
        $region53: #{encode_images.5} parent=51 // pred_check
          %p1101 = pneg %p213
        $region54: #{encode_images.5} parent=51 // pred_check_branch
          %1103 = sbr.rel (%p1101) target = $region56
        $region55: #{encode_images.5} parent=51 // pred_region
          %1105 = vsyncadd %s1097, 0
          %s1106 = smul.addr %s22, 2
          %s1107 = smul.addr %s1106, 8
          %s1108 = scalar_lea.hbm %s8, %s1107
          %s1109 = sshll.u32 %s1100, 4
          %s1110 = int_to_ptr.vmem [resolvable:$true] %s1109
          %s1111 = sshll.u32 %s1108, 4
          %s1112 = int_to_ptr.hbm [resolvable:$true] %s1111
          %1117 = dma.vmem_to_hbm [thread:$0]  %s1110, 256, %s1112, %s1097, 128, 128, 8
        $region56: #{encode_images.5} parent=51 // pred_fallthru
          _
      $region52: #{encode_images.5} parent=5 // pred_fallthru
        _
      %p1118 = scmp.le.s32.totalorder 2, %s17
      // Predicated region
      $region57: #{encode_images.5} parent=5 // pred_check
        %p1119 = pneg %p1118
      $region58: #{encode_images.5} parent=5 // pred_check_branch
        %1121 = sbr.rel (%p1119) target = $region60
      $region59: #{encode_images.5} parent=5 // pred_region
        %s1122 = ssub.s32 %s17, 2
        // Predicated region
        $region61: #{encode_images.5} parent=59 // pred_check
          %p1123 = pneg %p219
        $region62: #{encode_images.5} parent=59 // pred_check_branch
          %1125 = sbr.rel (%p1123) target = $region64
        $region63: #{encode_images.5} parent=59 // pred_region
          %s1126 = sand.u32 %s204, 1
          %s1127 = scalar_lea.sflag [#allocation3], %s1126
          %s1128 = sand.u32 %s204, 1
          %s1129 = smul.addr %s1128, 16
          %s1130 = scalar_lea.vmem [#allocation2], %s1129
          %1132 = dma.done %s1127, 256
        $region64: #{encode_images.5} parent=59 // pred_fallthru
          _
      $region60: #{encode_images.5} parent=5 // pred_fallthru
        _
    $region6: #{encode_images.5} parent=1 // loop_footer
      %s21 = sadd.s32 1, %s17
    $region7: #{encode_images.5} parent=1 // loop_footer_branch
      %16 = sbr.rel target = $region3
    $region8: #{encode_images.5} parent=1 // loop_exit
      _
    %1133 = vsyncpa [#allocation3], 1
    %s1134 = scalar_lea.sflag [#allocation3], 1
    %1135 = vsyncpa %s1134, 1

</llo_original>
